<compile_context>
chip_gen: v7x
topology: tpu7x:2x2x1
jax: 0.10.0
libtpu: 0.0.40
codegen_flags: <defaults>
</compile_context>

<pallas_src>
import math

import numpy as np
import jax
import jax.numpy as jnp
from jax.experimental import pallas as pl
from jax.experimental.pallas import tpu as pltpu

# ----------------------------- configuration (small) -----------------------------
BATCH = 2                 # per-chunk batch the constant operators encode
CHANNELS = 3
IMAGE_SIZE = 16
CODE_DIM = 8
CONV_DIM = 8
Z_DIM = 4
K_DIM = 16
HIDDEN = Z_DIM * CODE_DIM * CODE_DIM                # 256
REPEAT_NUM = int(math.log2(IMAGE_SIZE / CODE_DIM))  # = 1 for this config
CURR = CONV_DIM * (REPEAT_NUM + 1)                  # 16 channels before the 1x1 encoder conv

EPS = 1e-6           # module-level `eps` in the reference file
BN_EPS = 1e-5        # nn.BatchNorm2d default
LEAKY_SLOPE = 0.01   # nn.LeakyReLU default
CLAMP_LO = float(np.log(EPS))
CLAMP_HI = float(-np.log(EPS))

# derived layout constants (shared by host packing and the kernel)
BH = BATCH * IMAGE_SIZE          # 32  activation rows at 16x16 spatial
BQ = BATCH * CODE_DIM            # 16  activation rows at 8x8 spatial
TWO_K = 2 * K_DIM                # 32  [mu | logvar] width
JC = CODE_DIM * Z_DIM            # 32  width of one (j, c) block in the un-flatten layout
TAPW = IMAGE_SIZE * CONV_DIM     # 128 width of every per-tap output block (lane dense)
E0_K = IMAGE_SIZE * CHANNELS     # 48  rows of Ccat_e0
E1_K = IMAGE_SIZE * CONV_DIM     # 128 rows of Ccat_e1
D1_K = CODE_DIM * CURR           # 128 rows of Ccat_d1
D2_K = IMAGE_SIZE * CONV_DIM     # 128 rows of Ccat_d2

assert TWO_K == JC and (TWO_K & (TWO_K - 1)) == 0 and (CODE_DIM & (CODE_DIM - 1)) == 0
MASK_SHIFT = int(math.log2(TWO_K))   # 5 : column // 32 via a shift (no integer divide in-kernel)

# f32 "selection operator" slab (width = BH = 32) row offsets
OFF_E0R = 0                                 # 3 blocks of (BH, BH)
OFF_E1R = OFF_E0R + 3 * BH                  # 4 blocks of (BQ, BH)
OFF_D1RT = OFF_E1R + 4 * BQ                 # 4 blocks of (BH, BQ)
OFF_D2R = OFF_D1RT + 4 * BH                 # 3 blocks of (BH, BH)
OFF_FOLDE = OFF_D2R + 3 * BH                # (CODE_DIM*TWO_K, TWO_K)
OFF_BSUM = OFF_FOLDE + CODE_DIM * TWO_K     # (BATCH, BQ)
OFF_EXPAND = ((OFF_BSUM + BATCH + 7) // 8) * 8   # 8-row aligned, (BQ, BATCH)
SEL_ROWS = OFF_EXPAND + BQ

# f32 shift/bias slab (width 128) row offsets
ROW_E0S, ROW_E1S, ROW_D1S, ROW_D2S, ROW_MLB, ROW_BZM = 0, 8, 16, 24, 32, 40
SHIFT_ROWS = ROW_BZM + BQ
SHIFT_W = 128


# --------------------------------- the Pallas kernel ------------------------------
def _vae5_kernel(x_ref, cc512_ref, cc384_ref, cc256_ref, fold_d2_ref,
                 sel32_ref, shifts_ref, ml_ref, recon_ref):
    """Whole VAE5 forward (eval mode) for one BATCH-sized chunk; everything stays in VMEM."""
    f32, bf16 = jnp.float32, jnp.bfloat16

    def bmm(a, b):                       # bf16 MXU matmul, f32 accumulation
        return jnp.dot(a.astype(bf16), b, preferred_element_type=f32)

    def smm(a, b):                       # exact f32 matmul for tiny 0/1 selection operators
        return jnp.dot(a, b, preferred_element_type=f32)

    def leaky(y):
        return jnp.where(y >= 0.0, y, LEAKY_SLOPE * y)

    def conv_taps(a, ccat, rsel, shift_row):
        # Conv / ConvTranspose (+ folded BN + bias):
        #   N = a @ [C_0 | ... | C_kh-1]   (one wide matmul)
        #   y = sum_di R[di] @ N[:, di-th 128-wide block] + shift   (independent tiny matmuls)
        n_all = bmm(a, ccat)
        acc = None
        for di, r in enumerate(rsel):
            t = smm(r, n_all[:, di * TAPW:(di + 1) * TAPW])
            acc = t if acc is None else acc + t
        return acc + shift_row

    # ---- unpack the packed constant slabs (static ref slices) ----
    r_e0 = [sel32_ref[OFF_E0R + BH * d:OFF_E0R + BH * (d + 1), 0:BH] for d in range(3)]
    r_e1 = [sel32_ref[OFF_E1R + BQ * d:OFF_E1R + BQ * (d + 1), 0:BH] for d in range(4)]
    rt_d1 = [sel32_ref[OFF_D1RT + BH * d:OFF_D1RT + BH * (d + 1), 0:BQ] for d in range(4)]
    r_d2 = [sel32_ref[OFF_D2R + BH * d:OFF_D2R + BH * (d + 1), 0:BH] for d in range(3)]
    fold_e = sel32_ref[OFF_FOLDE:OFF_FOLDE + CODE_DIM * TWO_K, 0:TWO_K]
    bsum = sel32_ref[OFF_BSUM:OFF_BSUM + BATCH, 0:BQ]
    expand = sel32_ref[OFF_EXPAND:OFF_EXPAND + BQ, 0:BATCH]

    e0s = shifts_ref[ROW_E0S:ROW_E0S + 1, :]
    e1s = shifts_ref[ROW_E1S:ROW_E1S + 1, :]
    d1s = shifts_ref[ROW_D1S:ROW_D1S + 1, :]
    d2s = shifts_ref[ROW_D2S:ROW_D2S + 1, :]
    mlb = shifts_ref[ROW_MLB:ROW_MLB + 1, 0:TWO_K]
    bzm = shifts_ref[ROW_BZM:ROW_BZM + BQ, :]

    # ---- encoder ----
    a0 = leaky(conv_taps(x_ref[...], cc384_ref[0:E0_K, :], r_e0, e0s))          # (BH, 128)
    a1 = leaky(conv_taps(a0, cc512_ref[0:E1_K, :], r_e1, e1s))                  # (BQ, 128)

    # ---- torch .view flatten + fused [mu | logvar] head (1x1 encoder conv pre-folded) ----
    rowi = jax.lax.broadcasted_iota(jnp.int32, (BQ, CODE_DIM * TWO_K), 0)
    coli = jax.lax.broadcasted_iota(jnp.int32, (BQ, CODE_DIM * TWO_K), 1)
    sel_mask = jnp.bitwise_and(rowi, CODE_DIM - 1) == jnp.right_shift(coli, MASK_SHIFT)

    t = jnp.where(sel_mask, bmm(a1, cc256_ref[0:CODE_DIM * CURR, :]), 0.0)      # (BQ, 256)
    ml = smm(smm(bsum, t), fold_e) + mlb                                        # (BATCH, 32)
    colk = jax.lax.broadcasted_iota(jnp.int32, (BATCH, TWO_K), 1)
    ml_out = jnp.where(colk >= K_DIM, jnp.clip(ml, CLAMP_LO, CLAMP_HI), ml)
    ml_ref[0] = ml_out
    # TODO(synk): training-mode reparameterised sampling + batch-statistic BatchNorm (eval: z = mu).

    # ---- z linear + torch .view un-flatten + folded 1x1 deconv (+BN) + LeakyReLU ----
    zh = bmm(ml, cc256_ref[CODE_DIM * CURR:CODE_DIM * CURR + TWO_K, :])         # (BATCH, 256)
    p = jnp.where(sel_mask, smm(expand, zh), 0.0)                               # (BQ, 256)
    a2 = leaky(bmm(p, fold_d2_ref[...]) + bzm)                                  # (BQ, 128)

    # ---- decoder ----
    a3 = leaky(conv_taps(a2, cc512_ref[E1_K:E1_K + D1_K, :], rt_d1, d1s))       # (BH, 128)
    y = conv_taps(a3, cc384_ref[E0_K:E0_K + D2_K, :], r_d2, d2s)                # (BH, 128)
    recon_ref[...] = 1.0 / (1.0 + jnp.exp(-y))                                  # sigmoid


# -------------------- host-side one-time lowering of the layers --------------------
def _conv_rc(w_scaled, H, W, stride, pad, batch):
    """Constant operator stacks (R, C) for a Conv2d so that, with
    Am[b*H + i, w*Ci + ci] = A[b, i, w, ci]:   Ym = sum_di R[di] @ Am @ C[di].
    R[di]: (batch*Ho, batch*H) 0/1 height selection (stride, zero-pad, batch-isolated).
    C[di]: (W*Ci, Wo*Co)       width taps x channel mixing (BN scale pre-folded)."""
    Co, Ci, kh, kw = w_scaled.shape
    Ho = (H + 2 * pad - kh) // stride + 1
    Wo = (W + 2 * pad - kw) // stride + 1
    R = np.zeros((kh, batch * Ho, batch * H), np.float64)
    C = np.zeros((kh, W * Ci, Wo * Co), np.float64)
    for di in range(kh):
        for b in range(batch):
            for i in range(Ho):
                h = stride * i + di - pad
                if 0 <= h < H:
                    R[di, b * Ho + i, b * H + h] = 1.0
        for j in range(Wo):
            for dj in range(kw):
                w = stride * j + dj - pad
                if 0 <= w < W:
                    C[di, w * Ci:(w + 1) * Ci, j * Co:(j + 1) * Co] += w_scaled[:, :, di, dj].T
    return R, C, Ho, Wo


def prepare_constants(params, batch=BATCH):
    """One-time host (numpy) transform of the PyTorch-layout parameters into six packed
    kernel operands.  BN scales fold into the weights, biases+BN shifts into row vectors,
    the two 1x1 layers fold into the neighbouring head / un-flatten operators, and all
    per-tap width matrices are concatenated into single wide bf16 slabs."""
    assert batch == BATCH
    g = lambda name: np.asarray(params[name], np.float64)

    def fold_bn(bias, bn_name):
        if bn_name is None:
            return np.ones_like(bias), bias
        gamma, beta, rmean, rvar = [np.asarray(t, np.float64) for t in params[bn_name]]
        scale = gamma / np.sqrt(rvar + BN_EPS)
        return scale, beta + scale * (bias - rmean)

    def conv_ops(wname, bname, bn_name, H, W, stride, pad):
        w, b = g(wname), g(bname)                      # w: (Co, Ci, kh, kw)
        scale, shift = fold_bn(b, bn_name)
        R, C, Ho, Wo = _conv_rc(w * scale[:, None, None, None], H, W, stride, pad, batch)
        return R, C, np.tile(shift, Wo)[None, :], Ho, Wo

    def deconv_ops(wname, bname, bn_name, Hs, Ws, stride, pad):
        wd, b = g(wname), g(bname)                     # wd: (Ci_dec, Co_dec, kh, kw)
        scale, shift = fold_bn(b, bn_name)             # per Co_dec
        kh, kw = wd.shape[2], wd.shape[3]
        Hb = (Hs - 1) * stride - 2 * pad + kh
        Wb = (Ws - 1) * stride - 2 * pad + kw
        # deconv = transpose of the forward conv that uses wd as its (Co, Ci, kh, kw) weight;
        # BN scale folds along that conv's Ci axis (= deconv output channels).
        R, C, Ho, Wo = _conv_rc(wd * scale[None, :, None, None], Hb, Wb, stride, pad, batch)
        assert (Ho, Wo) == (Hs, Ws)
        RT = np.ascontiguousarray(np.transpose(R, (0, 2, 1)))
        CT = np.ascontiguousarray(np.transpose(C, (0, 2, 1)))
        return RT, CT, np.tile(shift, Wb)[None, :], Hb, Wb

    # ---- encoder convs ----
    e0R, e0C, e0s, H, W = conv_ops("enc0_w", "enc0_b", "enc0_bn", IMAGE_SIZE, IMAGE_SIZE, 1, 1)
    e1R, e1C, e1s, H, W = conv_ops("enc1_w", "enc1_b", "enc1_bn", H, W, 2, 1)
    _, e2C, e2s, H, W = conv_ops("enc2_w", "enc2_b", None, H, W, 1, 0)   # 1x1: R is identity
    assert (H, W) == (CODE_DIM, CODE_DIM)

    # ---- flatten (torch NCHW .view) + fused [mu | logvar] head, with enc2 folded in ----
    w_ml = np.concatenate([g("mu_w"), g("logvar_w")], axis=0)            # (2K, HIDDEN)
    wcat = (w_ml.reshape(TWO_K, Z_DIM, CODE_DIM, CODE_DIM)               # (k, c, i, j)
            .transpose(3, 1, 2, 0)                                       # (j, c, i, k)
            .reshape(CODE_DIM * Z_DIM, CODE_DIM * TWO_K))
    fold_e = np.tile(np.eye(TWO_K), (CODE_DIM, 1))
    bsum = np.kron(np.eye(batch), np.ones((1, CODE_DIM)))
    mlb = np.concatenate([g("mu_b"), g("logvar_b")])[None, :]
    wcat2 = e2C[0] @ wcat                                                # (8*CURR, 8*2K)
    mlb2 = mlb + (e2s @ wcat) @ fold_e                                   # enc2 bias folded in

    # ---- z linear + torch .view un-flatten, with the 1x1 decoder deconv folded in ----
    wz = (g("z_w").reshape(Z_DIM, CODE_DIM, CODE_DIM, K_DIM)             # z_w: (HIDDEN, K)
          .transpose(3, 1, 2, 0).reshape(K_DIM, CODE_DIM * JC))
    wzcat = np.concatenate([wz, np.zeros_like(wz)], axis=0)              # (2K, 256); z = mu
    expand = np.kron(np.eye(batch), np.ones((CODE_DIM, 1)))
    fold_d = np.tile(np.eye(JC), (CODE_DIM, 1))                          # (256, 32)
    bzm = np.tile(g("z_b").reshape(Z_DIM, CODE_DIM, CODE_DIM)
                  .transpose(1, 2, 0).reshape(CODE_DIM, JC), (batch, 1))  # (16, 32)

    _, d0CT, d0s, Hd, Wd = deconv_ops("dec0_w", "dec0_b", "dec0_bn", CODE_DIM, CODE_DIM, 1, 0)
    fold_d2 = fold_d @ d0CT[0]                                           # (256, 128)
    bzm2 = bzm @ d0CT[0] + d0s                                           # (16, 128)

    # ---- decoder convs ----
    d1RT, d1CT, d1s, Hd, Wd = deconv_ops("dec1_w", "dec1_b", "dec1_bn", Hd, Wd, 2, 1)
    d2R, d2C, d2s, Hd, Wd = conv_ops("dec2_w", "dec2_b", None, Hd, Wd, 1, 1)
    assert (Hd, Wd) == (IMAGE_SIZE, IMAGE_SIZE)
    assert e0C.shape[2] == TAPW and e1C.shape[2] == TAPW
    assert d1CT.shape[2] == TAPW and d2C.shape[2] <= TAPW

    # ---- pack wide bf16 operator slabs (lane-dense, few DMAs) ----
    cc512 = np.zeros((E1_K + D1_K, 512))
    cc512[0:E1_K, :] = np.concatenate(list(e1C), axis=1)                 # Ccat_e1 (128, 4*128)
    cc512[E1_K:E1_K + D1_K, :] = np.concatenate(list(d1CT), axis=1)      # Ccat_d1 (128, 4*128)

    cc384 = np.zeros((E0_K + D2_K, 384))
    cc384[0:E0_K, :] = np.concatenate(list(e0C), axis=1)                 # Ccat_e0 (48, 3*128)
    for di in range(3):                                                  # Ccat_d2 padded to 128 blocks
        cc384[E0_K:E0_K + D2_K, TAPW * di:TAPW * di + d2C.shape[2]] = d2C[di]

    cc256 = np.zeros((CODE_DIM * CURR + TWO_K, 256))
    cc256[0:CODE_DIM * CURR, :] = wcat2
    cc256[CODE_DIM * CURR:, :] = wzcat

    # ---- pack the exact (f32) selection operators ----
    sel32 = np.zeros((SEL_ROWS, BH))
    for di in range(3):
        sel32[OFF_E0R + BH * di:OFF_E0R + BH * (di + 1), :] = e0R[di]
    for di in range(4):
        sel32[OFF_E1R + BQ * di:OFF_E1R + BQ * (di + 1), :] = e1R[di]
    for di in range(4):
        sel32[OFF_D1RT + BH * di:OFF_D1RT + BH * (di + 1), 0:BQ] = d1RT[di]
    for di in range(3):
        sel32[OFF_D2R + BH * di:OFF_D2R + BH * (di + 1), :] = d2R[di]
    sel32[OFF_FOLDE:OFF_FOLDE + CODE_DIM * TWO_K, 0:TWO_K] = fold_e
    sel32[OFF_BSUM:OFF_BSUM + BATCH, 0:BQ] = bsum
    sel32[OFF_EXPAND:OFF_EXPAND + BQ, 0:BATCH] = expand

    # ---- pack the f32 shift / bias rows ----
    shifts = np.zeros((SHIFT_ROWS, SHIFT_W))
    shifts[ROW_E0S, :e0s.shape[1]] = e0s[0]
    shifts[ROW_E1S, :e1s.shape[1]] = e1s[0]
    shifts[ROW_D1S, :d1s.shape[1]] = d1s[0]
    shifts[ROW_D2S, :d2s.shape[1]] = d2s[0]
    shifts[ROW_MLB, :mlb2.shape[1]] = mlb2[0]
    shifts[ROW_BZM:ROW_BZM + BQ, :bzm2.shape[1]] = bzm2

    return (jnp.asarray(cc512, jnp.bfloat16),
            jnp.asarray(cc384, jnp.bfloat16),
            jnp.asarray(cc256, jnp.bfloat16),
            jnp.asarray(fold_d2, jnp.bfloat16),
            jnp.asarray(sel32, jnp.float32),
            jnp.asarray(shifts, jnp.float32))


# ----------------------------------- forward --------------------------------------
@jax.jit
def vae5_forward(consts, x_nchw):
    """Returns (recon NCHW, mu, logvar).  The batch must be a multiple of BATCH (the
    per-chunk batch encoded in the constant operators); chunks run as a 'parallel' grid."""
    n = x_nchw.shape[0]
    assert n % BATCH == 0, "batch must be a multiple of the per-chunk batch in the constants"
    n_chunks = n // BATCH

    # NCHW -> (B*H, W*C) boundary layout change + bf16 cast (single fused XLA op)
    x_m = (jnp.transpose(x_nchw, (0, 2, 3, 1))
           .reshape(n * IMAGE_SIZE, IMAGE_SIZE * CHANNELS)
           .astype(jnp.bfloat16))

    in_specs = [pl.BlockSpec((BATCH * IMAGE_SIZE, IMAGE_SIZE * CHANNELS), lambda i: (i, 0))]
    in_specs += [pl.BlockSpec(c.shape, lambda i: (0, 0)) for c in consts]  # resident constants

    ml3, recon_m = pl.pallas_call(
        _vae5_kernel,
        grid=(n_chunks,),
        in_specs=in_specs,
        out_specs=(
            pl.BlockSpec((1, BATCH, TWO_K), lambda i: (i, 0, 0)),
            pl.BlockSpec((BATCH * IMAGE_SIZE, TAPW), lambda i: (i, 0)),
        ),
        out_shape=(
            jax.ShapeDtypeStruct((n_chunks, BATCH, TWO_K), jnp.float32),
            jax.ShapeDtypeStruct((n * IMAGE_SIZE, TAPW), jnp.float32),
        ),
        compiler_params=pltpu.CompilerParams(dimension_semantics=("parallel",)),
    )(x_m, *consts)

    ml = ml3.reshape(n, TWO_K)
    mu = ml[:, :K_DIM]
    logvar = ml[:, K_DIM:]
    recon = (recon_m[:, :IMAGE_SIZE * CHANNELS]
             .reshape(n, IMAGE_SIZE, IMAGE_SIZE, CHANNELS)
             .transpose(0, 3, 1, 2))
    return recon, mu, logvar


# --------------------------------- parameters -------------------------------------
def init_params(key):
    keys = iter(jax.random.split(key, 64))

    def w(shape, s=0.1):
        return s * jax.random.normal(next(keys), shape, jnp.float32)

    def bn(c):
        return (1.0 + 0.1 * jax.random.normal(next(keys), (c,), jnp.float32),           # gamma
                0.1 * jax.random.normal(next(keys), (c,), jnp.float32),                  # beta
                0.1 * jax.random.normal(next(keys), (c,), jnp.float32),                  # running_mean
                1.0 + 0.1 * jnp.abs(jax.random.normal(next(keys), (c,), jnp.float32)))   # running_var

    return dict(
        # encoder: ConvBlock4(3,8,k3,p1) -> ConvBlock4(8,16,k4,s2,p1) -> Conv2d(16,4,k1)
        enc0_w=w((CONV_DIM, CHANNELS, 3, 3)), enc0_b=w((CONV_DIM,), 0.01), enc0_bn=bn(CONV_DIM),
        enc1_w=w((CURR, CONV_DIM, 4, 4)), enc1_b=w((CURR,), 0.01), enc1_bn=bn(CURR),
        enc2_w=w((Z_DIM, CURR, 1, 1)), enc2_b=w((Z_DIM,), 0.01),
        # latent heads (torch Linear layout: (out, in))
        mu_w=w((K_DIM, HIDDEN)), mu_b=w((K_DIM,), 0.01),
        logvar_w=w((K_DIM, HIDDEN)), logvar_b=w((K_DIM,), 0.01),
        z_w=w((HIDDEN, K_DIM)), z_b=w((HIDDEN,), 0.01),
        # decoder: Deconv(4,16,k1) -> Deconv(16,8,k4,s2,p1) -> Conv2d(8,3,k3,p1)
        dec0_w=w((Z_DIM, CURR, 1, 1)), dec0_b=w((CURR,), 0.01), dec0_bn=bn(CURR),
        dec1_w=w((CURR, CONV_DIM, 4, 4)), dec1_b=w((CONV_DIM,), 0.01), dec1_bn=bn(CONV_DIM),
        dec2_w=w((CHANNELS, CONV_DIM, 3, 3)), dec2_b=w((CHANNELS,), 0.01),
    )


# ----------------------- pure-JAX reference (correctness check) --------------------
def vae5_reference(params, x):
    """Eval-mode reference mirroring the PyTorch module (no Pallas)."""
    P = jax.lax.Precision.HIGHEST

    def conv(h, w, b, stride, pad):
        y = jax.lax.conv_general_dilated(
            h, w, (stride, stride), [(pad, pad), (pad, pad)],
            dimension_numbers=("NCHW", "OIHW", "NCHW"), precision=P)
        return y + b[None, :, None, None]

    def deconv(h, w, b, stride, pad):
        kh = w.shape[2]
        w_c = jnp.transpose(w[:, :, ::-1, ::-1], (1, 0, 2, 3))
        y = jax.lax.conv_general_dilated(
            h, w_c, (1, 1), [(kh - 1 - pad, kh - 1 - pad)] * 2,
            lhs_dilation=(stride, stride),
            dimension_numbers=("NCHW", "OIHW", "NCHW"), precision=P)
        return y + b[None, :, None, None]

    def bn(h, stats):
        gamma, beta, rmean, rvar = stats
        inv = (gamma / jnp.sqrt(rvar + BN_EPS))[None, :, None, None]
        return (h - rmean[None, :, None, None]) * inv + beta[None, :, None, None]

    lrelu = lambda t: jnp.where(t >= 0, t, LEAKY_SLOPE * t)

    h = lrelu(bn(conv(x, params["enc0_w"], params["enc0_b"], 1, 1), params["enc0_bn"]))
    h = lrelu(bn(conv(h, params["enc1_w"], params["enc1_b"], 2, 1), params["enc1_bn"]))
    h = conv(h, params["enc2_w"], params["enc2_b"], 1, 0)
    n = h.shape[0]
    h = h.reshape(n, -1)
    mu = jnp.dot(h, params["mu_w"].T, precision=P) + params["mu_b"]
    logvar = jnp.clip(jnp.dot(h, params["logvar_w"].T, precision=P) + params["logvar_b"],
                      CLAMP_LO, CLAMP_HI)
    z = mu  # eval mode
    zh = jnp.dot(z, params["z_w"].T, precision=P) + params["z_b"]
    y = zh.reshape(n, Z_DIM, CODE_DIM, CODE_DIM)
    y = lrelu(bn(deconv(y, params["dec0_w"], params["dec0_b"], 1, 0), params["dec0_bn"]))
    y = lrelu(bn(deconv(y, params["dec1_w"], params["dec1_b"], 2, 1), params["dec1_bn"]))
    y = conv(y, params["dec2_w"], params["dec2_b"], 1, 1)
    return jax.nn.sigmoid(y), mu, logvar


# ------------------------------------- main ----------------------------------------
if __name__ == "__main__":
    key = jax.random.PRNGKey(0)
    pkey, xkey = jax.random.split(key)
    params = init_params(pkey)
    consts = prepare_constants(params)
    x = jax.random.normal(xkey, (BATCH, CHANNELS, IMAGE_SIZE, IMAGE_SIZE), jnp.float32)

    recon, mu, logvar = vae5_forward(consts, x)
    jax.block_until_ready((recon, mu, logvar))

    # shape / range sanity
    assert recon.shape == (BATCH, CHANNELS, IMAGE_SIZE, IMAGE_SIZE)
    assert mu.shape == (BATCH, K_DIM) and logvar.shape == (BATCH, K_DIM)
    assert bool(jnp.all(jnp.isfinite(recon)))
    assert bool(jnp.all((recon >= 0.0) & (recon <= 1.0)))                  # sigmoid output
    assert bool(jnp.all((logvar >= CLAMP_LO) & (logvar <= CLAMP_HI)))      # clamp

    # numerical check against the pure-JAX eval-mode reference (bf16 MXU inputs, f32 accumulation)
    r_recon, r_mu, r_logvar = vae5_reference(params, x)
    for name, got, want in (("recon", recon, r_recon), ("mu", mu, r_mu),
                            ("logvar", logvar, r_logvar)):
        err = float(jnp.max(jnp.abs(got - want)))
        assert err < 2e-2, f"{name} mismatch vs reference: max|err| = {err}"

    print("KERNEL_OK")
</pallas_src>

<mosaic_0001>
module attributes {stable_mosaic.version = 11 : i64} {
  func.func @_vae5_kernel(%arg0: i32, %arg1: memref<32x48xbf16, #tpu.memory_space<vmem>>, %arg2: memref<256x512xbf16, #tpu.memory_space<vmem>>, %arg3: memref<176x384xbf16, #tpu.memory_space<vmem>>, %arg4: memref<160x256xbf16, #tpu.memory_space<vmem>>, %arg5: memref<256x128xbf16, #tpu.memory_space<vmem>>, %arg6: memref<664x32xf32, #tpu.memory_space<vmem>>, %arg7: memref<56x128xf32, #tpu.memory_space<vmem>>, %arg8: memref<1x2x32xf32, #tpu.memory_space<vmem>>, %arg9: memref<32x128xf32, #tpu.memory_space<vmem>>) attributes {dimension_semantics = [#tpu.dimension_semantics<parallel>], iteration_bounds = array<i64: 1>, scalar_prefetch = 0 : i64, scratch_operands = 0 : i64, tpu.core_type = #tpu.core_type<tc>, window_params = [{transform_indices = @transform_0, window_bounds = array<i64: 32, 48>}, {pipeline_mode = #tpu.pipeline_mode<synchronous>, transform_indices = @transform_1, window_bounds = array<i64: 256, 512>}, {pipeline_mode = #tpu.pipeline_mode<synchronous>, transform_indices = @transform_2, window_bounds = array<i64: 176, 384>}, {pipeline_mode = #tpu.pipeline_mode<synchronous>, transform_indices = @transform_3, window_bounds = array<i64: 160, 256>}, {pipeline_mode = #tpu.pipeline_mode<synchronous>, transform_indices = @transform_4, window_bounds = array<i64: 256, 128>}, {pipeline_mode = #tpu.pipeline_mode<synchronous>, transform_indices = @transform_5, window_bounds = array<i64: 664, 32>}, {pipeline_mode = #tpu.pipeline_mode<synchronous>, transform_indices = @transform_6, window_bounds = array<i64: 56, 128>}, {transform_indices = @transform_7, window_bounds = array<i64: 1, 2, 32>}, {transform_indices = @transform_8, window_bounds = array<i64: 32, 128>}]} {
    %c0 = arith.constant 0 : index
    %c0_0 = arith.constant 0 : index
    %0 = vector.load %arg6[%c0, %c0_0] : memref<664x32xf32, #tpu.memory_space<vmem>>, vector<32x32xf32>
    %c32 = arith.constant 32 : index
    %c0_1 = arith.constant 0 : index
    %1 = vector.load %arg6[%c32, %c0_1] : memref<664x32xf32, #tpu.memory_space<vmem>>, vector<32x32xf32>
    %c64 = arith.constant 64 : index
    %c0_2 = arith.constant 0 : index
    %2 = vector.load %arg6[%c64, %c0_2] : memref<664x32xf32, #tpu.memory_space<vmem>>, vector<32x32xf32>
    %c96 = arith.constant 96 : index
    %c0_3 = arith.constant 0 : index
    %3 = vector.load %arg6[%c96, %c0_3] : memref<664x32xf32, #tpu.memory_space<vmem>>, vector<16x32xf32>
    %c112 = arith.constant 112 : index
    %c0_4 = arith.constant 0 : index
    %4 = vector.load %arg6[%c112, %c0_4] : memref<664x32xf32, #tpu.memory_space<vmem>>, vector<16x32xf32>
    %c128 = arith.constant 128 : index
    %c0_5 = arith.constant 0 : index
    %5 = vector.load %arg6[%c128, %c0_5] : memref<664x32xf32, #tpu.memory_space<vmem>>, vector<16x32xf32>
    %c144 = arith.constant 144 : index
    %c0_6 = arith.constant 0 : index
    %6 = vector.load %arg6[%c144, %c0_6] : memref<664x32xf32, #tpu.memory_space<vmem>>, vector<16x32xf32>
    %c160 = arith.constant 160 : index
    %c0_7 = arith.constant 0 : index
    %7 = vector.load %arg6[%c160, %c0_7] : memref<664x32xf32, #tpu.memory_space<vmem>>, vector<32x16xf32>
    %c192 = arith.constant 192 : index
    %c0_8 = arith.constant 0 : index
    %8 = vector.load %arg6[%c192, %c0_8] : memref<664x32xf32, #tpu.memory_space<vmem>>, vector<32x16xf32>
    %c224 = arith.constant 224 : index
    %c0_9 = arith.constant 0 : index
    %9 = vector.load %arg6[%c224, %c0_9] : memref<664x32xf32, #tpu.memory_space<vmem>>, vector<32x16xf32>
    %c256 = arith.constant 256 : index
    %c0_10 = arith.constant 0 : index
    %10 = vector.load %arg6[%c256, %c0_10] : memref<664x32xf32, #tpu.memory_space<vmem>>, vector<32x16xf32>
    %c288 = arith.constant 288 : index
    %c0_11 = arith.constant 0 : index
    %11 = vector.load %arg6[%c288, %c0_11] : memref<664x32xf32, #tpu.memory_space<vmem>>, vector<32x32xf32>
    %c320 = arith.constant 320 : index
    %c0_12 = arith.constant 0 : index
    %12 = vector.load %arg6[%c320, %c0_12] : memref<664x32xf32, #tpu.memory_space<vmem>>, vector<32x32xf32>
    %c352 = arith.constant 352 : index
    %c0_13 = arith.constant 0 : index
    %13 = vector.load %arg6[%c352, %c0_13] : memref<664x32xf32, #tpu.memory_space<vmem>>, vector<32x32xf32>
    %c384 = arith.constant 384 : index
    %c0_14 = arith.constant 0 : index
    %14 = vector.load %arg6[%c384, %c0_14] : memref<664x32xf32, #tpu.memory_space<vmem>>, vector<256x32xf32>
    %c640 = arith.constant 640 : index
    %c0_15 = arith.constant 0 : index
    %15 = vector.load %arg6[%c640, %c0_15] : memref<664x32xf32, #tpu.memory_space<vmem>>, vector<2x16xf32>
    %c648 = arith.constant 648 : index
    %c0_16 = arith.constant 0 : index
    %16 = vector.load %arg6[%c648, %c0_16] : memref<664x32xf32, #tpu.memory_space<vmem>>, vector<16x2xf32>
    %c0_17 = arith.constant 0 : index
    %c0_18 = arith.constant 0 : index
    %17 = vector.load %arg7[%c0_17, %c0_18] : memref<56x128xf32, #tpu.memory_space<vmem>>, vector<1x128xf32>
    %c8 = arith.constant 8 : index
    %c0_19 = arith.constant 0 : index
    %18 = vector.load %arg7[%c8, %c0_19] : memref<56x128xf32, #tpu.memory_space<vmem>>, vector<1x128xf32>
    %c16 = arith.constant 16 : index
    %c0_20 = arith.constant 0 : index
    %19 = vector.load %arg7[%c16, %c0_20] : memref<56x128xf32, #tpu.memory_space<vmem>>, vector<1x128xf32>
    %c24 = arith.constant 24 : index
    %c0_21 = arith.constant 0 : index
    %20 = vector.load %arg7[%c24, %c0_21] : memref<56x128xf32, #tpu.memory_space<vmem>>, vector<1x128xf32>
    %c32_22 = arith.constant 32 : index
    %c0_23 = arith.constant 0 : index
    %21 = vector.load %arg7[%c32_22, %c0_23] : memref<56x128xf32, #tpu.memory_space<vmem>>, vector<1x32xf32>
    %c40 = arith.constant 40 : index
    %c0_24 = arith.constant 0 : index
    %22 = vector.load %arg7[%c40, %c0_24] : memref<56x128xf32, #tpu.memory_space<vmem>>, vector<16x128xf32>
    %c0_25 = arith.constant 0 : index
    %c0_26 = arith.constant 0 : index
    %23 = vector.load %arg1[%c0_25, %c0_26] : memref<32x48xbf16, #tpu.memory_space<vmem>>, vector<32x48xbf16>
    %c0_27 = arith.constant 0 : index
    %c0_28 = arith.constant 0 : index
    %24 = vector.load %arg3[%c0_27, %c0_28] : memref<176x384xbf16, #tpu.memory_space<vmem>>, vector<48x384xbf16>
    %cst = arith.constant dense<0.000000e+00> : vector<32x384xf32>
    %25 = tpu.matmul %23, %24, %cst {dimension_numbers = #tpu.dot_dimension_numbers<[1], [0], [0], [1], [0, 0, 1, 1], [], []>} : vector<32x48xbf16>, vector<48x384xbf16>, vector<32x384xf32> -> vector<32x384xf32>
    %26 = vector.extract_strided_slice %25 {offsets = [0, 0], sizes = [32, 128], strides = [1, 1]} : vector<32x384xf32> to vector<32x128xf32>
    %cst_29 = arith.constant dense<0.000000e+00> : vector<32x128xf32>
    %27 = tpu.matmul %0, %26, %cst_29 {dimension_numbers = #tpu.dot_dimension_numbers<[1], [0], [0], [1], [0, 0, 1, 1], [], []>} : vector<32x32xf32>, vector<32x128xf32>, vector<32x128xf32> -> vector<32x128xf32>
    %28 = vector.extract_strided_slice %25 {offsets = [0, 128], sizes = [32, 128], strides = [1, 1]} : vector<32x384xf32> to vector<32x128xf32>
    %cst_30 = arith.constant dense<0.000000e+00> : vector<32x128xf32>
    %29 = tpu.matmul %1, %28, %cst_30 {dimension_numbers = #tpu.dot_dimension_numbers<[1], [0], [0], [1], [0, 0, 1, 1], [], []>} : vector<32x32xf32>, vector<32x128xf32>, vector<32x128xf32> -> vector<32x128xf32>
    %30 = arith.addf %27, %29 : vector<32x128xf32>
    %31 = vector.extract_strided_slice %25 {offsets = [0, 256], sizes = [32, 128], strides = [1, 1]} : vector<32x384xf32> to vector<32x128xf32>
    %cst_31 = arith.constant dense<0.000000e+00> : vector<32x128xf32>
    %32 = tpu.matmul %2, %31, %cst_31 {dimension_numbers = #tpu.dot_dimension_numbers<[1], [0], [0], [1], [0, 0, 1, 1], [], []>} : vector<32x32xf32>, vector<32x128xf32>, vector<32x128xf32> -> vector<32x128xf32>
    %33 = arith.addf %30, %32 : vector<32x128xf32>
    %34 = vector.broadcast %17 : vector<1x128xf32> to vector<32x128xf32>
    %35 = arith.addf %33, %34 : vector<32x128xf32>
    %cst_32 = arith.constant 0.000000e+00 : f32
    %36 = vector.broadcast %cst_32 : f32 to vector<32x128xf32>
    %37 = arith.cmpf oge, %35, %36 : vector<32x128xf32>
    %cst_33 = arith.constant 0.00999999977 : f32
    %38 = vector.broadcast %cst_33 : f32 to vector<32x128xf32>
    %39 = arith.mulf %38, %35 : vector<32x128xf32>
    %40 = arith.select %37, %35, %39 : vector<32x128xi1>, vector<32x128xf32>
    %c0_34 = arith.constant 0 : index
    %c0_35 = arith.constant 0 : index
    %41 = vector.load %arg2[%c0_34, %c0_35] : memref<256x512xbf16, #tpu.memory_space<vmem>>, vector<128x512xbf16>
    %42 = arith.truncf %40 : vector<32x128xf32> to vector<32x128xbf16>
    %cst_36 = arith.constant dense<0.000000e+00> : vector<32x512xf32>
    %43 = tpu.matmul %42, %41, %cst_36 {dimension_numbers = #tpu.dot_dimension_numbers<[1], [0], [0], [1], [0, 0, 1, 1], [], []>} : vector<32x128xbf16>, vector<128x512xbf16>, vector<32x512xf32> -> vector<32x512xf32>
    %44 = vector.extract_strided_slice %43 {offsets = [0, 0], sizes = [32, 128], strides = [1, 1]} : vector<32x512xf32> to vector<32x128xf32>
    %cst_37 = arith.constant dense<0.000000e+00> : vector<16x128xf32>
    %45 = tpu.matmul %3, %44, %cst_37 {dimension_numbers = #tpu.dot_dimension_numbers<[1], [0], [0], [1], [0, 0, 1, 1], [], []>} : vector<16x32xf32>, vector<32x128xf32>, vector<16x128xf32> -> vector<16x128xf32>
    %46 = vector.extract_strided_slice %43 {offsets = [0, 128], sizes = [32, 128], strides = [1, 1]} : vector<32x512xf32> to vector<32x128xf32>
    %cst_38 = arith.constant dense<0.000000e+00> : vector<16x128xf32>
    %47 = tpu.matmul %4, %46, %cst_38 {dimension_numbers = #tpu.dot_dimension_numbers<[1], [0], [0], [1], [0, 0, 1, 1], [], []>} : vector<16x32xf32>, vector<32x128xf32>, vector<16x128xf32> -> vector<16x128xf32>
    %48 = arith.addf %45, %47 : vector<16x128xf32>
    %49 = vector.extract_strided_slice %43 {offsets = [0, 256], sizes = [32, 128], strides = [1, 1]} : vector<32x512xf32> to vector<32x128xf32>
    %cst_39 = arith.constant dense<0.000000e+00> : vector<16x128xf32>
    %50 = tpu.matmul %5, %49, %cst_39 {dimension_numbers = #tpu.dot_dimension_numbers<[1], [0], [0], [1], [0, 0, 1, 1], [], []>} : vector<16x32xf32>, vector<32x128xf32>, vector<16x128xf32> -> vector<16x128xf32>
    %51 = arith.addf %48, %50 : vector<16x128xf32>
    %52 = vector.extract_strided_slice %43 {offsets = [0, 384], sizes = [32, 128], strides = [1, 1]} : vector<32x512xf32> to vector<32x128xf32>
    %cst_40 = arith.constant dense<0.000000e+00> : vector<16x128xf32>
    %53 = tpu.matmul %6, %52, %cst_40 {dimension_numbers = #tpu.dot_dimension_numbers<[1], [0], [0], [1], [0, 0, 1, 1], [], []>} : vector<16x32xf32>, vector<32x128xf32>, vector<16x128xf32> -> vector<16x128xf32>
    %54 = arith.addf %51, %53 : vector<16x128xf32>
    %55 = vector.broadcast %18 : vector<1x128xf32> to vector<16x128xf32>
    %56 = arith.addf %54, %55 : vector<16x128xf32>
    %cst_41 = arith.constant 0.000000e+00 : f32
    %57 = vector.broadcast %cst_41 : f32 to vector<16x128xf32>
    %58 = arith.cmpf oge, %56, %57 : vector<16x128xf32>
    %cst_42 = arith.constant 0.00999999977 : f32
    %59 = vector.broadcast %cst_42 : f32 to vector<16x128xf32>
    %60 = arith.mulf %59, %56 : vector<16x128xf32>
    %61 = arith.select %58, %56, %60 : vector<16x128xi1>, vector<16x128xf32>
    %62 = tpu.iota {dimensions = array<i32: 0>} : vector<16x256xi32>
    %63 = tpu.iota {dimensions = array<i32: 1>} : vector<16x256xi32>
    %c7_i32 = arith.constant 7 : i32
    %64 = vector.broadcast %c7_i32 : i32 to vector<16x256xi32>
    %65 = arith.andi %62, %64 : vector<16x256xi32>
    %c5_i32 = arith.constant 5 : i32
    %66 = vector.broadcast %c5_i32 : i32 to vector<16x256xi32>
    %67 = arith.shrsi %63, %66 : vector<16x256xi32>
    %68 = arith.cmpi eq, %65, %67 : vector<16x256xi32>
    %c0_43 = arith.constant 0 : index
    %c0_44 = arith.constant 0 : index
    %69 = vector.load %arg4[%c0_43, %c0_44] : memref<160x256xbf16, #tpu.memory_space<vmem>>, vector<128x256xbf16>
    %70 = arith.truncf %61 : vector<16x128xf32> to vector<16x128xbf16>
    %cst_45 = arith.constant dense<0.000000e+00> : vector<16x256xf32>
    %71 = tpu.matmul %70, %69, %cst_45 {dimension_numbers = #tpu.dot_dimension_numbers<[1], [0], [0], [1], [0, 0, 1, 1], [], []>} : vector<16x128xbf16>, vector<128x256xbf16>, vector<16x256xf32> -> vector<16x256xf32>
    %cst_46 = arith.constant 0.000000e+00 : f32
    %72 = vector.broadcast %cst_46 : f32 to vector<16x256xf32>
    %73 = arith.select %68, %71, %72 : vector<16x256xi1>, vector<16x256xf32>
    %cst_47 = arith.constant dense<0.000000e+00> : vector<2x256xf32>
    %74 = tpu.matmul %15, %73, %cst_47 {dimension_numbers = #tpu.dot_dimension_numbers<[1], [0], [0], [1], [0, 0, 1, 1], [], []>} : vector<2x16xf32>, vector<16x256xf32>, vector<2x256xf32> -> vector<2x256xf32>
    %cst_48 = arith.constant dense<0.000000e+00> : vector<2x32xf32>
    %75 = tpu.matmul %74, %14, %cst_48 {dimension_numbers = #tpu.dot_dimension_numbers<[1], [0], [0], [1], [0, 0, 1, 1], [], []>} : vector<2x256xf32>, vector<256x32xf32>, vector<2x32xf32> -> vector<2x32xf32>
    %76 = vector.broadcast %21 : vector<1x32xf32> to vector<2x32xf32>
    %77 = arith.addf %75, %76 : vector<2x32xf32>
    %78 = tpu.iota {dimensions = array<i32: 1>} : vector<2x32xi32>
    %c16_i32 = arith.constant 16 : i32
    %79 = vector.broadcast %c16_i32 : i32 to vector<2x32xi32>
    %80 = arith.cmpi sge, %78, %79 : vector<2x32xi32>
    %cst_49 = arith.constant -13.8155107 : f32
    %cst_50 = arith.constant 13.8155107 : f32
    %81 = vector.broadcast %cst_49 : f32 to vector<2x32xf32>
    %82 = arith.maximumf %81, %77 : vector<2x32xf32>
    %83 = vector.broadcast %cst_50 : f32 to vector<2x32xf32>
    %84 = arith.minimumf %83, %82 : vector<2x32xf32>
    %85 = arith.select %80, %84, %77 : vector<2x32xi1>, vector<2x32xf32>
    %c0_51 = arith.constant 0 : index
    %c0_52 = arith.constant 0 : index
    %c0_53 = arith.constant 0 : index
    %86 = vector.load %arg8[%c0_51, %c0_52, %c0_53] : memref<1x2x32xf32, #tpu.memory_space<vmem>>, vector<1x2x32xf32>
    %87 = vector.shape_cast %86 : vector<1x2x32xf32> to vector<2x32xf32>
    %88 = vector.shape_cast %85 : vector<2x32xf32> to vector<1x2x32xf32>
    tpu.vector_store %arg8[%c0_51, %c0_52, %c0_53], %88 {strides = array<i32>} : memref<1x2x32xf32, #tpu.memory_space<vmem>>, vector<1x2x32xf32>,
    %c128_54 = arith.constant 128 : index
    %c0_55 = arith.constant 0 : index
    %89 = vector.load %arg4[%c128_54, %c0_55] : memref<160x256xbf16, #tpu.memory_space<vmem>>, vector<32x256xbf16>
    %90 = arith.truncf %77 : vector<2x32xf32> to vector<2x32xbf16>
    %cst_56 = arith.constant dense<0.000000e+00> : vector<2x256xf32>
    %91 = tpu.matmul %90, %89, %cst_56 {dimension_numbers = #tpu.dot_dimension_numbers<[1], [0], [0], [1], [0, 0, 1, 1], [], []>} : vector<2x32xbf16>, vector<32x256xbf16>, vector<2x256xf32> -> vector<2x256xf32>
    %cst_57 = arith.constant dense<0.000000e+00> : vector<16x256xf32>
    %92 = tpu.matmul %16, %91, %cst_57 {dimension_numbers = #tpu.dot_dimension_numbers<[1], [0], [0], [1], [0, 0, 1, 1], [], []>} : vector<16x2xf32>, vector<2x256xf32>, vector<16x256xf32> -> vector<16x256xf32>
    %cst_58 = arith.constant 0.000000e+00 : f32
    %93 = vector.broadcast %cst_58 : f32 to vector<16x256xf32>
    %94 = arith.select %68, %92, %93 : vector<16x256xi1>, vector<16x256xf32>
    %c0_59 = arith.constant 0 : index
    %c0_60 = arith.constant 0 : index
    %95 = vector.load %arg5[%c0_59, %c0_60] : memref<256x128xbf16, #tpu.memory_space<vmem>>, vector<256x128xbf16>
    %96 = arith.truncf %94 : vector<16x256xf32> to vector<16x256xbf16>
    %cst_61 = arith.constant dense<0.000000e+00> : vector<16x128xf32>
    %97 = tpu.matmul %96, %95, %cst_61 {dimension_numbers = #tpu.dot_dimension_numbers<[1], [0], [0], [1], [0, 0, 1, 1], [], []>} : vector<16x256xbf16>, vector<256x128xbf16>, vector<16x128xf32> -> vector<16x128xf32>
    %98 = arith.addf %97, %22 : vector<16x128xf32>
    %cst_62 = arith.constant 0.000000e+00 : f32
    %99 = vector.broadcast %cst_62 : f32 to vector<16x128xf32>
    %100 = arith.cmpf oge, %98, %99 : vector<16x128xf32>
    %cst_63 = arith.constant 0.00999999977 : f32
    %101 = vector.broadcast %cst_63 : f32 to vector<16x128xf32>
    %102 = arith.mulf %101, %98 : vector<16x128xf32>
    %103 = arith.select %100, %98, %102 : vector<16x128xi1>, vector<16x128xf32>
    %c128_64 = arith.constant 128 : index
    %c0_65 = arith.constant 0 : index
    %104 = vector.load %arg2[%c128_64, %c0_65] : memref<256x512xbf16, #tpu.memory_space<vmem>>, vector<128x512xbf16>
    %105 = arith.truncf %103 : vector<16x128xf32> to vector<16x128xbf16>
    %cst_66 = arith.constant dense<0.000000e+00> : vector<16x512xf32>
    %106 = tpu.matmul %105, %104, %cst_66 {dimension_numbers = #tpu.dot_dimension_numbers<[1], [0], [0], [1], [0, 0, 1, 1], [], []>} : vector<16x128xbf16>, vector<128x512xbf16>, vector<16x512xf32> -> vector<16x512xf32>
    %107 = vector.extract_strided_slice %106 {offsets = [0, 0], sizes = [16, 128], strides = [1, 1]} : vector<16x512xf32> to vector<16x128xf32>
    %cst_67 = arith.constant dense<0.000000e+00> : vector<32x128xf32>
    %108 = tpu.matmul %7, %107, %cst_67 {dimension_numbers = #tpu.dot_dimension_numbers<[1], [0], [0], [1], [0, 0, 1, 1], [], []>} : vector<32x16xf32>, vector<16x128xf32>, vector<32x128xf32> -> vector<32x128xf32>
    %109 = vector.extract_strided_slice %106 {offsets = [0, 128], sizes = [16, 128], strides = [1, 1]} : vector<16x512xf32> to vector<16x128xf32>
    %cst_68 = arith.constant dense<0.000000e+00> : vector<32x128xf32>
    %110 = tpu.matmul %8, %109, %cst_68 {dimension_numbers = #tpu.dot_dimension_numbers<[1], [0], [0], [1], [0, 0, 1, 1], [], []>} : vector<32x16xf32>, vector<16x128xf32>, vector<32x128xf32> -> vector<32x128xf32>
    %111 = arith.addf %108, %110 : vector<32x128xf32>
    %112 = vector.extract_strided_slice %106 {offsets = [0, 256], sizes = [16, 128], strides = [1, 1]} : vector<16x512xf32> to vector<16x128xf32>
    %cst_69 = arith.constant dense<0.000000e+00> : vector<32x128xf32>
    %113 = tpu.matmul %9, %112, %cst_69 {dimension_numbers = #tpu.dot_dimension_numbers<[1], [0], [0], [1], [0, 0, 1, 1], [], []>} : vector<32x16xf32>, vector<16x128xf32>, vector<32x128xf32> -> vector<32x128xf32>
    %114 = arith.addf %111, %113 : vector<32x128xf32>
    %115 = vector.extract_strided_slice %106 {offsets = [0, 384], sizes = [16, 128], strides = [1, 1]} : vector<16x512xf32> to vector<16x128xf32>
    %cst_70 = arith.constant dense<0.000000e+00> : vector<32x128xf32>
    %116 = tpu.matmul %10, %115, %cst_70 {dimension_numbers = #tpu.dot_dimension_numbers<[1], [0], [0], [1], [0, 0, 1, 1], [], []>} : vector<32x16xf32>, vector<16x128xf32>, vector<32x128xf32> -> vector<32x128xf32>
    %117 = arith.addf %114, %116 : vector<32x128xf32>
    %118 = vector.broadcast %19 : vector<1x128xf32> to vector<32x128xf32>
    %119 = arith.addf %117, %118 : vector<32x128xf32>
    %cst_71 = arith.constant 0.000000e+00 : f32
    %120 = vector.broadcast %cst_71 : f32 to vector<32x128xf32>
    %121 = arith.cmpf oge, %119, %120 : vector<32x128xf32>
    %cst_72 = arith.constant 0.00999999977 : f32
    %122 = vector.broadcast %cst_72 : f32 to vector<32x128xf32>
    %123 = arith.mulf %122, %119 : vector<32x128xf32>
    %124 = arith.select %121, %119, %123 : vector<32x128xi1>, vector<32x128xf32>
    %c48 = arith.constant 48 : index
    %c0_73 = arith.constant 0 : index
    %125 = vector.load %arg3[%c48, %c0_73] : memref<176x384xbf16, #tpu.memory_space<vmem>>, vector<128x384xbf16>
    %126 = arith.truncf %124 : vector<32x128xf32> to vector<32x128xbf16>
    %cst_74 = arith.constant dense<0.000000e+00> : vector<32x384xf32>
    %127 = tpu.matmul %126, %125, %cst_74 {dimension_numbers = #tpu.dot_dimension_numbers<[1], [0], [0], [1], [0, 0, 1, 1], [], []>} : vector<32x128xbf16>, vector<128x384xbf16>, vector<32x384xf32> -> vector<32x384xf32>
    %128 = vector.extract_strided_slice %127 {offsets = [0, 0], sizes = [32, 128], strides = [1, 1]} : vector<32x384xf32> to vector<32x128xf32>
    %cst_75 = arith.constant dense<0.000000e+00> : vector<32x128xf32>
    %129 = tpu.matmul %11, %128, %cst_75 {dimension_numbers = #tpu.dot_dimension_numbers<[1], [0], [0], [1], [0, 0, 1, 1], [], []>} : vector<32x32xf32>, vector<32x128xf32>, vector<32x128xf32> -> vector<32x128xf32>
    %130 = vector.extract_strided_slice %127 {offsets = [0, 128], sizes = [32, 128], strides = [1, 1]} : vector<32x384xf32> to vector<32x128xf32>
    %cst_76 = arith.constant dense<0.000000e+00> : vector<32x128xf32>
    %131 = tpu.matmul %12, %130, %cst_76 {dimension_numbers = #tpu.dot_dimension_numbers<[1], [0], [0], [1], [0, 0, 1, 1], [], []>} : vector<32x32xf32>, vector<32x128xf32>, vector<32x128xf32> -> vector<32x128xf32>
    %132 = arith.addf %129, %131 : vector<32x128xf32>
    %133 = vector.extract_strided_slice %127 {offsets = [0, 256], sizes = [32, 128], strides = [1, 1]} : vector<32x384xf32> to vector<32x128xf32>
    %cst_77 = arith.constant dense<0.000000e+00> : vector<32x128xf32>
    %134 = tpu.matmul %13, %133, %cst_77 {dimension_numbers = #tpu.dot_dimension_numbers<[1], [0], [0], [1], [0, 0, 1, 1], [], []>} : vector<32x32xf32>, vector<32x128xf32>, vector<32x128xf32> -> vector<32x128xf32>
    %135 = arith.addf %132, %134 : vector<32x128xf32>
    %136 = vector.broadcast %20 : vector<1x128xf32> to vector<32x128xf32>
    %137 = arith.addf %135, %136 : vector<32x128xf32>
    %cst_78 = arith.constant 0.000000e+00 : f32
    %138 = vector.broadcast %cst_78 : f32 to vector<32x128xf32>
    %139 = arith.subf %138, %137 : vector<32x128xf32>
    %140 = math.exp %139 : vector<32x128xf32>
    %cst_79 = arith.constant 1.000000e+00 : f32
    %141 = vector.broadcast %cst_79 : f32 to vector<32x128xf32>
    %142 = arith.addf %141, %140 : vector<32x128xf32>
    %cst_80 = arith.constant 1.000000e+00 : f32
    %143 = vector.broadcast %cst_80 : f32 to vector<32x128xf32>
    %144 = arith.divf %143, %142 : vector<32x128xf32>
    %c0_81 = arith.constant 0 : index
    %c0_82 = arith.constant 0 : index
    %145 = vector.load %arg9[%c0_81, %c0_82] : memref<32x128xf32, #tpu.memory_space<vmem>>, vector<32x128xf32>
    tpu.vector_store %arg9[%c0_81, %c0_82], %144 {strides = array<i32>} : memref<32x128xf32, #tpu.memory_space<vmem>>, vector<32x128xf32>,
    return
  }
  func.func @transform_0(%arg0: i32) -> (i32, i32) {
    %c0_i32 = arith.constant 0 : i32
    %c0_i32_0 = arith.constant 0 : i32
    return %arg0, %c0_i32 : i32, i32
  }
  func.func @transform_1(%arg0: i32) -> (i32, i32) {
    %c0_i32 = arith.constant 0 : i32
    %c0_i32_0 = arith.constant 0 : i32
    %c0_i32_1 = arith.constant 0 : i32
    return %c0_i32, %c0_i32_0 : i32, i32
  }
  func.func @transform_2(%arg0: i32) -> (i32, i32) {
    %c0_i32 = arith.constant 0 : i32
    %c0_i32_0 = arith.constant 0 : i32
    %c0_i32_1 = arith.constant 0 : i32
    return %c0_i32, %c0_i32_0 : i32, i32
  }
  func.func @transform_3(%arg0: i32) -> (i32, i32) {
    %c0_i32 = arith.constant 0 : i32
    %c0_i32_0 = arith.constant 0 : i32
    %c0_i32_1 = arith.constant 0 : i32
    return %c0_i32, %c0_i32_0 : i32, i32
  }
  func.func @transform_4(%arg0: i32) -> (i32, i32) {
    %c0_i32 = arith.constant 0 : i32
    %c0_i32_0 = arith.constant 0 : i32
    %c0_i32_1 = arith.constant 0 : i32
    return %c0_i32, %c0_i32_0 : i32, i32
  }
  func.func @transform_5(%arg0: i32) -> (i32, i32) {
    %c0_i32 = arith.constant 0 : i32
    %c0_i32_0 = arith.constant 0 : i32
    %c0_i32_1 = arith.constant 0 : i32
    return %c0_i32, %c0_i32_0 : i32, i32
  }
  func.func @transform_6(%arg0: i32) -> (i32, i32) {
    %c0_i32 = arith.constant 0 : i32
    %c0_i32_0 = arith.constant 0 : i32
    %c0_i32_1 = arith.constant 0 : i32
    return %c0_i32, %c0_i32_0 : i32, i32
  }
  func.func @transform_7(%arg0: i32) -> (i32, i32, i32) {
    %c0_i32 = arith.constant 0 : i32
    %c0_i32_0 = arith.constant 0 : i32
    %c0_i32_1 = arith.constant 0 : i32
    return %arg0, %c0_i32, %c0_i32_0 : i32, i32, i32
  }
  func.func @transform_8(%arg0: i32) -> (i32, i32) {
    %c0_i32 = arith.constant 0 : i32
    %c0_i32_0 = arith.constant 0 : i32
    return %arg0, %c0_i32 : i32, i32
  }
}

</mosaic_0001>

<llo_original>
// kernel: vae5_forward.1
$region0: #{vae5_forward.1}
  #allocation0 [shape = 'u32[]', space=smem, size = 0x4, offset = 0x4, fixed_abs, tag = 'smem constant byte address 0x4 - core index']
  #allocation1 [shape = 'u32[144,128]{1,0:T(1,128)}', space=vmem, size = 0x12000, scoped, tag = 'internal scratch']
  %s0 = inlined_call_operand.vmem [shape: bf16[32,48], index: 0, kind: input, shape index: {}]
  %s1 = inlined_call_operand.vmem [shape: bf16[256,512], index: 1, kind: input, shape index: {}]
  %s2 = inlined_call_operand.vmem [shape: bf16[176,384], index: 2, kind: input, shape index: {}]
  %s3 = inlined_call_operand.vmem [shape: bf16[160,256], index: 3, kind: input, shape index: {}]
  %s4 = inlined_call_operand.hbm [shape: bf16[256,128], index: 4, kind: input, shape index: {}]
  %s5 = inlined_call_operand.vmem [shape: f32[664,32], index: 5, kind: input, shape index: {}]
  %s6 = inlined_call_operand.vmem [shape: f32[56,128], index: 6, kind: input, shape index: {}]
  %s7 = inlined_call_operand.vmem [shape: f32[1,2,32], index: 7, kind: output, shape index: {0}]
  %s8 = inlined_call_operand.vmem [shape: f32[32,128], index: 8, kind: output, shape index: {1}]
  %9 = xla_tuple %s7, %s8
  %s10 = sld [smem:[#allocation0]]
  $region50: #{vae5_forward.1} parent=0
    _
  %s12 = ssub.s32 1, %s10
  %s13 = scalar_select 0, %s12, %s10
  $region1: #{vae5_forward.1} parent=0
    #allocation2 [shape = 'u8[65536]{0}', space=vmem, size = 0x10000, scoped, tag = 'input window, operand 4, single buffered']
    #allocation3 [shape = 's32[1]{0}', space=sflag, size = 0x4, scoped, tag = 'scoped memory for vae5_forward.1']
    %14 = vsyncpa [#allocation3], 0
    // Predicated region
    $region2: #{vae5_forward.1} parent=1 // pred_check
      _
    $region3: #{vae5_forward.1} parent=1 // pred_check_branch
      %16 = sbr.rel (0) target = $region5
    $region4: #{vae5_forward.1} parent=1 // pred_region
      _
    $region5: #{vae5_forward.1} parent=1 // pred_fallthru
      _
    // Predicated region
    $region6: #{vae5_forward.1} parent=1 // pred_check
      _
    $region7: #{vae5_forward.1} parent=1 // pred_check_branch
      %18 = sbr.rel (0) target = $region9
    $region8: #{vae5_forward.1} parent=1 // pred_region
      _
    $region9: #{vae5_forward.1} parent=1 // pred_fallthru
      _
    // Predicated region
    $region10: #{vae5_forward.1} parent=1 // pred_check
      _
    $region11: #{vae5_forward.1} parent=1 // pred_check_branch
      %20 = sbr.rel (0) target = $region13
    $region12: #{vae5_forward.1} parent=1 // pred_region
      _
    $region13: #{vae5_forward.1} parent=1 // pred_fallthru
      _
    // Predicated region
    $region14: #{vae5_forward.1} parent=1 // pred_check
      _
    $region15: #{vae5_forward.1} parent=1 // pred_check_branch
      %22 = sbr.rel (0) target = $region17
    $region16: #{vae5_forward.1} parent=1 // pred_region
      _
    $region17: #{vae5_forward.1} parent=1 // pred_fallthru
      _
    // Predicated region
    $region18: #{vae5_forward.1} parent=1 // pred_check
      _
    $region19: #{vae5_forward.1} parent=1 // pred_check_branch
      %24 = sbr.rel (0) target = $region21
    $region20: #{vae5_forward.1} parent=1 // pred_region
      %s26 = ssub.s32 2048, 2048
      %27 = vsyncadd [#allocation3], %s26
      %s28 = sshll.u32 [#allocation2], 4
      %s29 = int_to_ptr.vmem [resolvable:$true] %s28
      %34 = dma.hbm_to_vmem [thread:$0]  %s4, 2048, %s29, [#allocation3], 64, 64, 4
    $region21: #{vae5_forward.1} parent=1 // pred_fallthru
      _
    // Predicated region
    $region22: #{vae5_forward.1} parent=1 // pred_check
      _
    $region23: #{vae5_forward.1} parent=1 // pred_check_branch
      %36 = sbr.rel (0) target = $region25
    $region24: #{vae5_forward.1} parent=1 // pred_region
      _
    $region25: #{vae5_forward.1} parent=1 // pred_fallthru
      _
    // Predicated region
    $region26: #{vae5_forward.1} parent=1 // pred_check
      _
    $region27: #{vae5_forward.1} parent=1 // pred_check_branch
      %38 = sbr.rel (0) target = $region29
    $region28: #{vae5_forward.1} parent=1 // pred_region
      _
    $region29: #{vae5_forward.1} parent=1 // pred_fallthru
      _
    // Predicated region
    $region30: #{vae5_forward.1} parent=1 // pred_check
      _
    $region31: #{vae5_forward.1} parent=1 // pred_check_branch
      %40 = sbr.rel (0) target = $region33
    $region32: #{vae5_forward.1} parent=1 // pred_region
      %41 = dma.done [#allocation3], 2048
    $region33: #{vae5_forward.1} parent=1 // pred_fallthru
      _
    %v43 = vld [vmem:[%s5] sm:$0xff]
    %v44 = vld [vmem:[%s5 + $0x8] sm:$0xff]
    %v45 = vld [vmem:[%s5 + $0x10] sm:$0xff]
    %v46 = vld [vmem:[%s5 + $0x18] sm:$0xff]
    %v47 = vld [vmem:[%s5 + $0x20] sm:$0xff]
    %v48 = vld [vmem:[%s5 + $0x28] sm:$0xff]
    %v49 = vld [vmem:[%s5 + $0x30] sm:$0xff]
    %v50 = vld [vmem:[%s5 + $0x38] sm:$0xff]
    %v51 = vld [vmem:[%s5 + $0x40] sm:$0xff]
    %v52 = vld [vmem:[%s5 + $0x48] sm:$0xff]
    %v53 = vld [vmem:[%s5 + $0x50] sm:$0xff]
    %v54 = vld [vmem:[%s5 + $0x58] sm:$0xff]
    %v55 = vld [vmem:[%s5 + $0x60] sm:$0xff]
    %v56 = vld [vmem:[%s5 + $0x68] sm:$0xff]
    %v57 = vld [vmem:[%s5 + $0x70] sm:$0xff]
    %v58 = vld [vmem:[%s5 + $0x78] sm:$0xff]
    %v59 = vld [vmem:[%s5 + $0x80] sm:$0xff]
    %v60 = vld [vmem:[%s5 + $0x88] sm:$0xff]
    %v61 = vld [vmem:[%s5 + $0x90] sm:$0xff]
    %v62 = vld [vmem:[%s5 + $0x98] sm:$0xff]
    %v63 = vld [vmem:[%s5 + $0xa0] sm:$0xff]
    %v64 = vld [vmem:[%s5 + $0xa8] sm:$0xff]
    %v65 = vld [vmem:[%s5 + $0xb0] sm:$0xff]
    %v66 = vld [vmem:[%s5 + $0xb8] sm:$0xff]
    %v67 = vld [vmem:[%s5 + $0xc0] sm:$0xff]
    %v68 = vld [vmem:[%s5 + $0xc8] sm:$0xff]
    %v69 = vld [vmem:[%s5 + $0xd0] sm:$0xff]
    %v70 = vld [vmem:[%s5 + $0xd8] sm:$0xff]
    %v71 = vld [vmem:[%s5 + $0xe0] sm:$0xff]
    %v72 = vld [vmem:[%s5 + $0xe8] sm:$0xff]
    %v73 = vld [vmem:[%s5 + $0xf0] sm:$0xff]
    %v74 = vld [vmem:[%s5 + $0xf8] sm:$0xff]
    %v75 = vld [vmem:[%s5 + $0x100] sm:$0xff]
    %v76 = vld [vmem:[%s5 + $0x108] sm:$0xff]
    %v77 = vld [vmem:[%s5 + $0x110] sm:$0xff]
    %v78 = vld [vmem:[%s5 + $0x118] sm:$0xff]
    %v79 = vld [vmem:[%s5 + $0x120] sm:$0xff]
    %v80 = vld [vmem:[%s5 + $0x128] sm:$0xff]
    %v81 = vld [vmem:[%s5 + $0x130] sm:$0xff]
    %v82 = vld [vmem:[%s5 + $0x138] sm:$0xff]
    %v83 = vld [vmem:[%s5 + $0x140] sm:$0xff]
    %v84 = vld [vmem:[%s5 + $0x148] sm:$0xff]
    %v85 = vld [vmem:[%s5 + $0x150] sm:$0xff]
    %v86 = vld [vmem:[%s5 + $0x158] sm:$0xff]
    %v87 = vld [vmem:[%s5 + $0x160] sm:$0xff]
    %v88 = vld [vmem:[%s5 + $0x168] sm:$0xff]
    %v89 = vld [vmem:[%s5 + $0x170] sm:$0xff]
    %v90 = vld [vmem:[%s5 + $0x178] sm:$0xff]
    %v91 = vld [vmem:[%s5 + $0x180] sm:$0xff]
    %v92 = vld [vmem:[%s5 + $0x188] sm:$0xff]
    %v93 = vld [vmem:[%s5 + $0x190] sm:$0xff]
    %v94 = vld [vmem:[%s5 + $0x198] sm:$0xff]
    %v95 = vld [vmem:[%s5 + $0x1a0] sm:$0xff]
    %v96 = vld [vmem:[%s5 + $0x1a8] sm:$0xff]
    %v97 = vld [vmem:[%s5 + $0x1b0] sm:$0xff]
    %v98 = vld [vmem:[%s5 + $0x1b8] sm:$0xff]
    %v99 = vld [vmem:[%s5 + $0x1c0] sm:$0xff]
    %v100 = vld [vmem:[%s5 + $0x1c8] sm:$0xff]
    %v101 = vld [vmem:[%s5 + $0x1d0] sm:$0xff]
    %v102 = vld [vmem:[%s5 + $0x1d8] sm:$0xff]
    %v103 = vld [vmem:[%s5 + $0x1e0] sm:$0xff]
    %v104 = vld [vmem:[%s5 + $0x1e8] sm:$0xff]
    %v105 = vld [vmem:[%s5 + $0x1f0] sm:$0xff]
    %v106 = vld [vmem:[%s5 + $0x1f8] sm:$0xff]
    %v107 = vld [vmem:[%s5 + $0x200] sm:$0xff]
    %v108 = vld [vmem:[%s5 + $0x208] sm:$0xff]
    %v109 = vld [vmem:[%s5 + $0x210] sm:$0xff]
    %v110 = vld [vmem:[%s5 + $0x218] sm:$0xff]
    %v111 = vld [vmem:[%s5 + $0x220] sm:$0xff]
    %v112 = vld [vmem:[%s5 + $0x228] sm:$0xff]
    %v113 = vld [vmem:[%s5 + $0x230] sm:$0xff]
    %v114 = vld [vmem:[%s5 + $0x238] sm:$0xff]
    %v115 = vld [vmem:[%s5 + $0x240] sm:$0xff]
    %v116 = vld [vmem:[%s5 + $0x248] sm:$0xff]
    %v117 = vld [vmem:[%s5 + $0x250] sm:$0xff]
    %v118 = vld [vmem:[%s5 + $0x258] sm:$0xff]
    %v119 = vld [vmem:[%s5 + $0x260] sm:$0xff]
    %v120 = vld [vmem:[%s5 + $0x268] sm:$0xff]
    %v121 = vld [vmem:[%s5 + $0x270] sm:$0xff]
    %v122 = vld [vmem:[%s5 + $0x278] sm:$0xff]
    %v123 = vld [vmem:[%s5 + $0x280] sm:$0x3]
    %v124 = vld [vmem:[%s5 + $0x288] sm:$0xff]
    %v125 = vld [vmem:[%s5 + $0x290] sm:$0xff]
    %v126 = vld [vmem:[%s6] sm:$0x1]
    %v127 = vld [vmem:[%s6 + $0x8] sm:$0x1]
    %v128 = vld [vmem:[%s6 + $0x10] sm:$0x1]
    %v129 = vld [vmem:[%s6 + $0x18] sm:$0x1]
    %v130 = vld [vmem:[%s6 + $0x20] sm:$0x1]
    %v131 = vld [vmem:[%s6 + $0x28] sm:$0xff]
    %v132 = vld [vmem:[%s6 + $0x30] sm:$0xff]
    %v133 = vld [vmem:[%s0] sm:$0xf]
    %v134 = vld [vmem:[%s0 + $0x4] sm:$0xf]
    %v135 = vld [vmem:[%s0 + $0x8] sm:$0xf]
    %v136 = vld [vmem:[%s0 + $0xc] sm:$0xf]
    %v137 = vld [vmem:[%s2] sm:$0xff]
    %v138 = vld [vmem:[%s2 + $0x8] sm:$0xf]
    %v139 = vld [vmem:[%s2 + $0xc] sm:$0xff]
    %v140 = vld [vmem:[%s2 + $0x14] sm:$0xf]
    %v141 = vld [vmem:[%s2 + $0x18] sm:$0xff]
    %v142 = vld [vmem:[%s2 + $0x20] sm:$0xf]
    %v143 = vld [vmem:[%s2 + $0x24] sm:$0xff]
    %v144 = vld [vmem:[%s2 + $0x2c] sm:$0xf]
    %v145 = vld [vmem:[%s2 + $0x30] sm:$0xff]
    %v146 = vld [vmem:[%s2 + $0x38] sm:$0xf]
    %v147 = vld [vmem:[%s2 + $0x3c] sm:$0xff]
    %v148 = vld [vmem:[%s2 + $0x44] sm:$0xf]
    %v153 = vunpack.c.l.b16 %v133
    %v154 = vunpack.c.l.b16 %v134
    %v155 = vunpack.c.l.b16 %v135
    %v156 = vunpack.c.l.b16 %v136
    %v157 = vpack.c.b16 %v154, %v153
    %v158 = vpack.c.b16 %v156, %v155
    %v171 = vunpack.c.l.b16 %v137
    %v172 = vunpack.c.h.b16 %v137
    %v173 = vunpack.c.l.b16 %v138
    %v174 = vunpack.c.l.b16 %v139
    %v175 = vunpack.c.h.b16 %v139
    %v176 = vunpack.c.l.b16 %v140
    %v177 = vunpack.c.l.b16 %v141
    %v178 = vunpack.c.h.b16 %v141
    %v179 = vunpack.c.l.b16 %v142
    %v180 = vunpack.c.l.b16 %v143
    %v181 = vunpack.c.h.b16 %v143
    %v182 = vunpack.c.l.b16 %v144
    %v183 = vunpack.c.l.b16 %v145
    %v184 = vunpack.c.h.b16 %v145
    %v185 = vunpack.c.l.b16 %v146
    %v186 = vunpack.c.l.b16 %v147
    %v187 = vunpack.c.h.b16 %v147
    %v188 = vunpack.c.l.b16 %v148
    %v189 = vpack.c.b16 %v174, %v171
    %v190 = vpack.c.b16 %v175, %v172
    %v191 = vpack.c.b16 %v176, %v173
    %v192 = vpack.c.b16 %v180, %v177
    %v193 = vpack.c.b16 %v181, %v178
    %v194 = vpack.c.b16 %v182, %v179
    %v195 = vpack.c.b16 %v186, %v183
    %v196 = vpack.c.b16 %v187, %v184
    %v197 = vpack.c.b16 %v188, %v185
    %vm207 = vcmask 392192
    %v209 = vsel %vm207, %v157, 0
    %v212 = vsel %vm207, %v158, 0
    %214 = vmatprep.subr.bf16.mxu0 %v190
    %215 = vmatpush1.bf16.msra.mxu0 %v189
    %216 = vmatprep.subr.bf16.mxu0 %v193
    %217 = vmatpush1.bf16.msra.mxu0 %v192
    %218 = vmatprep.subr.bf16.mxu0 %v196
    %219 = vmatpush1.bf16.msra.mxu0 %v195
    %220 = vmatprep.subr.bf16.mxu0 0
    %221 = vmatpush1.bf16.msra.mxu0 0
    %222 = vmatprep.subr.bf16.mxu0 0
    %223 = vmatpush1.bf16.msra.mxu0 0
    %224 = vmatprep.subr.bf16.mxu0 0
    %225 = vmatpush1.bf16.msra.mxu0 0
    %226 = vmatprep.subr.bf16.mxu0 0
    %227 = vmatpush1.bf16.msra.mxu0 0
    %228 = vmatprep.subr.bf16.mxu0 0
    %229 = vmatpush1.bf16.msra.mxu0 0
    %230 = vmatprep.subr.bf16.mxu0 0
    %231 = vmatpush1.bf16.msra.mxu0 0
    %232 = vmatprep.subr.bf16.mxu0 0
    %233 = vmatpush1.bf16.msra.mxu0 0
    %234 = vmatprep.subr.bf16.mxu0 0
    %235 = vmatpush1.bf16.msra.mxu0 0
    %236 = vmatprep.subr.bf16.mxu0 0
    %237 = vmatpush1.bf16.msra.mxu0 0
    %238 = vmatprep.subr.bf16.mxu0 0
    %239 = vmatpush1.bf16.msra.mxu0 0
    %240 = vmatprep.subr.bf16.mxu0 0
    %241 = vmatpush1.bf16.msra.mxu0 0
    %242 = vmatprep.subr.bf16.mxu0 0
    %243 = vmatpush1.bf16.msra.mxu0 0
    %244 = vmatprep.subr.bf16.mxu0 0
    %245 = vmatpush1.bf16.msra.mxu0 0
    %246 = vmatprep.mubr.bf16.mxu0 0
    %247 = vmatmul.mubr.bf16.gmra.mrb[0].mxu0 %v209
    %v248 = vpop.f32.mrb[0].mxu0
    %v249 = vadd.f32 0.0, %v248
    %v250 = vpop.f32.mrb[0].mxu0
    %v251 = vadd.f32 0.0, %v250
    %v252 = vpop.f32.mrb[0].mxu0
    %v253 = vadd.f32 0.0, %v252
    %v254 = vpop.f32.mrb[0].mxu0
    %v255 = vadd.f32 0.0, %v254
    %256 = vmatprep.mubr.bf16.mxu0 0
    %257 = vmatmul.mubr.bf16.gmra.mrb[0].mxu0 %v212
    %v258 = vpop.f32.mrb[0].mxu0
    %v259 = vadd.f32 0.0, %v258
    %v260 = vpop.f32.mrb[0].mxu0
    %v261 = vadd.f32 0.0, %v260
    %v262 = vpop.f32.mrb[0].mxu0
    %v263 = vadd.f32 0.0, %v262
    %v264 = vpop.f32.mrb[0].mxu0
    %v265 = vadd.f32 0.0, %v264
    %266 = vdwg.mxu0
    %267 = vmatprep.subr.bf16.mxu0 0
    %268 = vmatpush1.bf16.msra.mxu0 %v191
    %269 = vmatprep.subr.bf16.mxu0 0
    %270 = vmatpush1.bf16.msra.mxu0 %v194
    %271 = vmatprep.subr.bf16.mxu0 0
    %272 = vmatpush1.bf16.msra.mxu0 %v197
    %273 = vmatprep.subr.bf16.mxu0 0
    %274 = vmatpush1.bf16.msra.mxu0 0
    %275 = vmatprep.subr.bf16.mxu0 0
    %276 = vmatpush1.bf16.msra.mxu0 0
    %277 = vmatprep.subr.bf16.mxu0 0
    %278 = vmatpush1.bf16.msra.mxu0 0
    %279 = vmatprep.subr.bf16.mxu0 0
    %280 = vmatpush1.bf16.msra.mxu0 0
    %281 = vmatprep.subr.bf16.mxu0 0
    %282 = vmatpush1.bf16.msra.mxu0 0
    %283 = vmatprep.subr.bf16.mxu0 0
    %284 = vmatpush1.bf16.msra.mxu0 0
    %285 = vmatprep.subr.bf16.mxu0 0
    %286 = vmatpush1.bf16.msra.mxu0 0
    %287 = vmatprep.subr.bf16.mxu0 0
    %288 = vmatpush1.bf16.msra.mxu0 0
    %289 = vmatprep.subr.bf16.mxu0 0
    %290 = vmatpush1.bf16.msra.mxu0 0
    %291 = vmatprep.subr.bf16.mxu0 0
    %292 = vmatpush1.bf16.msra.mxu0 0
    %293 = vmatprep.subr.bf16.mxu0 0
    %294 = vmatpush1.bf16.msra.mxu0 0
    %295 = vmatprep.subr.bf16.mxu0 0
    %296 = vmatpush1.bf16.msra.mxu0 0
    %297 = vmatprep.subr.bf16.mxu0 0
    %298 = vmatpush1.bf16.msra.mxu0 0
    %299 = vmatprep.mubr.bf16.mxu0 0
    %300 = vmatmul.mubr.bf16.gmra.mrb[0].mxu0 %v209
    %v301 = vpop.f32.mrb[0].mxu0
    %v302 = vadd.f32 0.0, %v301
    %v303 = vpop.f32.mrb[0].mxu0
    %v304 = vpop.f32.mrb[0].mxu0
    %v305 = vadd.f32 0.0, %v304
    %v306 = vpop.f32.mrb[0].mxu0
    %307 = vmatprep.mubr.bf16.mxu0 0
    %308 = vmatmul.mubr.bf16.gmra.mrb[0].mxu0 %v212
    %v309 = vpop.f32.mrb[0].mxu0
    %v310 = vadd.f32 0.0, %v309
    %v311 = vpop.f32.mrb[0].mxu0
    %v312 = vpop.f32.mrb[0].mxu0
    %v313 = vadd.f32 0.0, %v312
    %v314 = vpop.f32.mrb[0].mxu0
    %315 = vdwg.mxu0
    %vm316 = vcmask 261120
    %v318 = vsel %vm316, %v47, 0
    %v321 = vsel %vm316, %v48, 0
    %v324 = vsel %vm316, %v49, 0
    %v327 = vsel %vm316, %v50, 0
    %329 = vmatprep.subr.mxu0 0.0
    %330 = vmatpush1.msra.mxu0 %v251
    %331 = vmatprep.subr.mxu0 0.0
    %332 = vmatpush1.msra.mxu0 %v255
    %333 = vmatprep.subr.mxu0 0.0
    %334 = vmatpush1.msra.mxu0 %v261
    %335 = vmatprep.subr.mxu0 0.0
    %336 = vmatpush1.msra.mxu0 %v265
    %337 = vmatprep.subr.mxu0 0.0
    %338 = vmatpush1.msra.mxu0 0.0
    %339 = vmatprep.subr.mxu0 0.0
    %340 = vmatpush1.msra.mxu0 0.0
    %341 = vmatprep.subr.mxu0 0.0
    %342 = vmatpush1.msra.mxu0 0.0
    %343 = vmatprep.subr.mxu0 0.0
    %344 = vmatpush1.msra.mxu0 0.0
    %345 = vmatprep.subr.mxu0 0.0
    %346 = vmatpush1.msra.mxu0 0.0
    %347 = vmatprep.subr.mxu0 0.0
    %348 = vmatpush1.msra.mxu0 0.0
    %349 = vmatprep.subr.mxu0 0.0
    %350 = vmatpush1.msra.mxu0 0.0
    %351 = vmatprep.subr.mxu0 0.0
    %352 = vmatpush1.msra.mxu0 0.0
    %353 = vmatprep.subr.mxu0 0.0
    %354 = vmatpush1.msra.mxu0 0.0
    %355 = vmatprep.subr.mxu0 0.0
    %356 = vmatpush1.msra.mxu0 0.0
    %357 = vmatprep.subr.mxu0 0.0
    %358 = vmatpush1.msra.mxu0 0.0
    %359 = vmatprep.subr.mxu0 0.0
    %360 = vmatpush1.msra.mxu0 0.0
    %361 = vmatprep.subr.mxu0 0.0
    %362 = vmatpush1.msra.mxu0 0.0
    %363 = vmatprep.subr.mxu0 0.0
    %364 = vmatpush1.msra.mxu0 0.0
    %365 = vmatprep.subr.mxu0 0.0
    %366 = vmatpush1.msra.mxu0 0.0
    %367 = vmatprep.subr.mxu0 0.0
    %368 = vmatpush1.msra.mxu0 0.0
    %369 = vmatprep.subr.mxu0 0.0
    %370 = vmatpush1.msra.mxu0 0.0
    %371 = vmatprep.subr.mxu0 0.0
    %372 = vmatpush1.msra.mxu0 0.0
    %373 = vmatprep.subr.mxu0 0.0
    %374 = vmatpush1.msra.mxu0 0.0
    %375 = vmatprep.subr.mxu0 0.0
    %376 = vmatpush1.msra.mxu0 0.0
    %377 = vmatprep.subr.mxu0 0.0
    %378 = vmatpush1.msra.mxu0 0.0
    %379 = vmatprep.subr.mxu0 0.0
    %380 = vmatpush1.msra.mxu0 0.0
    %381 = vmatprep.subr.mxu0 0.0
    %382 = vmatpush1.msra.mxu0 0.0
    %383 = vmatprep.subr.mxu0 0.0
    %384 = vmatpush1.msra.mxu0 0.0
    %385 = vmatprep.subr.mxu0 0.0
    %386 = vmatpush1.msra.mxu0 0.0
    %387 = vmatprep.subr.mxu0 0.0
    %388 = vmatpush1.msra.mxu0 0.0
    %389 = vmatprep.subr.mxu0 0.0
    %390 = vmatpush1.msra.mxu0 0.0
    %391 = vmatprep.subr.mxu0 0.0
    %392 = vmatpush1.msra.mxu0 0.0
    %393 = vmatprep.mubr.f32.mxu0 0.0
    %394 = vmatmul.mubr.f32.gmra.mrb[0].mxu0 %v318
    %v395 = vpop.f32.mrb[0].mxu0
    %v396 = vadd.f32 0.0, %v395
    %v397 = vpop.f32.mrb[0].mxu0
    %398 = vmatprep.mubr.f32.mxu0 0.0
    %399 = vmatmul.mubr.f32.gmra.mrb[0].mxu0 %v321
    %v400 = vpop.f32.mrb[0].mxu0
    %v401 = vadd.f32 0.0, %v400
    %v402 = vpop.f32.mrb[0].mxu0
    %403 = vmatprep.mubr.f32.mxu0 0.0
    %404 = vmatmul.mubr.f32.gmra.mrb[0].mxu0 %v324
    %v405 = vpop.f32.mrb[0].mxu0
    %v406 = vadd.f32 0.0, %v405
    %v407 = vpop.f32.mrb[0].mxu0
    %408 = vmatprep.mubr.f32.mxu0 0.0
    %409 = vmatmul.mubr.f32.gmra.mrb[0].mxu0 %v327
    %v410 = vpop.f32.mrb[0].mxu0
    %v411 = vadd.f32 0.0, %v410
    %v412 = vpop.f32.mrb[0].mxu0
    %413 = vdwg.mxu0
    %v415 = vsel %vm316, %v43, 0
    %v418 = vsel %vm316, %v44, 0
    %v421 = vsel %vm316, %v45, 0
    %v424 = vsel %vm316, %v46, 0
    %426 = vmatprep.subr.mxu0 0.0
    %427 = vmatpush1.msra.mxu0 %v249
    %428 = vmatprep.subr.mxu0 0.0
    %429 = vmatpush1.msra.mxu0 %v253
    %430 = vmatprep.subr.mxu0 0.0
    %431 = vmatpush1.msra.mxu0 %v259
    %432 = vmatprep.subr.mxu0 0.0
    %433 = vmatpush1.msra.mxu0 %v263
    %434 = vmatprep.subr.mxu0 0.0
    %435 = vmatpush1.msra.mxu0 0.0
    %436 = vmatprep.subr.mxu0 0.0
    %437 = vmatpush1.msra.mxu0 0.0
    %438 = vmatprep.subr.mxu0 0.0
    %439 = vmatpush1.msra.mxu0 0.0
    %440 = vmatprep.subr.mxu0 0.0
    %441 = vmatpush1.msra.mxu0 0.0
    %442 = vmatprep.subr.mxu0 0.0
    %443 = vmatpush1.msra.mxu0 0.0
    %444 = vmatprep.subr.mxu0 0.0
    %445 = vmatpush1.msra.mxu0 0.0
    %446 = vmatprep.subr.mxu0 0.0
    %447 = vmatpush1.msra.mxu0 0.0
    %448 = vmatprep.subr.mxu0 0.0
    %449 = vmatpush1.msra.mxu0 0.0
    %450 = vmatprep.subr.mxu0 0.0
    %451 = vmatpush1.msra.mxu0 0.0
    %452 = vmatprep.subr.mxu0 0.0
    %453 = vmatpush1.msra.mxu0 0.0
    %454 = vmatprep.subr.mxu0 0.0
    %455 = vmatpush1.msra.mxu0 0.0
    %456 = vmatprep.subr.mxu0 0.0
    %457 = vmatpush1.msra.mxu0 0.0
    %458 = vmatprep.subr.mxu0 0.0
    %459 = vmatpush1.msra.mxu0 0.0
    %460 = vmatprep.subr.mxu0 0.0
    %461 = vmatpush1.msra.mxu0 0.0
    %462 = vmatprep.subr.mxu0 0.0
    %463 = vmatpush1.msra.mxu0 0.0
    %464 = vmatprep.subr.mxu0 0.0
    %465 = vmatpush1.msra.mxu0 0.0
    %466 = vmatprep.subr.mxu0 0.0
    %467 = vmatpush1.msra.mxu0 0.0
    %468 = vmatprep.subr.mxu0 0.0
    %469 = vmatpush1.msra.mxu0 0.0
    %470 = vmatprep.subr.mxu0 0.0
    %471 = vmatpush1.msra.mxu0 0.0
    %472 = vmatprep.subr.mxu0 0.0
    %473 = vmatpush1.msra.mxu0 0.0
    %474 = vmatprep.subr.mxu0 0.0
    %475 = vmatpush1.msra.mxu0 0.0
    %476 = vmatprep.subr.mxu0 0.0
    %477 = vmatpush1.msra.mxu0 0.0
    %478 = vmatprep.subr.mxu0 0.0
    %479 = vmatpush1.msra.mxu0 0.0
    %480 = vmatprep.subr.mxu0 0.0
    %481 = vmatpush1.msra.mxu0 0.0
    %482 = vmatprep.subr.mxu0 0.0
    %483 = vmatpush1.msra.mxu0 0.0
    %484 = vmatprep.subr.mxu0 0.0
    %485 = vmatpush1.msra.mxu0 0.0
    %486 = vmatprep.subr.mxu0 0.0
    %487 = vmatpush1.msra.mxu0 0.0
    %488 = vmatprep.subr.mxu0 0.0
    %489 = vmatpush1.msra.mxu0 0.0
    %490 = vmatprep.mubr.f32.mxu0 0.0
    %491 = vmatmul.mubr.f32.gmra.mrb[0].mxu0 %v415
    %v492 = vpop.f32.mrb[0].mxu0
    %v493 = vadd.f32 %v396, %v492
    %v494 = vpop.f32.mrb[0].mxu0
    %495 = vmatprep.mubr.f32.mxu0 0.0
    %496 = vmatmul.mubr.f32.gmra.mrb[0].mxu0 %v418
    %v497 = vpop.f32.mrb[0].mxu0
    %v498 = vadd.f32 %v401, %v497
    %v499 = vpop.f32.mrb[0].mxu0
    %500 = vmatprep.mubr.f32.mxu0 0.0
    %501 = vmatmul.mubr.f32.gmra.mrb[0].mxu0 %v421
    %v502 = vpop.f32.mrb[0].mxu0
    %v503 = vadd.f32 %v406, %v502
    %v504 = vpop.f32.mrb[0].mxu0
    %505 = vmatprep.mubr.f32.mxu0 0.0
    %506 = vmatmul.mubr.f32.gmra.mrb[0].mxu0 %v424
    %v507 = vpop.f32.mrb[0].mxu0
    %v508 = vadd.f32 %v411, %v507
    %v509 = vpop.f32.mrb[0].mxu0
    %510 = vdwg.mxu0
    %v512 = vsel %vm316, %v51, 0
    %v515 = vsel %vm316, %v52, 0
    %v518 = vsel %vm316, %v53, 0
    %v521 = vsel %vm316, %v54, 0
    %523 = vmatprep.subr.mxu0 0.0
    %524 = vmatpush1.msra.mxu0 %v302
    %525 = vmatprep.subr.mxu0 0.0
    %526 = vmatpush1.msra.mxu0 %v305
    %527 = vmatprep.subr.mxu0 0.0
    %528 = vmatpush1.msra.mxu0 %v310
    %529 = vmatprep.subr.mxu0 0.0
    %530 = vmatpush1.msra.mxu0 %v313
    %531 = vmatprep.subr.mxu0 0.0
    %532 = vmatpush1.msra.mxu0 0.0
    %533 = vmatprep.subr.mxu0 0.0
    %534 = vmatpush1.msra.mxu0 0.0
    %535 = vmatprep.subr.mxu0 0.0
    %536 = vmatpush1.msra.mxu0 0.0
    %537 = vmatprep.subr.mxu0 0.0
    %538 = vmatpush1.msra.mxu0 0.0
    %539 = vmatprep.subr.mxu0 0.0
    %540 = vmatpush1.msra.mxu0 0.0
    %541 = vmatprep.subr.mxu0 0.0
    %542 = vmatpush1.msra.mxu0 0.0
    %543 = vmatprep.subr.mxu0 0.0
    %544 = vmatpush1.msra.mxu0 0.0
    %545 = vmatprep.subr.mxu0 0.0
    %546 = vmatpush1.msra.mxu0 0.0
    %547 = vmatprep.subr.mxu0 0.0
    %548 = vmatpush1.msra.mxu0 0.0
    %549 = vmatprep.subr.mxu0 0.0
    %550 = vmatpush1.msra.mxu0 0.0
    %551 = vmatprep.subr.mxu0 0.0
    %552 = vmatpush1.msra.mxu0 0.0
    %553 = vmatprep.subr.mxu0 0.0
    %554 = vmatpush1.msra.mxu0 0.0
    %555 = vmatprep.subr.mxu0 0.0
    %556 = vmatpush1.msra.mxu0 0.0
    %557 = vmatprep.subr.mxu0 0.0
    %558 = vmatpush1.msra.mxu0 0.0
    %559 = vmatprep.subr.mxu0 0.0
    %560 = vmatpush1.msra.mxu0 0.0
    %561 = vmatprep.subr.mxu0 0.0
    %562 = vmatpush1.msra.mxu0 0.0
    %563 = vmatprep.subr.mxu0 0.0
    %564 = vmatpush1.msra.mxu0 0.0
    %565 = vmatprep.subr.mxu0 0.0
    %566 = vmatpush1.msra.mxu0 0.0
    %567 = vmatprep.subr.mxu0 0.0
    %568 = vmatpush1.msra.mxu0 0.0
    %569 = vmatprep.subr.mxu0 0.0
    %570 = vmatpush1.msra.mxu0 0.0
    %571 = vmatprep.subr.mxu0 0.0
    %572 = vmatpush1.msra.mxu0 0.0
    %573 = vmatprep.subr.mxu0 0.0
    %574 = vmatpush1.msra.mxu0 0.0
    %575 = vmatprep.subr.mxu0 0.0
    %576 = vmatpush1.msra.mxu0 0.0
    %577 = vmatprep.subr.mxu0 0.0
    %578 = vmatpush1.msra.mxu0 0.0
    %579 = vmatprep.subr.mxu0 0.0
    %580 = vmatpush1.msra.mxu0 0.0
    %581 = vmatprep.subr.mxu0 0.0
    %582 = vmatpush1.msra.mxu0 0.0
    %583 = vmatprep.subr.mxu0 0.0
    %584 = vmatpush1.msra.mxu0 0.0
    %585 = vmatprep.subr.mxu0 0.0
    %586 = vmatpush1.msra.mxu0 0.0
    %587 = vmatprep.mubr.f32.mxu0 0.0
    %588 = vmatmul.mubr.f32.gmra.mrb[0].mxu0 %v512
    %v589 = vpop.f32.mrb[0].mxu0
    %v590 = vadd.f32 0.0, %v589
    %v591 = vpop.f32.mrb[0].mxu0
    %592 = vmatprep.mubr.f32.mxu0 0.0
    %593 = vmatmul.mubr.f32.gmra.mrb[0].mxu0 %v515
    %v594 = vpop.f32.mrb[0].mxu0
    %v595 = vadd.f32 0.0, %v594
    %v596 = vpop.f32.mrb[0].mxu0
    %597 = vmatprep.mubr.f32.mxu0 0.0
    %598 = vmatmul.mubr.f32.gmra.mrb[0].mxu0 %v518
    %v599 = vpop.f32.mrb[0].mxu0
    %v600 = vadd.f32 0.0, %v599
    %v601 = vpop.f32.mrb[0].mxu0
    %602 = vmatprep.mubr.f32.mxu0 0.0
    %603 = vmatmul.mubr.f32.gmra.mrb[0].mxu0 %v521
    %v604 = vpop.f32.mrb[0].mxu0
    %v605 = vadd.f32 0.0, %v604
    %v606 = vpop.f32.mrb[0].mxu0
    %607 = vdwg.mxu0
    %v608 = vadd.f32 %v493, %v590
    %v609 = vadd.f32 %v498, %v595
    %v610 = vadd.f32 %v503, %v600
    %v611 = vadd.f32 %v508, %v605
    %v612 = vlaneseq
    %v613 = vshrl.u32 %v612, 7
    %v614 = vsub.s32 0, %v613
    %v615 = vrot.slane %v126, %v614
    %v616 = vadd.f32 %v608, %v615
    %v617 = vadd.f32 %v609, %v615
    %v618 = vadd.f32 %v610, %v615
    %v619 = vadd.f32 %v611, %v615
    %vm620 = vcmp.ge.f32.partialorder %v616, 0.0
    %vm621 = vcmp.ge.f32.partialorder %v617, 0.0
    %vm622 = vcmp.ge.f32.partialorder %v618, 0.0
    %vm623 = vcmp.ge.f32.partialorder %v619, 0.0
    %v624 = vmul.f32 %v616, 0.01
    %v625 = vmul.f32 %v617, 0.01
    %v626 = vmul.f32 %v618, 0.01
    %v627 = vmul.f32 %v619, 0.01
    %v628 = vsel %vm620, %v616, %v624
    %v629 = vsel %vm621, %v617, %v625
    %v630 = vsel %vm622, %v618, %v626
    %v631 = vsel %vm623, %v619, %v627
    %v632 = vld [vmem:[%s1] sm:$0xff]
    %v633 = vld [vmem:[%s1 + $0x8] sm:$0xff]
    %v634 = vld [vmem:[%s1 + $0x10] sm:$0xff]
    %v635 = vld [vmem:[%s1 + $0x18] sm:$0xff]
    %v636 = vld [vmem:[%s1 + $0x20] sm:$0xff]
    %v637 = vld [vmem:[%s1 + $0x28] sm:$0xff]
    %v638 = vld [vmem:[%s1 + $0x30] sm:$0xff]
    %v639 = vld [vmem:[%s1 + $0x38] sm:$0xff]
    %v640 = vld [vmem:[%s1 + $0x40] sm:$0xff]
    %v641 = vld [vmem:[%s1 + $0x48] sm:$0xff]
    %v642 = vld [vmem:[%s1 + $0x50] sm:$0xff]
    %v643 = vld [vmem:[%s1 + $0x58] sm:$0xff]
    %v644 = vld [vmem:[%s1 + $0x60] sm:$0xff]
    %v645 = vld [vmem:[%s1 + $0x68] sm:$0xff]
    %v646 = vld [vmem:[%s1 + $0x70] sm:$0xff]
    %v647 = vld [vmem:[%s1 + $0x78] sm:$0xff]
    %v648 = vld [vmem:[%s1 + $0x80] sm:$0xff]
    %v649 = vld [vmem:[%s1 + $0x88] sm:$0xff]
    %v650 = vld [vmem:[%s1 + $0x90] sm:$0xff]
    %v651 = vld [vmem:[%s1 + $0x98] sm:$0xff]
    %v652 = vld [vmem:[%s1 + $0xa0] sm:$0xff]
    %v653 = vld [vmem:[%s1 + $0xa8] sm:$0xff]
    %v654 = vld [vmem:[%s1 + $0xb0] sm:$0xff]
    %v655 = vld [vmem:[%s1 + $0xb8] sm:$0xff]
    %v656 = vld [vmem:[%s1 + $0xc0] sm:$0xff]
    %v657 = vld [vmem:[%s1 + $0xc8] sm:$0xff]
    %v658 = vld [vmem:[%s1 + $0xd0] sm:$0xff]
    %v659 = vld [vmem:[%s1 + $0xd8] sm:$0xff]
    %v660 = vld [vmem:[%s1 + $0xe0] sm:$0xff]
    %v661 = vld [vmem:[%s1 + $0xe8] sm:$0xff]
    %v662 = vld [vmem:[%s1 + $0xf0] sm:$0xff]
    %v663 = vld [vmem:[%s1 + $0xf8] sm:$0xff]
    %v664 = vpack.c.bf16 %v629, %v628
    %v665 = vpack.c.bf16 %v631, %v630
    %v698 = vunpack.c.l.b16 %v632
    %v699 = vunpack.c.h.b16 %v632
    %v700 = vunpack.c.l.b16 %v633
    %v701 = vunpack.c.h.b16 %v633
    %v702 = vunpack.c.l.b16 %v634
    %v703 = vunpack.c.h.b16 %v634
    %v704 = vunpack.c.l.b16 %v635
    %v705 = vunpack.c.h.b16 %v635
    %v706 = vunpack.c.l.b16 %v636
    %v707 = vunpack.c.h.b16 %v636
    %v708 = vunpack.c.l.b16 %v637
    %v709 = vunpack.c.h.b16 %v637
    %v710 = vunpack.c.l.b16 %v638
    %v711 = vunpack.c.h.b16 %v638
    %v712 = vunpack.c.l.b16 %v639
    %v713 = vunpack.c.h.b16 %v639
    %v714 = vunpack.c.l.b16 %v640
    %v715 = vunpack.c.h.b16 %v640
    %v716 = vunpack.c.l.b16 %v641
    %v717 = vunpack.c.h.b16 %v641
    %v718 = vunpack.c.l.b16 %v642
    %v719 = vunpack.c.h.b16 %v642
    %v720 = vunpack.c.l.b16 %v643
    %v721 = vunpack.c.h.b16 %v643
    %v722 = vunpack.c.l.b16 %v644
    %v723 = vunpack.c.h.b16 %v644
    %v724 = vunpack.c.l.b16 %v645
    %v725 = vunpack.c.h.b16 %v645
    %v726 = vunpack.c.l.b16 %v646
    %v727 = vunpack.c.h.b16 %v646
    %v728 = vunpack.c.l.b16 %v647
    %v729 = vunpack.c.h.b16 %v647
    %v730 = vunpack.c.l.b16 %v648
    %v731 = vunpack.c.h.b16 %v648
    %v732 = vunpack.c.l.b16 %v649
    %v733 = vunpack.c.h.b16 %v649
    %v734 = vunpack.c.l.b16 %v650
    %v735 = vunpack.c.h.b16 %v650
    %v736 = vunpack.c.l.b16 %v651
    %v737 = vunpack.c.h.b16 %v651
    %v738 = vunpack.c.l.b16 %v652
    %v739 = vunpack.c.h.b16 %v652
    %v740 = vunpack.c.l.b16 %v653
    %v741 = vunpack.c.h.b16 %v653
    %v742 = vunpack.c.l.b16 %v654
    %v743 = vunpack.c.h.b16 %v654
    %v744 = vunpack.c.l.b16 %v655
    %v745 = vunpack.c.h.b16 %v655
    %v746 = vunpack.c.l.b16 %v656
    %v747 = vunpack.c.h.b16 %v656
    %v748 = vunpack.c.l.b16 %v657
    %v749 = vunpack.c.h.b16 %v657
    %v750 = vunpack.c.l.b16 %v658
    %v751 = vunpack.c.h.b16 %v658
    %v752 = vunpack.c.l.b16 %v659
    %v753 = vunpack.c.h.b16 %v659
    %v754 = vunpack.c.l.b16 %v660
    %v755 = vunpack.c.h.b16 %v660
    %v756 = vunpack.c.l.b16 %v661
    %v757 = vunpack.c.h.b16 %v661
    %v758 = vunpack.c.l.b16 %v662
    %v759 = vunpack.c.h.b16 %v662
    %v760 = vunpack.c.l.b16 %v663
    %v761 = vunpack.c.h.b16 %v663
    %v762 = vpack.c.b16 %v702, %v698
    %v763 = vpack.c.b16 %v703, %v699
    %v764 = vpack.c.b16 %v704, %v700
    %v765 = vpack.c.b16 %v705, %v701
    %v766 = vpack.c.b16 %v710, %v706
    %v767 = vpack.c.b16 %v711, %v707
    %v768 = vpack.c.b16 %v712, %v708
    %v769 = vpack.c.b16 %v713, %v709
    %v770 = vpack.c.b16 %v718, %v714
    %v771 = vpack.c.b16 %v719, %v715
    %v772 = vpack.c.b16 %v720, %v716
    %v773 = vpack.c.b16 %v721, %v717
    %v774 = vpack.c.b16 %v726, %v722
    %v775 = vpack.c.b16 %v727, %v723
    %v776 = vpack.c.b16 %v728, %v724
    %v777 = vpack.c.b16 %v729, %v725
    %v778 = vpack.c.b16 %v734, %v730
    %v779 = vpack.c.b16 %v735, %v731
    %v780 = vpack.c.b16 %v736, %v732
    %v781 = vpack.c.b16 %v737, %v733
    %v782 = vpack.c.b16 %v742, %v738
    %v783 = vpack.c.b16 %v743, %v739
    %v784 = vpack.c.b16 %v744, %v740
    %v785 = vpack.c.b16 %v745, %v741
    %v786 = vpack.c.b16 %v750, %v746
    %v787 = vpack.c.b16 %v751, %v747
    %v788 = vpack.c.b16 %v752, %v748
    %v789 = vpack.c.b16 %v753, %v749
    %v790 = vpack.c.b16 %v758, %v754
    %v791 = vpack.c.b16 %v759, %v755
    %v792 = vpack.c.b16 %v760, %v756
    %v793 = vpack.c.b16 %v761, %v757
    %826 = vmatprep.subr.bf16.mxu0 %v763
    %827 = vmatpush1.bf16.msra.mxu0 %v762
    %828 = vmatprep.subr.bf16.mxu0 %v767
    %829 = vmatpush1.bf16.msra.mxu0 %v766
    %830 = vmatprep.subr.bf16.mxu0 %v771
    %831 = vmatpush1.bf16.msra.mxu0 %v770
    %832 = vmatprep.subr.bf16.mxu0 %v775
    %833 = vmatpush1.bf16.msra.mxu0 %v774
    %834 = vmatprep.subr.bf16.mxu0 %v779
    %835 = vmatpush1.bf16.msra.mxu0 %v778
    %836 = vmatprep.subr.bf16.mxu0 %v783
    %837 = vmatpush1.bf16.msra.mxu0 %v782
    %838 = vmatprep.subr.bf16.mxu0 %v787
    %839 = vmatpush1.bf16.msra.mxu0 %v786
    %840 = vmatprep.subr.bf16.mxu0 %v791
    %841 = vmatpush1.bf16.msra.mxu0 %v790
    %842 = vmatprep.subr.bf16.mxu0 0
    %843 = vmatpush1.bf16.msra.mxu0 0
    %844 = vmatprep.subr.bf16.mxu0 0
    %845 = vmatpush1.bf16.msra.mxu0 0
    %846 = vmatprep.subr.bf16.mxu0 0
    %847 = vmatpush1.bf16.msra.mxu0 0
    %848 = vmatprep.subr.bf16.mxu0 0
    %849 = vmatpush1.bf16.msra.mxu0 0
    %850 = vmatprep.subr.bf16.mxu0 0
    %851 = vmatpush1.bf16.msra.mxu0 0
    %852 = vmatprep.subr.bf16.mxu0 0
    %853 = vmatpush1.bf16.msra.mxu0 0
    %854 = vmatprep.subr.bf16.mxu0 0
    %855 = vmatpush1.bf16.msra.mxu0 0
    %856 = vmatprep.subr.bf16.mxu0 0
    %857 = vmatpush1.bf16.msra.mxu0 0
    %858 = vmatprep.mubr.bf16.mxu0 0
    %859 = vmatmul.mubr.bf16.gmra.mrb[0].mxu0 %v664
    %v860 = vpop.f32.mrb[0].mxu0
    %v861 = vadd.f32 0.0, %v860
    %v862 = vpop.f32.mrb[0].mxu0
    %v863 = vadd.f32 0.0, %v862
    %v864 = vpop.f32.mrb[0].mxu0
    %v865 = vadd.f32 0.0, %v864
    %v866 = vpop.f32.mrb[0].mxu0
    %v867 = vadd.f32 0.0, %v866
    %868 = vmatprep.mubr.bf16.mxu0 0
    %869 = vmatmul.mubr.bf16.gmra.mrb[0].mxu0 %v665
    %v870 = vpop.f32.mrb[0].mxu0
    %v871 = vadd.f32 0.0, %v870
    %v872 = vpop.f32.mrb[0].mxu0
    %v873 = vadd.f32 0.0, %v872
    %v874 = vpop.f32.mrb[0].mxu0
    %v875 = vadd.f32 0.0, %v874
    %v876 = vpop.f32.mrb[0].mxu0
    %v877 = vadd.f32 0.0, %v876
    %878 = vdwg.mxu0
    %879 = vmatprep.subr.bf16.mxu0 %v765
    %880 = vmatpush1.bf16.msra.mxu0 %v764
    %881 = vmatprep.subr.bf16.mxu0 %v769
    %882 = vmatpush1.bf16.msra.mxu0 %v768
    %883 = vmatprep.subr.bf16.mxu0 %v773
    %884 = vmatpush1.bf16.msra.mxu0 %v772
    %885 = vmatprep.subr.bf16.mxu0 %v777
    %886 = vmatpush1.bf16.msra.mxu0 %v776
    %887 = vmatprep.subr.bf16.mxu0 %v781
    %888 = vmatpush1.bf16.msra.mxu0 %v780
    %889 = vmatprep.subr.bf16.mxu0 %v785
    %890 = vmatpush1.bf16.msra.mxu0 %v784
    %891 = vmatprep.subr.bf16.mxu0 %v789
    %892 = vmatpush1.bf16.msra.mxu0 %v788
    %893 = vmatprep.subr.bf16.mxu0 %v793
    %894 = vmatpush1.bf16.msra.mxu0 %v792
    %895 = vmatprep.subr.bf16.mxu0 0
    %896 = vmatpush1.bf16.msra.mxu0 0
    %897 = vmatprep.subr.bf16.mxu0 0
    %898 = vmatpush1.bf16.msra.mxu0 0
    %899 = vmatprep.subr.bf16.mxu0 0
    %900 = vmatpush1.bf16.msra.mxu0 0
    %901 = vmatprep.subr.bf16.mxu0 0
    %902 = vmatpush1.bf16.msra.mxu0 0
    %903 = vmatprep.subr.bf16.mxu0 0
    %904 = vmatpush1.bf16.msra.mxu0 0
    %905 = vmatprep.subr.bf16.mxu0 0
    %906 = vmatpush1.bf16.msra.mxu0 0
    %907 = vmatprep.subr.bf16.mxu0 0
    %908 = vmatpush1.bf16.msra.mxu0 0
    %909 = vmatprep.subr.bf16.mxu0 0
    %910 = vmatpush1.bf16.msra.mxu0 0
    %911 = vmatprep.mubr.bf16.mxu0 0
    %912 = vmatmul.mubr.bf16.gmra.mrb[0].mxu0 %v664
    %v913 = vpop.f32.mrb[0].mxu0
    %v914 = vadd.f32 0.0, %v913
    %v915 = vpop.f32.mrb[0].mxu0
    %v916 = vadd.f32 0.0, %v915
    %v917 = vpop.f32.mrb[0].mxu0
    %v918 = vadd.f32 0.0, %v917
    %v919 = vpop.f32.mrb[0].mxu0
    %v920 = vadd.f32 0.0, %v919
    %921 = vmatprep.mubr.bf16.mxu0 0
    %922 = vmatmul.mubr.bf16.gmra.mrb[0].mxu0 %v665
    %v923 = vpop.f32.mrb[0].mxu0
    %v924 = vadd.f32 0.0, %v923
    %v925 = vpop.f32.mrb[0].mxu0
    %v926 = vadd.f32 0.0, %v925
    %v927 = vpop.f32.mrb[0].mxu0
    %v928 = vadd.f32 0.0, %v927
    %v929 = vpop.f32.mrb[0].mxu0
    %v930 = vadd.f32 0.0, %v929
    %931 = vdwg.mxu0
    %v933 = vsel %vm316, %v57, 0
    %v936 = vsel %vm316, %v58, 0
    %938 = vmatprep.subr.mxu0 0.0
    %939 = vmatpush1.msra.mxu0 %v863
    %940 = vmatprep.subr.mxu0 0.0
    %941 = vmatpush1.msra.mxu0 %v867
    %942 = vmatprep.subr.mxu0 0.0
    %943 = vmatpush1.msra.mxu0 %v873
    %944 = vmatprep.subr.mxu0 0.0
    %945 = vmatpush1.msra.mxu0 %v877
    %946 = vmatprep.subr.mxu0 0.0
    %947 = vmatpush1.msra.mxu0 0.0
    %948 = vmatprep.subr.mxu0 0.0
    %949 = vmatpush1.msra.mxu0 0.0
    %950 = vmatprep.subr.mxu0 0.0
    %951 = vmatpush1.msra.mxu0 0.0
    %952 = vmatprep.subr.mxu0 0.0
    %953 = vmatpush1.msra.mxu0 0.0
    %954 = vmatprep.subr.mxu0 0.0
    %955 = vmatpush1.msra.mxu0 0.0
    %956 = vmatprep.subr.mxu0 0.0
    %957 = vmatpush1.msra.mxu0 0.0
    %958 = vmatprep.subr.mxu0 0.0
    %959 = vmatpush1.msra.mxu0 0.0
    %960 = vmatprep.subr.mxu0 0.0
    %961 = vmatpush1.msra.mxu0 0.0
    %962 = vmatprep.subr.mxu0 0.0
    %963 = vmatpush1.msra.mxu0 0.0
    %964 = vmatprep.subr.mxu0 0.0
    %965 = vmatpush1.msra.mxu0 0.0
    %966 = vmatprep.subr.mxu0 0.0
    %967 = vmatpush1.msra.mxu0 0.0
    %968 = vmatprep.subr.mxu0 0.0
    %969 = vmatpush1.msra.mxu0 0.0
    %970 = vmatprep.subr.mxu0 0.0
    %971 = vmatpush1.msra.mxu0 0.0
    %972 = vmatprep.subr.mxu0 0.0
    %973 = vmatpush1.msra.mxu0 0.0
    %974 = vmatprep.subr.mxu0 0.0
    %975 = vmatpush1.msra.mxu0 0.0
    %976 = vmatprep.subr.mxu0 0.0
    %977 = vmatpush1.msra.mxu0 0.0
    %978 = vmatprep.subr.mxu0 0.0
    %979 = vmatpush1.msra.mxu0 0.0
    %980 = vmatprep.subr.mxu0 0.0
    %981 = vmatpush1.msra.mxu0 0.0
    %982 = vmatprep.subr.mxu0 0.0
    %983 = vmatpush1.msra.mxu0 0.0
    %984 = vmatprep.subr.mxu0 0.0
    %985 = vmatpush1.msra.mxu0 0.0
    %986 = vmatprep.subr.mxu0 0.0
    %987 = vmatpush1.msra.mxu0 0.0
    %988 = vmatprep.subr.mxu0 0.0
    %989 = vmatpush1.msra.mxu0 0.0
    %990 = vmatprep.subr.mxu0 0.0
    %991 = vmatpush1.msra.mxu0 0.0
    %992 = vmatprep.subr.mxu0 0.0
    %993 = vmatpush1.msra.mxu0 0.0
    %994 = vmatprep.subr.mxu0 0.0
    %995 = vmatpush1.msra.mxu0 0.0
    %996 = vmatprep.subr.mxu0 0.0
    %997 = vmatpush1.msra.mxu0 0.0
    %998 = vmatprep.subr.mxu0 0.0
    %999 = vmatpush1.msra.mxu0 0.0
    %1000 = vmatprep.subr.mxu0 0.0
    %1001 = vmatpush1.msra.mxu0 0.0
    %1002 = vmatprep.mubr.f32.mxu0 0.0
    %1003 = vmatmul.mubr.f32.gmra.mrb[0].mxu0 %v933
    %v1004 = vpop.f32.mrb[0].mxu0
    %v1005 = vadd.f32 0.0, %v1004
    %v1006 = vpop.f32.mrb[0].mxu0
    %1007 = vmatprep.mubr.f32.mxu0 0.0
    %1008 = vmatmul.mubr.f32.gmra.mrb[0].mxu0 %v936
    %v1009 = vpop.f32.mrb[0].mxu0
    %v1010 = vadd.f32 0.0, %v1009
    %v1011 = vpop.f32.mrb[0].mxu0
    %1012 = vdwg.mxu0
    %v1014 = vsel %vm316, %v55, 0
    %v1017 = vsel %vm316, %v56, 0
    %1019 = vmatprep.subr.mxu0 0.0
    %1020 = vmatpush1.msra.mxu0 %v861
    %1021 = vmatprep.subr.mxu0 0.0
    %1022 = vmatpush1.msra.mxu0 %v865
    %1023 = vmatprep.subr.mxu0 0.0
    %1024 = vmatpush1.msra.mxu0 %v871
    %1025 = vmatprep.subr.mxu0 0.0
    %1026 = vmatpush1.msra.mxu0 %v875
    %1027 = vmatprep.subr.mxu0 0.0
    %1028 = vmatpush1.msra.mxu0 0.0
    %1029 = vmatprep.subr.mxu0 0.0
    %1030 = vmatpush1.msra.mxu0 0.0
    %1031 = vmatprep.subr.mxu0 0.0
    %1032 = vmatpush1.msra.mxu0 0.0
    %1033 = vmatprep.subr.mxu0 0.0
    %1034 = vmatpush1.msra.mxu0 0.0
    %1035 = vmatprep.subr.mxu0 0.0
    %1036 = vmatpush1.msra.mxu0 0.0
    %1037 = vmatprep.subr.mxu0 0.0
    %1038 = vmatpush1.msra.mxu0 0.0
    %1039 = vmatprep.subr.mxu0 0.0
    %1040 = vmatpush1.msra.mxu0 0.0
    %1041 = vmatprep.subr.mxu0 0.0
    %1042 = vmatpush1.msra.mxu0 0.0
    %1043 = vmatprep.subr.mxu0 0.0
    %1044 = vmatpush1.msra.mxu0 0.0
    %1045 = vmatprep.subr.mxu0 0.0
    %1046 = vmatpush1.msra.mxu0 0.0
    %1047 = vmatprep.subr.mxu0 0.0
    %1048 = vmatpush1.msra.mxu0 0.0
    %1049 = vmatprep.subr.mxu0 0.0
    %1050 = vmatpush1.msra.mxu0 0.0
    %1051 = vmatprep.subr.mxu0 0.0
    %1052 = vmatpush1.msra.mxu0 0.0
    %1053 = vmatprep.subr.mxu0 0.0
    %1054 = vmatpush1.msra.mxu0 0.0
    %1055 = vmatprep.subr.mxu0 0.0
    %1056 = vmatpush1.msra.mxu0 0.0
    %1057 = vmatprep.subr.mxu0 0.0
    %1058 = vmatpush1.msra.mxu0 0.0
    %1059 = vmatprep.subr.mxu0 0.0
    %1060 = vmatpush1.msra.mxu0 0.0
    %1061 = vmatprep.subr.mxu0 0.0
    %1062 = vmatpush1.msra.mxu0 0.0
    %1063 = vmatprep.subr.mxu0 0.0
    %1064 = vmatpush1.msra.mxu0 0.0
    %1065 = vmatprep.subr.mxu0 0.0
    %1066 = vmatpush1.msra.mxu0 0.0
    %1067 = vmatprep.subr.mxu0 0.0
    %1068 = vmatpush1.msra.mxu0 0.0
    %1069 = vmatprep.subr.mxu0 0.0
    %1070 = vmatpush1.msra.mxu0 0.0
    %1071 = vmatprep.subr.mxu0 0.0
    %1072 = vmatpush1.msra.mxu0 0.0
    %1073 = vmatprep.subr.mxu0 0.0
    %1074 = vmatpush1.msra.mxu0 0.0
    %1075 = vmatprep.subr.mxu0 0.0
    %1076 = vmatpush1.msra.mxu0 0.0
    %1077 = vmatprep.subr.mxu0 0.0
    %1078 = vmatpush1.msra.mxu0 0.0
    %1079 = vmatprep.subr.mxu0 0.0
    %1080 = vmatpush1.msra.mxu0 0.0
    %1081 = vmatprep.subr.mxu0 0.0
    %1082 = vmatpush1.msra.mxu0 0.0
    %1083 = vmatprep.mubr.f32.mxu0 0.0
    %1084 = vmatmul.mubr.f32.gmra.mrb[0].mxu0 %v1014
    %v1085 = vpop.f32.mrb[0].mxu0
    %v1086 = vadd.f32 %v1005, %v1085
    %v1087 = vpop.f32.mrb[0].mxu0
    %1088 = vmatprep.mubr.f32.mxu0 0.0
    %1089 = vmatmul.mubr.f32.gmra.mrb[0].mxu0 %v1017
    %v1090 = vpop.f32.mrb[0].mxu0
    %v1091 = vadd.f32 %v1010, %v1090
    %v1092 = vpop.f32.mrb[0].mxu0
    %1093 = vdwg.mxu0
    %v1095 = vsel %vm316, %v59, 0
    %v1098 = vsel %vm316, %v60, 0
    %1100 = vmatprep.subr.mxu0 0.0
    %1101 = vmatpush1.msra.mxu0 %v914
    %1102 = vmatprep.subr.mxu0 0.0
    %1103 = vmatpush1.msra.mxu0 %v918
    %1104 = vmatprep.subr.mxu0 0.0
    %1105 = vmatpush1.msra.mxu0 %v924
    %1106 = vmatprep.subr.mxu0 0.0
    %1107 = vmatpush1.msra.mxu0 %v928
    %1108 = vmatprep.subr.mxu0 0.0
    %1109 = vmatpush1.msra.mxu0 0.0
    %1110 = vmatprep.subr.mxu0 0.0
    %1111 = vmatpush1.msra.mxu0 0.0
    %1112 = vmatprep.subr.mxu0 0.0
    %1113 = vmatpush1.msra.mxu0 0.0
    %1114 = vmatprep.subr.mxu0 0.0
    %1115 = vmatpush1.msra.mxu0 0.0
    %1116 = vmatprep.subr.mxu0 0.0
    %1117 = vmatpush1.msra.mxu0 0.0
    %1118 = vmatprep.subr.mxu0 0.0
    %1119 = vmatpush1.msra.mxu0 0.0
    %1120 = vmatprep.subr.mxu0 0.0
    %1121 = vmatpush1.msra.mxu0 0.0
    %1122 = vmatprep.subr.mxu0 0.0
    %1123 = vmatpush1.msra.mxu0 0.0
    %1124 = vmatprep.subr.mxu0 0.0
    %1125 = vmatpush1.msra.mxu0 0.0
    %1126 = vmatprep.subr.mxu0 0.0
    %1127 = vmatpush1.msra.mxu0 0.0
    %1128 = vmatprep.subr.mxu0 0.0
    %1129 = vmatpush1.msra.mxu0 0.0
    %1130 = vmatprep.subr.mxu0 0.0
    %1131 = vmatpush1.msra.mxu0 0.0
    %1132 = vmatprep.subr.mxu0 0.0
    %1133 = vmatpush1.msra.mxu0 0.0
    %1134 = vmatprep.subr.mxu0 0.0
    %1135 = vmatpush1.msra.mxu0 0.0
    %1136 = vmatprep.subr.mxu0 0.0
    %1137 = vmatpush1.msra.mxu0 0.0
    %1138 = vmatprep.subr.mxu0 0.0
    %1139 = vmatpush1.msra.mxu0 0.0
    %1140 = vmatprep.subr.mxu0 0.0
    %1141 = vmatpush1.msra.mxu0 0.0
    %1142 = vmatprep.subr.mxu0 0.0
    %1143 = vmatpush1.msra.mxu0 0.0
    %1144 = vmatprep.subr.mxu0 0.0
    %1145 = vmatpush1.msra.mxu0 0.0
    %1146 = vmatprep.subr.mxu0 0.0
    %1147 = vmatpush1.msra.mxu0 0.0
    %1148 = vmatprep.subr.mxu0 0.0
    %1149 = vmatpush1.msra.mxu0 0.0
    %1150 = vmatprep.subr.mxu0 0.0
    %1151 = vmatpush1.msra.mxu0 0.0
    %1152 = vmatprep.subr.mxu0 0.0
    %1153 = vmatpush1.msra.mxu0 0.0
    %1154 = vmatprep.subr.mxu0 0.0
    %1155 = vmatpush1.msra.mxu0 0.0
    %1156 = vmatprep.subr.mxu0 0.0
    %1157 = vmatpush1.msra.mxu0 0.0
    %1158 = vmatprep.subr.mxu0 0.0
    %1159 = vmatpush1.msra.mxu0 0.0
    %1160 = vmatprep.subr.mxu0 0.0
    %1161 = vmatpush1.msra.mxu0 0.0
    %1162 = vmatprep.subr.mxu0 0.0
    %1163 = vmatpush1.msra.mxu0 0.0
    %1164 = vmatprep.mubr.f32.mxu0 0.0
    %1165 = vmatmul.mubr.f32.gmra.mrb[0].mxu0 %v1095
    %v1166 = vpop.f32.mrb[0].mxu0
    %v1167 = vadd.f32 0.0, %v1166
    %v1168 = vpop.f32.mrb[0].mxu0
    %1169 = vmatprep.mubr.f32.mxu0 0.0
    %1170 = vmatmul.mubr.f32.gmra.mrb[0].mxu0 %v1098
    %v1171 = vpop.f32.mrb[0].mxu0
    %v1172 = vadd.f32 0.0, %v1171
    %v1173 = vpop.f32.mrb[0].mxu0
    %1174 = vdwg.mxu0
    %v1175 = vadd.f32 %v1086, %v1167
    %v1176 = vadd.f32 %v1091, %v1172
    %v1178 = vsel %vm316, %v61, 0
    %v1181 = vsel %vm316, %v62, 0
    %1183 = vmatprep.subr.mxu0 0.0
    %1184 = vmatpush1.msra.mxu0 %v916
    %1185 = vmatprep.subr.mxu0 0.0
    %1186 = vmatpush1.msra.mxu0 %v920
    %1187 = vmatprep.subr.mxu0 0.0
    %1188 = vmatpush1.msra.mxu0 %v926
    %1189 = vmatprep.subr.mxu0 0.0
    %1190 = vmatpush1.msra.mxu0 %v930
    %1191 = vmatprep.subr.mxu0 0.0
    %1192 = vmatpush1.msra.mxu0 0.0
    %1193 = vmatprep.subr.mxu0 0.0
    %1194 = vmatpush1.msra.mxu0 0.0
    %1195 = vmatprep.subr.mxu0 0.0
    %1196 = vmatpush1.msra.mxu0 0.0
    %1197 = vmatprep.subr.mxu0 0.0
    %1198 = vmatpush1.msra.mxu0 0.0
    %1199 = vmatprep.subr.mxu0 0.0
    %1200 = vmatpush1.msra.mxu0 0.0
    %1201 = vmatprep.subr.mxu0 0.0
    %1202 = vmatpush1.msra.mxu0 0.0
    %1203 = vmatprep.subr.mxu0 0.0
    %1204 = vmatpush1.msra.mxu0 0.0
    %1205 = vmatprep.subr.mxu0 0.0
    %1206 = vmatpush1.msra.mxu0 0.0
    %1207 = vmatprep.subr.mxu0 0.0
    %1208 = vmatpush1.msra.mxu0 0.0
    %1209 = vmatprep.subr.mxu0 0.0
    %1210 = vmatpush1.msra.mxu0 0.0
    %1211 = vmatprep.subr.mxu0 0.0
    %1212 = vmatpush1.msra.mxu0 0.0
    %1213 = vmatprep.subr.mxu0 0.0
    %1214 = vmatpush1.msra.mxu0 0.0
    %1215 = vmatprep.subr.mxu0 0.0
    %1216 = vmatpush1.msra.mxu0 0.0
    %1217 = vmatprep.subr.mxu0 0.0
    %1218 = vmatpush1.msra.mxu0 0.0
    %1219 = vmatprep.subr.mxu0 0.0
    %1220 = vmatpush1.msra.mxu0 0.0
    %1221 = vmatprep.subr.mxu0 0.0
    %1222 = vmatpush1.msra.mxu0 0.0
    %1223 = vmatprep.subr.mxu0 0.0
    %1224 = vmatpush1.msra.mxu0 0.0
    %1225 = vmatprep.subr.mxu0 0.0
    %1226 = vmatpush1.msra.mxu0 0.0
    %1227 = vmatprep.subr.mxu0 0.0
    %1228 = vmatpush1.msra.mxu0 0.0
    %1229 = vmatprep.subr.mxu0 0.0
    %1230 = vmatpush1.msra.mxu0 0.0
    %1231 = vmatprep.subr.mxu0 0.0
    %1232 = vmatpush1.msra.mxu0 0.0
    %1233 = vmatprep.subr.mxu0 0.0
    %1234 = vmatpush1.msra.mxu0 0.0
    %1235 = vmatprep.subr.mxu0 0.0
    %1236 = vmatpush1.msra.mxu0 0.0
    %1237 = vmatprep.subr.mxu0 0.0
    %1238 = vmatpush1.msra.mxu0 0.0
    %1239 = vmatprep.subr.mxu0 0.0
    %1240 = vmatpush1.msra.mxu0 0.0
    %1241 = vmatprep.subr.mxu0 0.0
    %1242 = vmatpush1.msra.mxu0 0.0
    %1243 = vmatprep.subr.mxu0 0.0
    %1244 = vmatpush1.msra.mxu0 0.0
    %1245 = vmatprep.subr.mxu0 0.0
    %1246 = vmatpush1.msra.mxu0 0.0
    %1247 = vmatprep.mubr.f32.mxu0 0.0
    %1248 = vmatmul.mubr.f32.gmra.mrb[0].mxu0 %v1178
    %v1249 = vpop.f32.mrb[0].mxu0
    %v1250 = vadd.f32 0.0, %v1249
    %v1251 = vpop.f32.mrb[0].mxu0
    %1252 = vmatprep.mubr.f32.mxu0 0.0
    %1253 = vmatmul.mubr.f32.gmra.mrb[0].mxu0 %v1181
    %v1254 = vpop.f32.mrb[0].mxu0
    %v1255 = vadd.f32 0.0, %v1254
    %v1256 = vpop.f32.mrb[0].mxu0
    %1257 = vdwg.mxu0
    %v1258 = vadd.f32 %v1175, %v1250
    %v1259 = vadd.f32 %v1176, %v1255
    %v1260 = vlaneseq
    %v1261 = vshrl.u32 %v1260, 7
    %v1262 = vsub.s32 0, %v1261
    %v1263 = vrot.slane %v127, %v1262
    %v1264 = vadd.f32 %v1258, %v1263
    %v1265 = vadd.f32 %v1259, %v1263
    %vm1266 = vcmp.ge.f32.partialorder %v1264, 0.0
    %vm1267 = vcmp.ge.f32.partialorder %v1265, 0.0
    %v1268 = vmul.f32 %v1264, 0.01
    %v1269 = vmul.f32 %v1265, 0.01
    %v1270 = vsel %vm1266, %v1264, %v1268
    %v1271 = vsel %vm1267, %v1265, %v1269
    %v1272 = vlaneseq
    %v1273 = vshrl.u32 %v1272, 7
    %v1274 = vadd.s32 %v1273, 8
    %v1275 = vlaneseq
    %v1276 = vand.u32 %v1275, 127
    %v1277 = vadd.s32 %v1276, 128
    %v1278 = vand.u32 %v1273, 7
    %v1279 = vand.u32 %v1274, 7
    %v1280 = vshra.s32 %v1276, 5
    %v1281 = vshra.s32 %v1277, 5
    %vm1282 = vcmp.eq.s32.totalorder %v1278, %v1280
    %vm1283 = vcmp.eq.s32.totalorder %v1278, %v1281
    %vm1284 = vcmp.eq.s32.totalorder %v1279, %v1280
    %vm1285 = vcmp.eq.s32.totalorder %v1279, %v1281
    %v1286 = vld [vmem:[%s3] sm:$0xff]
    %v1287 = vld [vmem:[%s3 + $0x8] sm:$0xff]
    %v1288 = vld [vmem:[%s3 + $0x10] sm:$0xff]
    %v1289 = vld [vmem:[%s3 + $0x18] sm:$0xff]
    %v1290 = vld [vmem:[%s3 + $0x20] sm:$0xff]
    %v1291 = vld [vmem:[%s3 + $0x28] sm:$0xff]
    %v1292 = vld [vmem:[%s3 + $0x30] sm:$0xff]
    %v1293 = vld [vmem:[%s3 + $0x38] sm:$0xff]
    %v1294 = vld [vmem:[%s3 + $0x40] sm:$0xff]
    %v1295 = vld [vmem:[%s3 + $0x48] sm:$0xff]
    %v1296 = vld [vmem:[%s3 + $0x50] sm:$0xff]
    %v1297 = vld [vmem:[%s3 + $0x58] sm:$0xff]
    %v1298 = vld [vmem:[%s3 + $0x60] sm:$0xff]
    %v1299 = vld [vmem:[%s3 + $0x68] sm:$0xff]
    %v1300 = vld [vmem:[%s3 + $0x70] sm:$0xff]
    %v1301 = vld [vmem:[%s3 + $0x78] sm:$0xff]
    %v1302 = vpack.c.bf16 %v1271, %v1270
    %v1319 = vunpack.c.l.b16 %v1286
    %v1320 = vunpack.c.h.b16 %v1286
    %v1321 = vunpack.c.l.b16 %v1287
    %v1322 = vunpack.c.h.b16 %v1287
    %v1323 = vunpack.c.l.b16 %v1288
    %v1324 = vunpack.c.h.b16 %v1288
    %v1325 = vunpack.c.l.b16 %v1289
    %v1326 = vunpack.c.h.b16 %v1289
    %v1327 = vunpack.c.l.b16 %v1290
    %v1328 = vunpack.c.h.b16 %v1290
    %v1329 = vunpack.c.l.b16 %v1291
    %v1330 = vunpack.c.h.b16 %v1291
    %v1331 = vunpack.c.l.b16 %v1292
    %v1332 = vunpack.c.h.b16 %v1292
    %v1333 = vunpack.c.l.b16 %v1293
    %v1334 = vunpack.c.h.b16 %v1293
    %v1335 = vunpack.c.l.b16 %v1294
    %v1336 = vunpack.c.h.b16 %v1294
    %v1337 = vunpack.c.l.b16 %v1295
    %v1338 = vunpack.c.h.b16 %v1295
    %v1339 = vunpack.c.l.b16 %v1296
    %v1340 = vunpack.c.h.b16 %v1296
    %v1341 = vunpack.c.l.b16 %v1297
    %v1342 = vunpack.c.h.b16 %v1297
    %v1343 = vunpack.c.l.b16 %v1298
    %v1344 = vunpack.c.h.b16 %v1298
    %v1345 = vunpack.c.l.b16 %v1299
    %v1346 = vunpack.c.h.b16 %v1299
    %v1347 = vunpack.c.l.b16 %v1300
    %v1348 = vunpack.c.h.b16 %v1300
    %v1349 = vunpack.c.l.b16 %v1301
    %v1350 = vunpack.c.h.b16 %v1301
    %v1351 = vpack.c.b16 %v1321, %v1319
    %v1352 = vpack.c.b16 %v1322, %v1320
    %v1353 = vpack.c.b16 %v1325, %v1323
    %v1354 = vpack.c.b16 %v1326, %v1324
    %v1355 = vpack.c.b16 %v1329, %v1327
    %v1356 = vpack.c.b16 %v1330, %v1328
    %v1357 = vpack.c.b16 %v1333, %v1331
    %v1358 = vpack.c.b16 %v1334, %v1332
    %v1359 = vpack.c.b16 %v1337, %v1335
    %v1360 = vpack.c.b16 %v1338, %v1336
    %v1361 = vpack.c.b16 %v1341, %v1339
    %v1362 = vpack.c.b16 %v1342, %v1340
    %v1363 = vpack.c.b16 %v1345, %v1343
    %v1364 = vpack.c.b16 %v1346, %v1344
    %v1365 = vpack.c.b16 %v1349, %v1347
    %v1366 = vpack.c.b16 %v1350, %v1348
    %1383 = vmatprep.subr.bf16.mxu0 %v1352
    %1384 = vmatpush1.bf16.msra.mxu0 %v1351
    %1385 = vmatprep.subr.bf16.mxu0 %v1354
    %1386 = vmatpush1.bf16.msra.mxu0 %v1353
    %1387 = vmatprep.subr.bf16.mxu0 %v1356
    %1388 = vmatpush1.bf16.msra.mxu0 %v1355
    %1389 = vmatprep.subr.bf16.mxu0 %v1358
    %1390 = vmatpush1.bf16.msra.mxu0 %v1357
    %1391 = vmatprep.subr.bf16.mxu0 %v1360
    %1392 = vmatpush1.bf16.msra.mxu0 %v1359
    %1393 = vmatprep.subr.bf16.mxu0 %v1362
    %1394 = vmatpush1.bf16.msra.mxu0 %v1361
    %1395 = vmatprep.subr.bf16.mxu0 %v1364
    %1396 = vmatpush1.bf16.msra.mxu0 %v1363
    %1397 = vmatprep.subr.bf16.mxu0 %v1366
    %1398 = vmatpush1.bf16.msra.mxu0 %v1365
    %1399 = vmatprep.subr.bf16.mxu0 0
    %1400 = vmatpush1.bf16.msra.mxu0 0
    %1401 = vmatprep.subr.bf16.mxu0 0
    %1402 = vmatpush1.bf16.msra.mxu0 0
    %1403 = vmatprep.subr.bf16.mxu0 0
    %1404 = vmatpush1.bf16.msra.mxu0 0
    %1405 = vmatprep.subr.bf16.mxu0 0
    %1406 = vmatpush1.bf16.msra.mxu0 0
    %1407 = vmatprep.subr.bf16.mxu0 0
    %1408 = vmatpush1.bf16.msra.mxu0 0
    %1409 = vmatprep.subr.bf16.mxu0 0
    %1410 = vmatpush1.bf16.msra.mxu0 0
    %1411 = vmatprep.subr.bf16.mxu0 0
    %1412 = vmatpush1.bf16.msra.mxu0 0
    %1413 = vmatprep.subr.bf16.mxu0 0
    %1414 = vmatpush1.bf16.msra.mxu0 0
    %1415 = vmatprep.mubr.bf16.mxu0 0
    %1416 = vmatmul.mubr.bf16.gmra.mrb[0].mxu0 %v1302
    %v1417 = vpop.f32.mrb[0].mxu0
    %v1418 = vadd.f32 0.0, %v1417
    %v1419 = vpop.f32.mrb[0].mxu0
    %v1420 = vadd.f32 0.0, %v1419
    %v1421 = vpop.f32.mrb[0].mxu0
    %v1422 = vadd.f32 0.0, %v1421
    %v1423 = vpop.f32.mrb[0].mxu0
    %v1424 = vadd.f32 0.0, %v1423
    %1425 = vdwg.mxu0
    %v1426 = vsel %vm1282, %v1418, 0.0
    %v1427 = vsel %vm1283, %v1420, 0.0
    %v1428 = vsel %vm1284, %v1422, 0.0
    %v1429 = vsel %vm1285, %v1424, 0.0
    %vm1430 = vcmask 130048
    %v1432 = vsel %vm1430, %v123, 0
    %1434 = vmatprep.subr.mxu0 %v1427
    %1435 = vmatpush1.msra.mxu0 %v1426
    %1436 = vmatprep.subr.mxu0 %v1429
    %1437 = vmatpush1.msra.mxu0 %v1428
    %1438 = vmatprep.subr.mxu0 0.0
    %1439 = vmatpush1.msra.mxu0 0.0
    %1440 = vmatprep.subr.mxu0 0.0
    %1441 = vmatpush1.msra.mxu0 0.0
    %1442 = vmatprep.subr.mxu0 0.0
    %1443 = vmatpush1.msra.mxu0 0.0
    %1444 = vmatprep.subr.mxu0 0.0
    %1445 = vmatpush1.msra.mxu0 0.0
    %1446 = vmatprep.subr.mxu0 0.0
    %1447 = vmatpush1.msra.mxu0 0.0
    %1448 = vmatprep.subr.mxu0 0.0
    %1449 = vmatpush1.msra.mxu0 0.0
    %1450 = vmatprep.subr.mxu0 0.0
    %1451 = vmatpush1.msra.mxu0 0.0
    %1452 = vmatprep.subr.mxu0 0.0
    %1453 = vmatpush1.msra.mxu0 0.0
    %1454 = vmatprep.subr.mxu0 0.0
    %1455 = vmatpush1.msra.mxu0 0.0
    %1456 = vmatprep.subr.mxu0 0.0
    %1457 = vmatpush1.msra.mxu0 0.0
    %1458 = vmatprep.subr.mxu0 0.0
    %1459 = vmatpush1.msra.mxu0 0.0
    %1460 = vmatprep.subr.mxu0 0.0
    %1461 = vmatpush1.msra.mxu0 0.0
    %1462 = vmatprep.subr.mxu0 0.0
    %1463 = vmatpush1.msra.mxu0 0.0
    %1464 = vmatprep.subr.mxu0 0.0
    %1465 = vmatpush1.msra.mxu0 0.0
    %1466 = vmatprep.subr.mxu0 0.0
    %1467 = vmatpush1.msra.mxu0 0.0
    %1468 = vmatprep.subr.mxu0 0.0
    %1469 = vmatpush1.msra.mxu0 0.0
    %1470 = vmatprep.subr.mxu0 0.0
    %1471 = vmatpush1.msra.mxu0 0.0
    %1472 = vmatprep.subr.mxu0 0.0
    %1473 = vmatpush1.msra.mxu0 0.0
    %1474 = vmatprep.subr.mxu0 0.0
    %1475 = vmatpush1.msra.mxu0 0.0
    %1476 = vmatprep.subr.mxu0 0.0
    %1477 = vmatpush1.msra.mxu0 0.0
    %1478 = vmatprep.subr.mxu0 0.0
    %1479 = vmatpush1.msra.mxu0 0.0
    %1480 = vmatprep.subr.mxu0 0.0
    %1481 = vmatpush1.msra.mxu0 0.0
    %1482 = vmatprep.subr.mxu0 0.0
    %1483 = vmatpush1.msra.mxu0 0.0
    %1484 = vmatprep.subr.mxu0 0.0
    %1485 = vmatpush1.msra.mxu0 0.0
    %1486 = vmatprep.subr.mxu0 0.0
    %1487 = vmatpush1.msra.mxu0 0.0
    %1488 = vmatprep.subr.mxu0 0.0
    %1489 = vmatpush1.msra.mxu0 0.0
    %1490 = vmatprep.subr.mxu0 0.0
    %1491 = vmatpush1.msra.mxu0 0.0
    %1492 = vmatprep.subr.mxu0 0.0
    %1493 = vmatpush1.msra.mxu0 0.0
    %1494 = vmatprep.subr.mxu0 0.0
    %1495 = vmatpush1.msra.mxu0 0.0
    %1496 = vmatprep.subr.mxu0 0.0
    %1497 = vmatpush1.msra.mxu0 0.0
    %1498 = vmatprep.mubr.f32.mxu0 0.0
    %1499 = vmatmul.mubr.f32.gmra.mrb[0].mxu0 %v1432
    %v1500 = vpop.f32.mrb[0].mxu0
    %v1501 = vadd.f32 0.0, %v1500
    %v1502 = vpop.f32.mrb[0].mxu0
    %v1503 = vadd.f32 0.0, %v1502
    %1504 = vdwg.mxu0
    %v1505 = vlaneseq
    %v1506 = vshrl.u32 %v1505, 7
    %v1507 = vsub.s32 0, %v1506
    %v1508 = vrot.slane %v130, %v1507
    %1509 = vmatprep.subr.mxu0 0.0
    %1510 = vmatpush1.msra.mxu0 %v91
    %1511 = vmatprep.subr.mxu0 0.0
    %1512 = vmatpush1.msra.mxu0 %v92
    %1513 = vmatprep.subr.mxu0 0.0
    %1514 = vmatpush1.msra.mxu0 %v93
    %1515 = vmatprep.subr.mxu0 0.0
    %1516 = vmatpush1.msra.mxu0 %v94
    %1517 = vmatprep.subr.mxu0 0.0
    %1518 = vmatpush1.msra.mxu0 %v95
    %1519 = vmatprep.subr.mxu0 0.0
    %1520 = vmatpush1.msra.mxu0 %v96
    %1521 = vmatprep.subr.mxu0 0.0
    %1522 = vmatpush1.msra.mxu0 %v97
    %1523 = vmatprep.subr.mxu0 0.0
    %1524 = vmatpush1.msra.mxu0 %v98
    %1525 = vmatprep.subr.mxu0 0.0
    %1526 = vmatpush1.msra.mxu0 %v99
    %1527 = vmatprep.subr.mxu0 0.0
    %1528 = vmatpush1.msra.mxu0 %v100
    %1529 = vmatprep.subr.mxu0 0.0
    %1530 = vmatpush1.msra.mxu0 %v101
    %1531 = vmatprep.subr.mxu0 0.0
    %1532 = vmatpush1.msra.mxu0 %v102
    %1533 = vmatprep.subr.mxu0 0.0
    %1534 = vmatpush1.msra.mxu0 %v103
    %1535 = vmatprep.subr.mxu0 0.0
    %1536 = vmatpush1.msra.mxu0 %v104
    %1537 = vmatprep.subr.mxu0 0.0
    %1538 = vmatpush1.msra.mxu0 %v105
    %1539 = vmatprep.subr.mxu0 0.0
    %1540 = vmatpush1.msra.mxu0 %v106
    %1541 = vmatprep.subr.mxu0 0.0
    %1542 = vmatpush1.msra.mxu0 %v107
    %1543 = vmatprep.subr.mxu0 0.0
    %1544 = vmatpush1.msra.mxu0 %v108
    %1545 = vmatprep.subr.mxu0 0.0
    %1546 = vmatpush1.msra.mxu0 %v109
    %1547 = vmatprep.subr.mxu0 0.0
    %1548 = vmatpush1.msra.mxu0 %v110
    %1549 = vmatprep.subr.mxu0 0.0
    %1550 = vmatpush1.msra.mxu0 %v111
    %1551 = vmatprep.subr.mxu0 0.0
    %1552 = vmatpush1.msra.mxu0 %v112
    %1553 = vmatprep.subr.mxu0 0.0
    %1554 = vmatpush1.msra.mxu0 %v113
    %1555 = vmatprep.subr.mxu0 0.0
    %1556 = vmatpush1.msra.mxu0 %v114
    %1557 = vmatprep.subr.mxu0 0.0
    %1558 = vmatpush1.msra.mxu0 %v115
    %1559 = vmatprep.subr.mxu0 0.0
    %1560 = vmatpush1.msra.mxu0 %v116
    %1561 = vmatprep.subr.mxu0 0.0
    %1562 = vmatpush1.msra.mxu0 %v117
    %1563 = vmatprep.subr.mxu0 0.0
    %1564 = vmatpush1.msra.mxu0 %v118
    %1565 = vmatprep.subr.mxu0 0.0
    %1566 = vmatpush1.msra.mxu0 %v119
    %1567 = vmatprep.subr.mxu0 0.0
    %1568 = vmatpush1.msra.mxu0 %v120
    %1569 = vmatprep.subr.mxu0 0.0
    %1570 = vmatpush1.msra.mxu0 %v121
    %1571 = vmatprep.subr.mxu0 0.0
    %1572 = vmatpush1.msra.mxu0 %v122
    %1573 = vmatprep.mubr.f32.mxu0 %v1503
    %1574 = vmatmul.mubr.f32.gmra.mrb[0].mxu0 %v1501
    %v1575 = vpop.f32.mrb[0].mxu0
    %v1576 = vadd.f32 %v1508, %v1575
    %v1577 = vpop.f32.mrb[0].mxu0
    %1578 = vdwg.mxu0
    %vm1579 = vcmp.ge.s32.totalorder %v1276, 16
    %v1580 = vmax.f32 %v1576, -13.815511
    %v1581 = vmin.f32 %v1580, 13.815511
    %v1582 = vsel %vm1579, %v1581, %v1576
    %vm1583 = vcmask 254976
    %1584 = vst.msk [vmem:[%s7] sm:$0x3] %vm1583, %v1582
    %v1585 = vld [vmem:[%s3 + $0x80] sm:$0xff]
    %v1586 = vld [vmem:[%s3 + $0x88] sm:$0xff]
    %v1587 = vld [vmem:[%s3 + $0x90] sm:$0xff]
    %v1588 = vld [vmem:[%s3 + $0x98] sm:$0xff]
    %v1589 = vpack.c.bf16 %v1576, %v1576
    %v1594 = vunpack.c.l.b16 %v1585
    %v1595 = vunpack.c.h.b16 %v1585
    %v1596 = vunpack.c.l.b16 %v1586
    %v1597 = vunpack.c.h.b16 %v1586
    %v1598 = vunpack.c.l.b16 %v1587
    %v1599 = vunpack.c.h.b16 %v1587
    %v1600 = vunpack.c.l.b16 %v1588
    %v1601 = vunpack.c.h.b16 %v1588
    %v1602 = vpack.c.b16 %v1596, %v1594
    %v1603 = vpack.c.b16 %v1597, %v1595
    %v1604 = vpack.c.b16 %v1600, %v1598
    %v1605 = vpack.c.b16 %v1601, %v1599
    %v1611 = vsel %vm316, %v1589, 0
    %1613 = vmatprep.subr.bf16.mxu0 %v1603
    %1614 = vmatpush1.bf16.msra.mxu0 %v1602
    %1615 = vmatprep.subr.bf16.mxu0 %v1605
    %1616 = vmatpush1.bf16.msra.mxu0 %v1604
    %1617 = vmatprep.subr.bf16.mxu0 0
    %1618 = vmatpush1.bf16.msra.mxu0 0
    %1619 = vmatprep.subr.bf16.mxu0 0
    %1620 = vmatpush1.bf16.msra.mxu0 0
    %1621 = vmatprep.subr.bf16.mxu0 0
    %1622 = vmatpush1.bf16.msra.mxu0 0
    %1623 = vmatprep.subr.bf16.mxu0 0
    %1624 = vmatpush1.bf16.msra.mxu0 0
    %1625 = vmatprep.subr.bf16.mxu0 0
    %1626 = vmatpush1.bf16.msra.mxu0 0
    %1627 = vmatprep.subr.bf16.mxu0 0
    %1628 = vmatpush1.bf16.msra.mxu0 0
    %1629 = vmatprep.subr.bf16.mxu0 0
    %1630 = vmatpush1.bf16.msra.mxu0 0
    %1631 = vmatprep.subr.bf16.mxu0 0
    %1632 = vmatpush1.bf16.msra.mxu0 0
    %1633 = vmatprep.subr.bf16.mxu0 0
    %1634 = vmatpush1.bf16.msra.mxu0 0
    %1635 = vmatprep.subr.bf16.mxu0 0
    %1636 = vmatpush1.bf16.msra.mxu0 0
    %1637 = vmatprep.subr.bf16.mxu0 0
    %1638 = vmatpush1.bf16.msra.mxu0 0
    %1639 = vmatprep.subr.bf16.mxu0 0
    %1640 = vmatpush1.bf16.msra.mxu0 0
    %1641 = vmatprep.subr.bf16.mxu0 0
    %1642 = vmatpush1.bf16.msra.mxu0 0
    %1643 = vmatprep.subr.bf16.mxu0 0
    %1644 = vmatpush1.bf16.msra.mxu0 0
    %1645 = vmatprep.mubr.bf16.mxu0 0
    %1646 = vmatmul.mubr.bf16.gmra.mrb[0].mxu0 %v1611
    %v1647 = vpop.f32.mrb[0].mxu0
    %v1648 = vadd.f32 0.0, %v1647
    %v1649 = vpop.f32.mrb[0].mxu0
    %v1650 = vadd.f32 0.0, %v1649
    %v1651 = vpop.f32.mrb[0].mxu0
    %v1652 = vpop.f32.mrb[0].mxu0
    %1653 = vdwg.mxu0
    %vm1654 = vcmask 15360
    %v1656 = vsel %vm1654, %v124, 0
    %v1659 = vsel %vm1654, %v125, 0
    %vm1661 = vcmask 1041408
    %v1663 = vsel %vm1661, %v1648, 0
    %v1666 = vsel %vm1661, %v1650, 0
    %1668 = vmatprep.subr.mxu0 %v1666
    %1669 = vmatpush1.msra.mxu0 %v1663
    %1670 = vmatprep.subr.mxu0 0.0
    %1671 = vmatpush1.msra.mxu0 0.0
    %1672 = vmatprep.subr.mxu0 0.0
    %1673 = vmatpush1.msra.mxu0 0.0
    %1674 = vmatprep.subr.mxu0 0.0
    %1675 = vmatpush1.msra.mxu0 0.0
    %1676 = vmatprep.subr.mxu0 0.0
    %1677 = vmatpush1.msra.mxu0 0.0
    %1678 = vmatprep.subr.mxu0 0.0
    %1679 = vmatpush1.msra.mxu0 0.0
    %1680 = vmatprep.subr.mxu0 0.0
    %1681 = vmatpush1.msra.mxu0 0.0
    %1682 = vmatprep.subr.mxu0 0.0
    %1683 = vmatpush1.msra.mxu0 0.0
    %1684 = vmatprep.subr.mxu0 0.0
    %1685 = vmatpush1.msra.mxu0 0.0
    %1686 = vmatprep.subr.mxu0 0.0
    %1687 = vmatpush1.msra.mxu0 0.0
    %1688 = vmatprep.subr.mxu0 0.0
    %1689 = vmatpush1.msra.mxu0 0.0
    %1690 = vmatprep.subr.mxu0 0.0
    %1691 = vmatpush1.msra.mxu0 0.0
    %1692 = vmatprep.subr.mxu0 0.0
    %1693 = vmatpush1.msra.mxu0 0.0
    %1694 = vmatprep.subr.mxu0 0.0
    %1695 = vmatpush1.msra.mxu0 0.0
    %1696 = vmatprep.subr.mxu0 0.0
    %1697 = vmatpush1.msra.mxu0 0.0
    %1698 = vmatprep.subr.mxu0 0.0
    %1699 = vmatpush1.msra.mxu0 0.0
    %1700 = vmatprep.subr.mxu0 0.0
    %1701 = vmatpush1.msra.mxu0 0.0
    %1702 = vmatprep.subr.mxu0 0.0
    %1703 = vmatpush1.msra.mxu0 0.0
    %1704 = vmatprep.subr.mxu0 0.0
    %1705 = vmatpush1.msra.mxu0 0.0
    %1706 = vmatprep.subr.mxu0 0.0
    %1707 = vmatpush1.msra.mxu0 0.0
    %1708 = vmatprep.subr.mxu0 0.0
    %1709 = vmatpush1.msra.mxu0 0.0
    %1710 = vmatprep.subr.mxu0 0.0
    %1711 = vmatpush1.msra.mxu0 0.0
    %1712 = vmatprep.subr.mxu0 0.0
    %1713 = vmatpush1.msra.mxu0 0.0
    %1714 = vmatprep.subr.mxu0 0.0
    %1715 = vmatpush1.msra.mxu0 0.0
    %1716 = vmatprep.subr.mxu0 0.0
    %1717 = vmatpush1.msra.mxu0 0.0
    %1718 = vmatprep.subr.mxu0 0.0
    %1719 = vmatpush1.msra.mxu0 0.0
    %1720 = vmatprep.subr.mxu0 0.0
    %1721 = vmatpush1.msra.mxu0 0.0
    %1722 = vmatprep.subr.mxu0 0.0
    %1723 = vmatpush1.msra.mxu0 0.0
    %1724 = vmatprep.subr.mxu0 0.0
    %1725 = vmatpush1.msra.mxu0 0.0
    %1726 = vmatprep.subr.mxu0 0.0
    %1727 = vmatpush1.msra.mxu0 0.0
    %1728 = vmatprep.subr.mxu0 0.0
    %1729 = vmatpush1.msra.mxu0 0.0
    %1730 = vmatprep.subr.mxu0 0.0
    %1731 = vmatpush1.msra.mxu0 0.0
    %1732 = vmatprep.mubr.f32.mxu0 0.0
    %1733 = vmatmul.mubr.f32.gmra.mrb[0].mxu0 %v1656
    %v1734 = vpop.f32.mrb[0].mxu0
    %v1735 = vadd.f32 0.0, %v1734
    %v1736 = vpop.f32.mrb[0].mxu0
    %v1737 = vadd.f32 0.0, %v1736
    %1738 = vmatprep.mubr.f32.mxu0 0.0
    %1739 = vmatmul.mubr.f32.gmra.mrb[0].mxu0 %v1659
    %v1740 = vpop.f32.mrb[0].mxu0
    %v1741 = vadd.f32 0.0, %v1740
    %v1742 = vpop.f32.mrb[0].mxu0
    %v1743 = vadd.f32 0.0, %v1742
    %1744 = vdwg.mxu0
    %v1745 = vsel %vm1282, %v1735, 0.0
    %v1746 = vsel %vm1283, %v1737, 0.0
    %v1747 = vsel %vm1284, %v1741, 0.0
    %v1748 = vsel %vm1285, %v1743, 0.0
    %v1749 = vld [vmem:[#allocation2] sm:$0xf]
    %v1750 = vld [vmem:[#allocation2 + $0x4] sm:$0xf]
    %v1751 = vld [vmem:[#allocation2 + $0x8] sm:$0xf]
    %v1752 = vld [vmem:[#allocation2 + $0xc] sm:$0xf]
    %v1753 = vld [vmem:[#allocation2 + $0x10] sm:$0xf]
    %v1754 = vld [vmem:[#allocation2 + $0x14] sm:$0xf]
    %v1755 = vld [vmem:[#allocation2 + $0x18] sm:$0xf]
    %v1756 = vld [vmem:[#allocation2 + $0x1c] sm:$0xf]
    %v1757 = vld [vmem:[#allocation2 + $0x20] sm:$0xf]
    %v1758 = vld [vmem:[#allocation2 + $0x24] sm:$0xf]
    %v1759 = vld [vmem:[#allocation2 + $0x28] sm:$0xf]
    %v1760 = vld [vmem:[#allocation2 + $0x2c] sm:$0xf]
    %v1761 = vld [vmem:[#allocation2 + $0x30] sm:$0xf]
    %v1762 = vld [vmem:[#allocation2 + $0x34] sm:$0xf]
    %v1763 = vld [vmem:[#allocation2 + $0x38] sm:$0xf]
    %v1764 = vld [vmem:[#allocation2 + $0x3c] sm:$0xf]
    %v1765 = vld [vmem:[#allocation2 + $0x40] sm:$0xf]
    %v1766 = vld [vmem:[#allocation2 + $0x44] sm:$0xf]
    %v1767 = vld [vmem:[#allocation2 + $0x48] sm:$0xf]
    %v1768 = vld [vmem:[#allocation2 + $0x4c] sm:$0xf]
    %v1769 = vld [vmem:[#allocation2 + $0x50] sm:$0xf]
    %v1770 = vld [vmem:[#allocation2 + $0x54] sm:$0xf]
    %v1771 = vld [vmem:[#allocation2 + $0x58] sm:$0xf]
    %v1772 = vld [vmem:[#allocation2 + $0x5c] sm:$0xf]
    %v1773 = vld [vmem:[#allocation2 + $0x60] sm:$0xf]
    %v1774 = vld [vmem:[#allocation2 + $0x64] sm:$0xf]
    %v1775 = vld [vmem:[#allocation2 + $0x68] sm:$0xf]
    %v1776 = vld [vmem:[#allocation2 + $0x6c] sm:$0xf]
    %v1777 = vld [vmem:[#allocation2 + $0x70] sm:$0xf]
    %v1778 = vld [vmem:[#allocation2 + $0x74] sm:$0xf]
    %v1779 = vld [vmem:[#allocation2 + $0x78] sm:$0xf]
    %v1780 = vld [vmem:[#allocation2 + $0x7c] sm:$0xf]
    %v1781 = vpack.c.bf16 %v1747, %v1745
    %v1782 = vpack.c.bf16 %v1748, %v1746
    %v1815 = vunpack.c.l.b16 %v1749
    %v1816 = vunpack.c.l.b16 %v1750
    %v1817 = vunpack.c.l.b16 %v1751
    %v1818 = vunpack.c.l.b16 %v1752
    %v1819 = vunpack.c.l.b16 %v1753
    %v1820 = vunpack.c.l.b16 %v1754
    %v1821 = vunpack.c.l.b16 %v1755
    %v1822 = vunpack.c.l.b16 %v1756
    %v1823 = vunpack.c.l.b16 %v1757
    %v1824 = vunpack.c.l.b16 %v1758
    %v1825 = vunpack.c.l.b16 %v1759
    %v1826 = vunpack.c.l.b16 %v1760
    %v1827 = vunpack.c.l.b16 %v1761
    %v1828 = vunpack.c.l.b16 %v1762
    %v1829 = vunpack.c.l.b16 %v1763
    %v1830 = vunpack.c.l.b16 %v1764
    %v1831 = vunpack.c.l.b16 %v1765
    %v1832 = vunpack.c.l.b16 %v1766
    %v1833 = vunpack.c.l.b16 %v1767
    %v1834 = vunpack.c.l.b16 %v1768
    %v1835 = vunpack.c.l.b16 %v1769
    %v1836 = vunpack.c.l.b16 %v1770
    %v1837 = vunpack.c.l.b16 %v1771
    %v1838 = vunpack.c.l.b16 %v1772
    %v1839 = vunpack.c.l.b16 %v1773
    %v1840 = vunpack.c.l.b16 %v1774
    %v1841 = vunpack.c.l.b16 %v1775
    %v1842 = vunpack.c.l.b16 %v1776
    %v1843 = vunpack.c.l.b16 %v1777
    %v1844 = vunpack.c.l.b16 %v1778
    %v1845 = vunpack.c.l.b16 %v1779
    %v1846 = vunpack.c.l.b16 %v1780
    %v1847 = vpack.c.b16 %v1816, %v1815
    %v1848 = vpack.c.b16 %v1818, %v1817
    %v1849 = vpack.c.b16 %v1820, %v1819
    %v1850 = vpack.c.b16 %v1822, %v1821
    %v1851 = vpack.c.b16 %v1824, %v1823
    %v1852 = vpack.c.b16 %v1826, %v1825
    %v1853 = vpack.c.b16 %v1828, %v1827
    %v1854 = vpack.c.b16 %v1830, %v1829
    %v1855 = vpack.c.b16 %v1832, %v1831
    %v1856 = vpack.c.b16 %v1834, %v1833
    %v1857 = vpack.c.b16 %v1836, %v1835
    %v1858 = vpack.c.b16 %v1838, %v1837
    %v1859 = vpack.c.b16 %v1840, %v1839
    %v1860 = vpack.c.b16 %v1842, %v1841
    %v1861 = vpack.c.b16 %v1844, %v1843
    %v1862 = vpack.c.b16 %v1846, %v1845
    %1879 = vmatprep.subr.bf16.mxu0 0
    %1880 = vmatpush1.bf16.msra.mxu0 %v1847
    %1881 = vmatprep.subr.bf16.mxu0 0
    %1882 = vmatpush1.bf16.msra.mxu0 %v1848
    %1883 = vmatprep.subr.bf16.mxu0 0
    %1884 = vmatpush1.bf16.msra.mxu0 %v1849
    %1885 = vmatprep.subr.bf16.mxu0 0
    %1886 = vmatpush1.bf16.msra.mxu0 %v1850
    %1887 = vmatprep.subr.bf16.mxu0 0
    %1888 = vmatpush1.bf16.msra.mxu0 %v1851
    %1889 = vmatprep.subr.bf16.mxu0 0
    %1890 = vmatpush1.bf16.msra.mxu0 %v1852
    %1891 = vmatprep.subr.bf16.mxu0 0
    %1892 = vmatpush1.bf16.msra.mxu0 %v1853
    %1893 = vmatprep.subr.bf16.mxu0 0
    %1894 = vmatpush1.bf16.msra.mxu0 %v1854
    %1895 = vmatprep.subr.bf16.mxu0 0
    %1896 = vmatpush1.bf16.msra.mxu0 %v1855
    %1897 = vmatprep.subr.bf16.mxu0 0
    %1898 = vmatpush1.bf16.msra.mxu0 %v1856
    %1899 = vmatprep.subr.bf16.mxu0 0
    %1900 = vmatpush1.bf16.msra.mxu0 %v1857
    %1901 = vmatprep.subr.bf16.mxu0 0
    %1902 = vmatpush1.bf16.msra.mxu0 %v1858
    %1903 = vmatprep.subr.bf16.mxu0 0
    %1904 = vmatpush1.bf16.msra.mxu0 %v1859
    %1905 = vmatprep.subr.bf16.mxu0 0
    %1906 = vmatpush1.bf16.msra.mxu0 %v1860
    %1907 = vmatprep.subr.bf16.mxu0 0
    %1908 = vmatpush1.bf16.msra.mxu0 %v1861
    %1909 = vmatprep.subr.bf16.mxu0 0
    %1910 = vmatpush1.bf16.msra.mxu0 %v1862
    %1911 = vmatprep.mubr.bf16.mxu0 %v1782
    %1912 = vmatmul.mubr.bf16.gmra.mrb[0].mxu0 %v1781
    %v1913 = vpop.f32.mrb[0].mxu0
    %v1914 = vadd.f32 %v131, %v1913
    %v1915 = vpop.f32.mrb[0].mxu0
    %v1916 = vpop.f32.mrb[0].mxu0
    %v1917 = vadd.f32 %v132, %v1916
    %v1918 = vpop.f32.mrb[0].mxu0
    %1919 = vdwg.mxu0
    %vm1920 = vcmp.ge.f32.partialorder %v1914, 0.0
    %vm1921 = vcmp.ge.f32.partialorder %v1917, 0.0
    %v1922 = vmul.f32 %v1914, 0.01
    %v1923 = vmul.f32 %v1917, 0.01
    %v1924 = vsel %vm1920, %v1914, %v1922
    %v1925 = vsel %vm1921, %v1917, %v1923
    %v1926 = vld [vmem:[%s1 + $0x100] sm:$0xff]
    %v1927 = vld [vmem:[%s1 + $0x108] sm:$0xff]
    %v1928 = vld [vmem:[%s1 + $0x110] sm:$0xff]
    %v1929 = vld [vmem:[%s1 + $0x118] sm:$0xff]
    %v1930 = vld [vmem:[%s1 + $0x120] sm:$0xff]
    %v1931 = vld [vmem:[%s1 + $0x128] sm:$0xff]
    %v1932 = vld [vmem:[%s1 + $0x130] sm:$0xff]
    %v1933 = vld [vmem:[%s1 + $0x138] sm:$0xff]
    %v1934 = vld [vmem:[%s1 + $0x140] sm:$0xff]
    %v1935 = vld [vmem:[%s1 + $0x148] sm:$0xff]
    %v1936 = vld [vmem:[%s1 + $0x150] sm:$0xff]
    %v1937 = vld [vmem:[%s1 + $0x158] sm:$0xff]
    %v1938 = vld [vmem:[%s1 + $0x160] sm:$0xff]
    %v1939 = vld [vmem:[%s1 + $0x168] sm:$0xff]
    %v1940 = vld [vmem:[%s1 + $0x170] sm:$0xff]
    %v1941 = vld [vmem:[%s1 + $0x178] sm:$0xff]
    %v1942 = vld [vmem:[%s1 + $0x180] sm:$0xff]
    %v1943 = vld [vmem:[%s1 + $0x188] sm:$0xff]
    %v1944 = vld [vmem:[%s1 + $0x190] sm:$0xff]
    %v1945 = vld [vmem:[%s1 + $0x198] sm:$0xff]
    %v1946 = vld [vmem:[%s1 + $0x1a0] sm:$0xff]
    %v1947 = vld [vmem:[%s1 + $0x1a8] sm:$0xff]
    %v1948 = vld [vmem:[%s1 + $0x1b0] sm:$0xff]
    %v1949 = vld [vmem:[%s1 + $0x1b8] sm:$0xff]
    %v1950 = vld [vmem:[%s1 + $0x1c0] sm:$0xff]
    %v1951 = vld [vmem:[%s1 + $0x1c8] sm:$0xff]
    %v1952 = vld [vmem:[%s1 + $0x1d0] sm:$0xff]
    %v1953 = vld [vmem:[%s1 + $0x1d8] sm:$0xff]
    %v1954 = vld [vmem:[%s1 + $0x1e0] sm:$0xff]
    %v1955 = vld [vmem:[%s1 + $0x1e8] sm:$0xff]
    %v1956 = vld [vmem:[%s1 + $0x1f0] sm:$0xff]
    %v1957 = vld [vmem:[%s1 + $0x1f8] sm:$0xff]
    %v1958 = vpack.c.bf16 %v1925, %v1924
    %v1991 = vunpack.c.l.b16 %v1926
    %v1992 = vunpack.c.h.b16 %v1926
    %v1993 = vunpack.c.l.b16 %v1927
    %v1994 = vunpack.c.h.b16 %v1927
    %v1995 = vunpack.c.l.b16 %v1928
    %v1996 = vunpack.c.h.b16 %v1928
    %v1997 = vunpack.c.l.b16 %v1929
    %v1998 = vunpack.c.h.b16 %v1929
    %v1999 = vunpack.c.l.b16 %v1930
    %v2000 = vunpack.c.h.b16 %v1930
    %v2001 = vunpack.c.l.b16 %v1931
    %v2002 = vunpack.c.h.b16 %v1931
    %v2003 = vunpack.c.l.b16 %v1932
    %v2004 = vunpack.c.h.b16 %v1932
    %v2005 = vunpack.c.l.b16 %v1933
    %v2006 = vunpack.c.h.b16 %v1933
    %v2007 = vunpack.c.l.b16 %v1934
    %v2008 = vunpack.c.h.b16 %v1934
    %v2009 = vunpack.c.l.b16 %v1935
    %v2010 = vunpack.c.h.b16 %v1935
    %v2011 = vunpack.c.l.b16 %v1936
    %v2012 = vunpack.c.h.b16 %v1936
    %v2013 = vunpack.c.l.b16 %v1937
    %v2014 = vunpack.c.h.b16 %v1937
    %v2015 = vunpack.c.l.b16 %v1938
    %v2016 = vunpack.c.h.b16 %v1938
    %v2017 = vunpack.c.l.b16 %v1939
    %v2018 = vunpack.c.h.b16 %v1939
    %v2019 = vunpack.c.l.b16 %v1940
    %v2020 = vunpack.c.h.b16 %v1940
    %v2021 = vunpack.c.l.b16 %v1941
    %v2022 = vunpack.c.h.b16 %v1941
    %v2023 = vunpack.c.l.b16 %v1942
    %v2024 = vunpack.c.h.b16 %v1942
    %v2025 = vunpack.c.l.b16 %v1943
    %v2026 = vunpack.c.h.b16 %v1943
    %v2027 = vunpack.c.l.b16 %v1944
    %v2028 = vunpack.c.h.b16 %v1944
    %v2029 = vunpack.c.l.b16 %v1945
    %v2030 = vunpack.c.h.b16 %v1945
    %v2031 = vunpack.c.l.b16 %v1946
    %v2032 = vunpack.c.h.b16 %v1946
    %v2033 = vunpack.c.l.b16 %v1947
    %v2034 = vunpack.c.h.b16 %v1947
    %v2035 = vunpack.c.l.b16 %v1948
    %v2036 = vunpack.c.h.b16 %v1948
    %v2037 = vunpack.c.l.b16 %v1949
    %v2038 = vunpack.c.h.b16 %v1949
    %v2039 = vunpack.c.l.b16 %v1950
    %v2040 = vunpack.c.h.b16 %v1950
    %v2041 = vunpack.c.l.b16 %v1951
    %v2042 = vunpack.c.h.b16 %v1951
    %v2043 = vunpack.c.l.b16 %v1952
    %v2044 = vunpack.c.h.b16 %v1952
    %v2045 = vunpack.c.l.b16 %v1953
    %v2046 = vunpack.c.h.b16 %v1953
    %v2047 = vunpack.c.l.b16 %v1954
    %v2048 = vunpack.c.h.b16 %v1954
    %v2049 = vunpack.c.l.b16 %v1955
    %v2050 = vunpack.c.h.b16 %v1955
    %v2051 = vunpack.c.l.b16 %v1956
    %v2052 = vunpack.c.h.b16 %v1956
    %v2053 = vunpack.c.l.b16 %v1957
    %v2054 = vunpack.c.h.b16 %v1957
    %v2055 = vpack.c.b16 %v1995, %v1991
    %v2056 = vpack.c.b16 %v1996, %v1992
    %v2057 = vpack.c.b16 %v1997, %v1993
    %v2058 = vpack.c.b16 %v1998, %v1994
    %v2059 = vpack.c.b16 %v2003, %v1999
    %v2060 = vpack.c.b16 %v2004, %v2000
    %v2061 = vpack.c.b16 %v2005, %v2001
    %v2062 = vpack.c.b16 %v2006, %v2002
    %v2063 = vpack.c.b16 %v2011, %v2007
    %v2064 = vpack.c.b16 %v2012, %v2008
    %v2065 = vpack.c.b16 %v2013, %v2009
    %v2066 = vpack.c.b16 %v2014, %v2010
    %v2067 = vpack.c.b16 %v2019, %v2015
    %v2068 = vpack.c.b16 %v2020, %v2016
    %v2069 = vpack.c.b16 %v2021, %v2017
    %v2070 = vpack.c.b16 %v2022, %v2018
    %v2071 = vpack.c.b16 %v2027, %v2023
    %v2072 = vpack.c.b16 %v2028, %v2024
    %v2073 = vpack.c.b16 %v2029, %v2025
    %v2074 = vpack.c.b16 %v2030, %v2026
    %v2075 = vpack.c.b16 %v2035, %v2031
    %v2076 = vpack.c.b16 %v2036, %v2032
    %v2077 = vpack.c.b16 %v2037, %v2033
    %v2078 = vpack.c.b16 %v2038, %v2034
    %v2079 = vpack.c.b16 %v2043, %v2039
    %v2080 = vpack.c.b16 %v2044, %v2040
    %v2081 = vpack.c.b16 %v2045, %v2041
    %v2082 = vpack.c.b16 %v2046, %v2042
    %v2083 = vpack.c.b16 %v2051, %v2047
    %v2084 = vpack.c.b16 %v2052, %v2048
    %v2085 = vpack.c.b16 %v2053, %v2049
    %v2086 = vpack.c.b16 %v2054, %v2050
    %2119 = vmatprep.subr.bf16.mxu0 %v2056
    %2120 = vmatpush1.bf16.msra.mxu0 %v2055
    %2121 = vmatprep.subr.bf16.mxu0 %v2060
    %2122 = vmatpush1.bf16.msra.mxu0 %v2059
    %2123 = vmatprep.subr.bf16.mxu0 %v2064
    %2124 = vmatpush1.bf16.msra.mxu0 %v2063
    %2125 = vmatprep.subr.bf16.mxu0 %v2068
    %2126 = vmatpush1.bf16.msra.mxu0 %v2067
    %2127 = vmatprep.subr.bf16.mxu0 %v2072
    %2128 = vmatpush1.bf16.msra.mxu0 %v2071
    %2129 = vmatprep.subr.bf16.mxu0 %v2076
    %2130 = vmatpush1.bf16.msra.mxu0 %v2075
    %2131 = vmatprep.subr.bf16.mxu0 %v2080
    %2132 = vmatpush1.bf16.msra.mxu0 %v2079
    %2133 = vmatprep.subr.bf16.mxu0 %v2084
    %2134 = vmatpush1.bf16.msra.mxu0 %v2083
    %2135 = vmatprep.subr.bf16.mxu0 0
    %2136 = vmatpush1.bf16.msra.mxu0 0
    %2137 = vmatprep.subr.bf16.mxu0 0
    %2138 = vmatpush1.bf16.msra.mxu0 0
    %2139 = vmatprep.subr.bf16.mxu0 0
    %2140 = vmatpush1.bf16.msra.mxu0 0
    %2141 = vmatprep.subr.bf16.mxu0 0
    %2142 = vmatpush1.bf16.msra.mxu0 0
    %2143 = vmatprep.subr.bf16.mxu0 0
    %2144 = vmatpush1.bf16.msra.mxu0 0
    %2145 = vmatprep.subr.bf16.mxu0 0
    %2146 = vmatpush1.bf16.msra.mxu0 0
    %2147 = vmatprep.subr.bf16.mxu0 0
    %2148 = vmatpush1.bf16.msra.mxu0 0
    %2149 = vmatprep.subr.bf16.mxu0 0
    %2150 = vmatpush1.bf16.msra.mxu0 0
    %2151 = vmatprep.mubr.bf16.mxu0 0
    %2152 = vmatmul.mubr.bf16.gmra.mrb[0].mxu0 %v1958
    %v2153 = vpop.f32.mrb[0].mxu0
    %v2154 = vadd.f32 0.0, %v2153
    %v2155 = vpop.f32.mrb[0].mxu0
    %v2156 = vadd.f32 0.0, %v2155
    %v2157 = vpop.f32.mrb[0].mxu0
    %v2158 = vadd.f32 0.0, %v2157
    %v2159 = vpop.f32.mrb[0].mxu0
    %v2160 = vadd.f32 0.0, %v2159
    %2161 = vdwg.mxu0
    %2162 = vmatprep.subr.bf16.mxu0 %v2058
    %2163 = vmatpush1.bf16.msra.mxu0 %v2057
    %2164 = vmatprep.subr.bf16.mxu0 %v2062
    %2165 = vmatpush1.bf16.msra.mxu0 %v2061
    %2166 = vmatprep.subr.bf16.mxu0 %v2066
    %2167 = vmatpush1.bf16.msra.mxu0 %v2065
    %2168 = vmatprep.subr.bf16.mxu0 %v2070
    %2169 = vmatpush1.bf16.msra.mxu0 %v2069
    %2170 = vmatprep.subr.bf16.mxu0 %v2074
    %2171 = vmatpush1.bf16.msra.mxu0 %v2073
    %2172 = vmatprep.subr.bf16.mxu0 %v2078
    %2173 = vmatpush1.bf16.msra.mxu0 %v2077
    %2174 = vmatprep.subr.bf16.mxu0 %v2082
    %2175 = vmatpush1.bf16.msra.mxu0 %v2081
    %2176 = vmatprep.subr.bf16.mxu0 %v2086
    %2177 = vmatpush1.bf16.msra.mxu0 %v2085
    %2178 = vmatprep.subr.bf16.mxu0 0
    %2179 = vmatpush1.bf16.msra.mxu0 0
    %2180 = vmatprep.subr.bf16.mxu0 0
    %2181 = vmatpush1.bf16.msra.mxu0 0
    %2182 = vmatprep.subr.bf16.mxu0 0
    %2183 = vmatpush1.bf16.msra.mxu0 0
    %2184 = vmatprep.subr.bf16.mxu0 0
    %2185 = vmatpush1.bf16.msra.mxu0 0
    %2186 = vmatprep.subr.bf16.mxu0 0
    %2187 = vmatpush1.bf16.msra.mxu0 0
    %2188 = vmatprep.subr.bf16.mxu0 0
    %2189 = vmatpush1.bf16.msra.mxu0 0
    %2190 = vmatprep.subr.bf16.mxu0 0
    %2191 = vmatpush1.bf16.msra.mxu0 0
    %2192 = vmatprep.subr.bf16.mxu0 0
    %2193 = vmatpush1.bf16.msra.mxu0 0
    %2194 = vmatprep.mubr.bf16.mxu0 0
    %2195 = vmatmul.mubr.bf16.gmra.mrb[0].mxu0 %v1958
    %v2196 = vpop.f32.mrb[0].mxu0
    %v2197 = vadd.f32 0.0, %v2196
    %v2198 = vpop.f32.mrb[0].mxu0
    %v2199 = vadd.f32 0.0, %v2198
    %v2200 = vpop.f32.mrb[0].mxu0
    %v2201 = vadd.f32 0.0, %v2200
    %v2202 = vpop.f32.mrb[0].mxu0
    %v2203 = vadd.f32 0.0, %v2202
    %2204 = vdwg.mxu0
    %v2206 = vsel %vm1430, %v67, 0
    %v2209 = vsel %vm1430, %v68, 0
    %v2212 = vsel %vm1430, %v69, 0
    %v2215 = vsel %vm1430, %v70, 0
    %2217 = vmatprep.subr.mxu0 0.0
    %2218 = vmatpush1.msra.mxu0 %v2156
    %2219 = vmatprep.subr.mxu0 0.0
    %2220 = vmatpush1.msra.mxu0 %v2160
    %2221 = vmatprep.subr.mxu0 0.0
    %2222 = vmatpush1.msra.mxu0 0.0
    %2223 = vmatprep.subr.mxu0 0.0
    %2224 = vmatpush1.msra.mxu0 0.0
    %2225 = vmatprep.subr.mxu0 0.0
    %2226 = vmatpush1.msra.mxu0 0.0
    %2227 = vmatprep.subr.mxu0 0.0
    %2228 = vmatpush1.msra.mxu0 0.0
    %2229 = vmatprep.subr.mxu0 0.0
    %2230 = vmatpush1.msra.mxu0 0.0
    %2231 = vmatprep.subr.mxu0 0.0
    %2232 = vmatpush1.msra.mxu0 0.0
    %2233 = vmatprep.subr.mxu0 0.0
    %2234 = vmatpush1.msra.mxu0 0.0
    %2235 = vmatprep.subr.mxu0 0.0
    %2236 = vmatpush1.msra.mxu0 0.0
    %2237 = vmatprep.subr.mxu0 0.0
    %2238 = vmatpush1.msra.mxu0 0.0
    %2239 = vmatprep.subr.mxu0 0.0
    %2240 = vmatpush1.msra.mxu0 0.0
    %2241 = vmatprep.subr.mxu0 0.0
    %2242 = vmatpush1.msra.mxu0 0.0
    %2243 = vmatprep.subr.mxu0 0.0
    %2244 = vmatpush1.msra.mxu0 0.0
    %2245 = vmatprep.subr.mxu0 0.0
    %2246 = vmatpush1.msra.mxu0 0.0
    %2247 = vmatprep.subr.mxu0 0.0
    %2248 = vmatpush1.msra.mxu0 0.0
    %2249 = vmatprep.subr.mxu0 0.0
    %2250 = vmatpush1.msra.mxu0 0.0
    %2251 = vmatprep.subr.mxu0 0.0
    %2252 = vmatpush1.msra.mxu0 0.0
    %2253 = vmatprep.subr.mxu0 0.0
    %2254 = vmatpush1.msra.mxu0 0.0
    %2255 = vmatprep.subr.mxu0 0.0
    %2256 = vmatpush1.msra.mxu0 0.0
    %2257 = vmatprep.subr.mxu0 0.0
    %2258 = vmatpush1.msra.mxu0 0.0
    %2259 = vmatprep.subr.mxu0 0.0
    %2260 = vmatpush1.msra.mxu0 0.0
    %2261 = vmatprep.subr.mxu0 0.0
    %2262 = vmatpush1.msra.mxu0 0.0
    %2263 = vmatprep.subr.mxu0 0.0
    %2264 = vmatpush1.msra.mxu0 0.0
    %2265 = vmatprep.subr.mxu0 0.0
    %2266 = vmatpush1.msra.mxu0 0.0
    %2267 = vmatprep.subr.mxu0 0.0
    %2268 = vmatpush1.msra.mxu0 0.0
    %2269 = vmatprep.subr.mxu0 0.0
    %2270 = vmatpush1.msra.mxu0 0.0
    %2271 = vmatprep.subr.mxu0 0.0
    %2272 = vmatpush1.msra.mxu0 0.0
    %2273 = vmatprep.subr.mxu0 0.0
    %2274 = vmatpush1.msra.mxu0 0.0
    %2275 = vmatprep.subr.mxu0 0.0
    %2276 = vmatpush1.msra.mxu0 0.0
    %2277 = vmatprep.subr.mxu0 0.0
    %2278 = vmatpush1.msra.mxu0 0.0
    %2279 = vmatprep.subr.mxu0 0.0
    %2280 = vmatpush1.msra.mxu0 0.0
    %2281 = vmatprep.mubr.f32.mxu0 0.0
    %2282 = vmatmul.mubr.f32.gmra.mrb[0].mxu0 %v2206
    %v2283 = vpop.f32.mrb[0].mxu0
    %v2284 = vadd.f32 0.0, %v2283
    %v2285 = vpop.f32.mrb[0].mxu0
    %2286 = vmatprep.mubr.f32.mxu0 0.0
    %2287 = vmatmul.mubr.f32.gmra.mrb[0].mxu0 %v2209
    %v2288 = vpop.f32.mrb[0].mxu0
    %v2289 = vadd.f32 0.0, %v2288
    %v2290 = vpop.f32.mrb[0].mxu0
    %2291 = vmatprep.mubr.f32.mxu0 0.0
    %2292 = vmatmul.mubr.f32.gmra.mrb[0].mxu0 %v2212
    %v2293 = vpop.f32.mrb[0].mxu0
    %v2294 = vadd.f32 0.0, %v2293
    %v2295 = vpop.f32.mrb[0].mxu0
    %2296 = vmatprep.mubr.f32.mxu0 0.0
    %2297 = vmatmul.mubr.f32.gmra.mrb[0].mxu0 %v2215
    %v2298 = vpop.f32.mrb[0].mxu0
    %v2299 = vadd.f32 0.0, %v2298
    %v2300 = vpop.f32.mrb[0].mxu0
    %2301 = vdwg.mxu0
    %v2303 = vsel %vm1430, %v63, 0
    %v2306 = vsel %vm1430, %v64, 0
    %v2309 = vsel %vm1430, %v65, 0
    %v2312 = vsel %vm1430, %v66, 0
    %2314 = vmatprep.subr.mxu0 0.0
    %2315 = vmatpush1.msra.mxu0 %v2154
    %2316 = vmatprep.subr.mxu0 0.0
    %2317 = vmatpush1.msra.mxu0 %v2158
    %2318 = vmatprep.subr.mxu0 0.0
    %2319 = vmatpush1.msra.mxu0 0.0
    %2320 = vmatprep.subr.mxu0 0.0
    %2321 = vmatpush1.msra.mxu0 0.0
    %2322 = vmatprep.subr.mxu0 0.0
    %2323 = vmatpush1.msra.mxu0 0.0
    %2324 = vmatprep.subr.mxu0 0.0
    %2325 = vmatpush1.msra.mxu0 0.0
    %2326 = vmatprep.subr.mxu0 0.0
    %2327 = vmatpush1.msra.mxu0 0.0
    %2328 = vmatprep.subr.mxu0 0.0
    %2329 = vmatpush1.msra.mxu0 0.0
    %2330 = vmatprep.subr.mxu0 0.0
    %2331 = vmatpush1.msra.mxu0 0.0
    %2332 = vmatprep.subr.mxu0 0.0
    %2333 = vmatpush1.msra.mxu0 0.0
    %2334 = vmatprep.subr.mxu0 0.0
    %2335 = vmatpush1.msra.mxu0 0.0
    %2336 = vmatprep.subr.mxu0 0.0
    %2337 = vmatpush1.msra.mxu0 0.0
    %2338 = vmatprep.subr.mxu0 0.0
    %2339 = vmatpush1.msra.mxu0 0.0
    %2340 = vmatprep.subr.mxu0 0.0
    %2341 = vmatpush1.msra.mxu0 0.0
    %2342 = vmatprep.subr.mxu0 0.0
    %2343 = vmatpush1.msra.mxu0 0.0
    %2344 = vmatprep.subr.mxu0 0.0
    %2345 = vmatpush1.msra.mxu0 0.0
    %2346 = vmatprep.subr.mxu0 0.0
    %2347 = vmatpush1.msra.mxu0 0.0
    %2348 = vmatprep.subr.mxu0 0.0
    %2349 = vmatpush1.msra.mxu0 0.0
    %2350 = vmatprep.subr.mxu0 0.0
    %2351 = vmatpush1.msra.mxu0 0.0
    %2352 = vmatprep.subr.mxu0 0.0
    %2353 = vmatpush1.msra.mxu0 0.0
    %2354 = vmatprep.subr.mxu0 0.0
    %2355 = vmatpush1.msra.mxu0 0.0
    %2356 = vmatprep.subr.mxu0 0.0
    %2357 = vmatpush1.msra.mxu0 0.0
    %2358 = vmatprep.subr.mxu0 0.0
    %2359 = vmatpush1.msra.mxu0 0.0
    %2360 = vmatprep.subr.mxu0 0.0
    %2361 = vmatpush1.msra.mxu0 0.0
    %2362 = vmatprep.subr.mxu0 0.0
    %2363 = vmatpush1.msra.mxu0 0.0
    %2364 = vmatprep.subr.mxu0 0.0
    %2365 = vmatpush1.msra.mxu0 0.0
    %2366 = vmatprep.subr.mxu0 0.0
    %2367 = vmatpush1.msra.mxu0 0.0
    %2368 = vmatprep.subr.mxu0 0.0
    %2369 = vmatpush1.msra.mxu0 0.0
    %2370 = vmatprep.subr.mxu0 0.0
    %2371 = vmatpush1.msra.mxu0 0.0
    %2372 = vmatprep.subr.mxu0 0.0
    %2373 = vmatpush1.msra.mxu0 0.0
    %2374 = vmatprep.subr.mxu0 0.0
    %2375 = vmatpush1.msra.mxu0 0.0
    %2376 = vmatprep.subr.mxu0 0.0
    %2377 = vmatpush1.msra.mxu0 0.0
    %2378 = vmatprep.mubr.f32.mxu0 0.0
    %2379 = vmatmul.mubr.f32.gmra.mrb[0].mxu0 %v2303
    %v2380 = vpop.f32.mrb[0].mxu0
    %v2381 = vadd.f32 %v2284, %v2380
    %v2382 = vpop.f32.mrb[0].mxu0
    %2383 = vmatprep.mubr.f32.mxu0 0.0
    %2384 = vmatmul.mubr.f32.gmra.mrb[0].mxu0 %v2306
    %v2385 = vpop.f32.mrb[0].mxu0
    %v2386 = vadd.f32 %v2289, %v2385
    %v2387 = vpop.f32.mrb[0].mxu0
    %2388 = vmatprep.mubr.f32.mxu0 0.0
    %2389 = vmatmul.mubr.f32.gmra.mrb[0].mxu0 %v2309
    %v2390 = vpop.f32.mrb[0].mxu0
    %v2391 = vadd.f32 %v2294, %v2390
    %v2392 = vpop.f32.mrb[0].mxu0
    %2393 = vmatprep.mubr.f32.mxu0 0.0
    %2394 = vmatmul.mubr.f32.gmra.mrb[0].mxu0 %v2312
    %v2395 = vpop.f32.mrb[0].mxu0
    %v2396 = vadd.f32 %v2299, %v2395
    %v2397 = vpop.f32.mrb[0].mxu0
    %2398 = vdwg.mxu0
    %v2400 = vsel %vm1430, %v71, 0
    %v2403 = vsel %vm1430, %v72, 0
    %v2406 = vsel %vm1430, %v73, 0
    %v2409 = vsel %vm1430, %v74, 0
    %2411 = vmatprep.subr.mxu0 0.0
    %2412 = vmatpush1.msra.mxu0 %v2197
    %2413 = vmatprep.subr.mxu0 0.0
    %2414 = vmatpush1.msra.mxu0 %v2201
    %2415 = vmatprep.subr.mxu0 0.0
    %2416 = vmatpush1.msra.mxu0 0.0
    %2417 = vmatprep.subr.mxu0 0.0
    %2418 = vmatpush1.msra.mxu0 0.0
    %2419 = vmatprep.subr.mxu0 0.0
    %2420 = vmatpush1.msra.mxu0 0.0
    %2421 = vmatprep.subr.mxu0 0.0
    %2422 = vmatpush1.msra.mxu0 0.0
    %2423 = vmatprep.subr.mxu0 0.0
    %2424 = vmatpush1.msra.mxu0 0.0
    %2425 = vmatprep.subr.mxu0 0.0
    %2426 = vmatpush1.msra.mxu0 0.0
    %2427 = vmatprep.subr.mxu0 0.0
    %2428 = vmatpush1.msra.mxu0 0.0
    %2429 = vmatprep.subr.mxu0 0.0
    %2430 = vmatpush1.msra.mxu0 0.0
    %2431 = vmatprep.subr.mxu0 0.0
    %2432 = vmatpush1.msra.mxu0 0.0
    %2433 = vmatprep.subr.mxu0 0.0
    %2434 = vmatpush1.msra.mxu0 0.0
    %2435 = vmatprep.subr.mxu0 0.0
    %2436 = vmatpush1.msra.mxu0 0.0
    %2437 = vmatprep.subr.mxu0 0.0
    %2438 = vmatpush1.msra.mxu0 0.0
    %2439 = vmatprep.subr.mxu0 0.0
    %2440 = vmatpush1.msra.mxu0 0.0
    %2441 = vmatprep.subr.mxu0 0.0
    %2442 = vmatpush1.msra.mxu0 0.0
    %2443 = vmatprep.subr.mxu0 0.0
    %2444 = vmatpush1.msra.mxu0 0.0
    %2445 = vmatprep.subr.mxu0 0.0
    %2446 = vmatpush1.msra.mxu0 0.0
    %2447 = vmatprep.subr.mxu0 0.0
    %2448 = vmatpush1.msra.mxu0 0.0
    %2449 = vmatprep.subr.mxu0 0.0
    %2450 = vmatpush1.msra.mxu0 0.0
    %2451 = vmatprep.subr.mxu0 0.0
    %2452 = vmatpush1.msra.mxu0 0.0
    %2453 = vmatprep.subr.mxu0 0.0
    %2454 = vmatpush1.msra.mxu0 0.0
    %2455 = vmatprep.subr.mxu0 0.0
    %2456 = vmatpush1.msra.mxu0 0.0
    %2457 = vmatprep.subr.mxu0 0.0
    %2458 = vmatpush1.msra.mxu0 0.0
    %2459 = vmatprep.subr.mxu0 0.0
    %2460 = vmatpush1.msra.mxu0 0.0
    %2461 = vmatprep.subr.mxu0 0.0
    %2462 = vmatpush1.msra.mxu0 0.0
    %2463 = vmatprep.subr.mxu0 0.0
    %2464 = vmatpush1.msra.mxu0 0.0
    %2465 = vmatprep.subr.mxu0 0.0
    %2466 = vmatpush1.msra.mxu0 0.0
    %2467 = vmatprep.subr.mxu0 0.0
    %2468 = vmatpush1.msra.mxu0 0.0
    %2469 = vmatprep.subr.mxu0 0.0
    %2470 = vmatpush1.msra.mxu0 0.0
    %2471 = vmatprep.subr.mxu0 0.0
    %2472 = vmatpush1.msra.mxu0 0.0
    %2473 = vmatprep.subr.mxu0 0.0
    %2474 = vmatpush1.msra.mxu0 0.0
    %2475 = vmatprep.mubr.f32.mxu0 0.0
    %2476 = vmatmul.mubr.f32.gmra.mrb[0].mxu0 %v2400
    %v2477 = vpop.f32.mrb[0].mxu0
    %v2478 = vadd.f32 0.0, %v2477
    %v2479 = vpop.f32.mrb[0].mxu0
    %2480 = vmatprep.mubr.f32.mxu0 0.0
    %2481 = vmatmul.mubr.f32.gmra.mrb[0].mxu0 %v2403
    %v2482 = vpop.f32.mrb[0].mxu0
    %v2483 = vadd.f32 0.0, %v2482
    %v2484 = vpop.f32.mrb[0].mxu0
    %2485 = vmatprep.mubr.f32.mxu0 0.0
    %2486 = vmatmul.mubr.f32.gmra.mrb[0].mxu0 %v2406
    %v2487 = vpop.f32.mrb[0].mxu0
    %v2488 = vadd.f32 0.0, %v2487
    %v2489 = vpop.f32.mrb[0].mxu0
    %2490 = vmatprep.mubr.f32.mxu0 0.0
    %2491 = vmatmul.mubr.f32.gmra.mrb[0].mxu0 %v2409
    %v2492 = vpop.f32.mrb[0].mxu0
    %v2493 = vadd.f32 0.0, %v2492
    %v2494 = vpop.f32.mrb[0].mxu0
    %2495 = vdwg.mxu0
    %v2496 = vadd.f32 %v2381, %v2478
    %v2497 = vadd.f32 %v2386, %v2483
    %v2498 = vadd.f32 %v2391, %v2488
    %v2499 = vadd.f32 %v2396, %v2493
    %v2501 = vsel %vm1430, %v75, 0
    %v2504 = vsel %vm1430, %v76, 0
    %v2507 = vsel %vm1430, %v77, 0
    %v2510 = vsel %vm1430, %v78, 0
    %2512 = vmatprep.subr.mxu0 0.0
    %2513 = vmatpush1.msra.mxu0 %v2199
    %2514 = vmatprep.subr.mxu0 0.0
    %2515 = vmatpush1.msra.mxu0 %v2203
    %2516 = vmatprep.subr.mxu0 0.0
    %2517 = vmatpush1.msra.mxu0 0.0
    %2518 = vmatprep.subr.mxu0 0.0
    %2519 = vmatpush1.msra.mxu0 0.0
    %2520 = vmatprep.subr.mxu0 0.0
    %2521 = vmatpush1.msra.mxu0 0.0
    %2522 = vmatprep.subr.mxu0 0.0
    %2523 = vmatpush1.msra.mxu0 0.0
    %2524 = vmatprep.subr.mxu0 0.0
    %2525 = vmatpush1.msra.mxu0 0.0
    %2526 = vmatprep.subr.mxu0 0.0
    %2527 = vmatpush1.msra.mxu0 0.0
    %2528 = vmatprep.subr.mxu0 0.0
    %2529 = vmatpush1.msra.mxu0 0.0
    %2530 = vmatprep.subr.mxu0 0.0
    %2531 = vmatpush1.msra.mxu0 0.0
    %2532 = vmatprep.subr.mxu0 0.0
    %2533 = vmatpush1.msra.mxu0 0.0
    %2534 = vmatprep.subr.mxu0 0.0
    %2535 = vmatpush1.msra.mxu0 0.0
    %2536 = vmatprep.subr.mxu0 0.0
    %2537 = vmatpush1.msra.mxu0 0.0
    %2538 = vmatprep.subr.mxu0 0.0
    %2539 = vmatpush1.msra.mxu0 0.0
    %2540 = vmatprep.subr.mxu0 0.0
    %2541 = vmatpush1.msra.mxu0 0.0
    %2542 = vmatprep.subr.mxu0 0.0
    %2543 = vmatpush1.msra.mxu0 0.0
    %2544 = vmatprep.subr.mxu0 0.0
    %2545 = vmatpush1.msra.mxu0 0.0
    %2546 = vmatprep.subr.mxu0 0.0
    %2547 = vmatpush1.msra.mxu0 0.0
    %2548 = vmatprep.subr.mxu0 0.0
    %2549 = vmatpush1.msra.mxu0 0.0
    %2550 = vmatprep.subr.mxu0 0.0
    %2551 = vmatpush1.msra.mxu0 0.0
    %2552 = vmatprep.subr.mxu0 0.0
    %2553 = vmatpush1.msra.mxu0 0.0
    %2554 = vmatprep.subr.mxu0 0.0
    %2555 = vmatpush1.msra.mxu0 0.0
    %2556 = vmatprep.subr.mxu0 0.0
    %2557 = vmatpush1.msra.mxu0 0.0
    %2558 = vmatprep.subr.mxu0 0.0
    %2559 = vmatpush1.msra.mxu0 0.0
    %2560 = vmatprep.subr.mxu0 0.0
    %2561 = vmatpush1.msra.mxu0 0.0
    %2562 = vmatprep.subr.mxu0 0.0
    %2563 = vmatpush1.msra.mxu0 0.0
    %2564 = vmatprep.subr.mxu0 0.0
    %2565 = vmatpush1.msra.mxu0 0.0
    %2566 = vmatprep.subr.mxu0 0.0
    %2567 = vmatpush1.msra.mxu0 0.0
    %2568 = vmatprep.subr.mxu0 0.0
    %2569 = vmatpush1.msra.mxu0 0.0
    %2570 = vmatprep.subr.mxu0 0.0
    %2571 = vmatpush1.msra.mxu0 0.0
    %2572 = vmatprep.subr.mxu0 0.0
    %2573 = vmatpush1.msra.mxu0 0.0
    %2574 = vmatprep.subr.mxu0 0.0
    %2575 = vmatpush1.msra.mxu0 0.0
    %2576 = vmatprep.mubr.f32.mxu0 0.0
    %2577 = vmatmul.mubr.f32.gmra.mrb[0].mxu0 %v2501
    %v2578 = vpop.f32.mrb[0].mxu0
    %v2579 = vadd.f32 0.0, %v2578
    %v2580 = vpop.f32.mrb[0].mxu0
    %2581 = vmatprep.mubr.f32.mxu0 0.0
    %2582 = vmatmul.mubr.f32.gmra.mrb[0].mxu0 %v2504
    %v2583 = vpop.f32.mrb[0].mxu0
    %v2584 = vadd.f32 0.0, %v2583
    %v2585 = vpop.f32.mrb[0].mxu0
    %2586 = vmatprep.mubr.f32.mxu0 0.0
    %2587 = vmatmul.mubr.f32.gmra.mrb[0].mxu0 %v2507
    %v2588 = vpop.f32.mrb[0].mxu0
    %v2589 = vadd.f32 0.0, %v2588
    %v2590 = vpop.f32.mrb[0].mxu0
    %2591 = vmatprep.mubr.f32.mxu0 0.0
    %2592 = vmatmul.mubr.f32.gmra.mrb[0].mxu0 %v2510
    %v2593 = vpop.f32.mrb[0].mxu0
    %v2594 = vadd.f32 0.0, %v2593
    %v2595 = vpop.f32.mrb[0].mxu0
    %2596 = vdwg.mxu0
    %v2597 = vadd.f32 %v2496, %v2579
    %v2598 = vadd.f32 %v2497, %v2584
    %v2599 = vadd.f32 %v2498, %v2589
    %v2600 = vadd.f32 %v2499, %v2594
    %v2601 = vlaneseq
    %v2602 = vshrl.u32 %v2601, 7
    %v2603 = vsub.s32 0, %v2602
    %v2604 = vrot.slane %v128, %v2603
    %v2605 = vadd.f32 %v2597, %v2604
    %v2606 = vadd.f32 %v2598, %v2604
    %v2607 = vadd.f32 %v2599, %v2604
    %v2608 = vadd.f32 %v2600, %v2604
    %vm2609 = vcmp.ge.f32.partialorder %v2605, 0.0
    %vm2610 = vcmp.ge.f32.partialorder %v2606, 0.0
    %vm2611 = vcmp.ge.f32.partialorder %v2607, 0.0
    %vm2612 = vcmp.ge.f32.partialorder %v2608, 0.0
    %v2613 = vmul.f32 %v2605, 0.01
    %v2614 = vmul.f32 %v2606, 0.01
    %v2615 = vmul.f32 %v2607, 0.01
    %v2616 = vmul.f32 %v2608, 0.01
    %v2617 = vsel %vm2609, %v2605, %v2613
    %v2618 = vsel %vm2610, %v2606, %v2614
    %v2619 = vsel %vm2611, %v2607, %v2615
    %v2620 = vsel %vm2612, %v2608, %v2616
    %v2621 = vld [vmem:[%s2 + $0x48] sm:$0xff]
    %v2622 = vld [vmem:[%s2 + $0x50] sm:$0xf]
    %v2623 = vld [vmem:[%s2 + $0x54] sm:$0xff]
    %v2624 = vld [vmem:[%s2 + $0x5c] sm:$0xf]
    %v2625 = vld [vmem:[%s2 + $0x60] sm:$0xff]
    %v2626 = vld [vmem:[%s2 + $0x68] sm:$0xf]
    %v2627 = vld [vmem:[%s2 + $0x6c] sm:$0xff]
    %v2628 = vld [vmem:[%s2 + $0x74] sm:$0xf]
    %v2629 = vld [vmem:[%s2 + $0x78] sm:$0xff]
    %v2630 = vld [vmem:[%s2 + $0x80] sm:$0xf]
    %v2631 = vld [vmem:[%s2 + $0x84] sm:$0xff]
    %v2632 = vld [vmem:[%s2 + $0x8c] sm:$0xf]
    %v2633 = vld [vmem:[%s2 + $0x90] sm:$0xff]
    %v2634 = vld [vmem:[%s2 + $0x98] sm:$0xf]
    %v2635 = vld [vmem:[%s2 + $0x9c] sm:$0xff]
    %v2636 = vld [vmem:[%s2 + $0xa4] sm:$0xf]
    %v2637 = vld [vmem:[%s2 + $0xa8] sm:$0xff]
    %v2638 = vld [vmem:[%s2 + $0xb0] sm:$0xf]
    %v2639 = vld [vmem:[%s2 + $0xb4] sm:$0xff]
    %v2640 = vld [vmem:[%s2 + $0xbc] sm:$0xf]
    %v2641 = vld [vmem:[%s2 + $0xc0] sm:$0xff]
    %v2642 = vld [vmem:[%s2 + $0xc8] sm:$0xf]
    %v2643 = vld [vmem:[%s2 + $0xcc] sm:$0xff]
    %v2644 = vld [vmem:[%s2 + $0xd4] sm:$0xf]
    %v2645 = vld [vmem:[%s2 + $0xd8] sm:$0xff]
    %v2646 = vld [vmem:[%s2 + $0xe0] sm:$0xf]
    %v2647 = vld [vmem:[%s2 + $0xe4] sm:$0xff]
    %v2648 = vld [vmem:[%s2 + $0xec] sm:$0xf]
    %v2649 = vld [vmem:[%s2 + $0xf0] sm:$0xff]
    %v2650 = vld [vmem:[%s2 + $0xf8] sm:$0xf]
    %v2651 = vld [vmem:[%s2 + $0xfc] sm:$0xff]
    %v2652 = vld [vmem:[%s2 + $0x104] sm:$0xf]
    %v2653 = vpack.c.bf16 %v2618, %v2617
    %v2654 = vpack.c.bf16 %v2620, %v2619
    %v2687 = vunpack.c.l.b16 %v2621
    %v2688 = vunpack.c.h.b16 %v2621
    %v2689 = vunpack.c.l.b16 %v2622
    %v2690 = vunpack.c.l.b16 %v2623
    %v2691 = vunpack.c.h.b16 %v2623
    %v2692 = vunpack.c.l.b16 %v2624
    %v2693 = vunpack.c.l.b16 %v2625
    %v2694 = vunpack.c.h.b16 %v2625
    %v2695 = vunpack.c.l.b16 %v2626
    %v2696 = vunpack.c.l.b16 %v2627
    %v2697 = vunpack.c.h.b16 %v2627
    %v2698 = vunpack.c.l.b16 %v2628
    %v2699 = vunpack.c.l.b16 %v2629
    %v2700 = vunpack.c.h.b16 %v2629
    %v2701 = vunpack.c.l.b16 %v2630
    %v2702 = vunpack.c.l.b16 %v2631
    %v2703 = vunpack.c.h.b16 %v2631
    %v2704 = vunpack.c.l.b16 %v2632
    %v2705 = vunpack.c.l.b16 %v2633
    %v2706 = vunpack.c.h.b16 %v2633
    %v2707 = vunpack.c.l.b16 %v2634
    %v2708 = vunpack.c.l.b16 %v2635
    %v2709 = vunpack.c.h.b16 %v2635
    %v2710 = vunpack.c.l.b16 %v2636
    %v2711 = vunpack.c.l.b16 %v2637
    %v2712 = vunpack.c.h.b16 %v2637
    %v2713 = vunpack.c.l.b16 %v2638
    %v2714 = vunpack.c.l.b16 %v2639
    %v2715 = vunpack.c.h.b16 %v2639
    %v2716 = vunpack.c.l.b16 %v2640
    %v2717 = vunpack.c.l.b16 %v2641
    %v2718 = vunpack.c.h.b16 %v2641
    %v2719 = vunpack.c.l.b16 %v2642
    %v2720 = vunpack.c.l.b16 %v2643
    %v2721 = vunpack.c.h.b16 %v2643
    %v2722 = vunpack.c.l.b16 %v2644
    %v2723 = vunpack.c.l.b16 %v2645
    %v2724 = vunpack.c.h.b16 %v2645
    %v2725 = vunpack.c.l.b16 %v2646
    %v2726 = vunpack.c.l.b16 %v2647
    %v2727 = vunpack.c.h.b16 %v2647
    %v2728 = vunpack.c.l.b16 %v2648
    %v2729 = vunpack.c.l.b16 %v2649
    %v2730 = vunpack.c.h.b16 %v2649
    %v2731 = vunpack.c.l.b16 %v2650
    %v2732 = vunpack.c.l.b16 %v2651
    %v2733 = vunpack.c.h.b16 %v2651
    %v2734 = vunpack.c.l.b16 %v2652
    %v2735 = vpack.c.b16 %v2690, %v2687
    %v2736 = vpack.c.b16 %v2691, %v2688
    %v2737 = vpack.c.b16 %v2692, %v2689
    %v2738 = vpack.c.b16 %v2696, %v2693
    %v2739 = vpack.c.b16 %v2697, %v2694
    %v2740 = vpack.c.b16 %v2698, %v2695
    %v2741 = vpack.c.b16 %v2702, %v2699
    %v2742 = vpack.c.b16 %v2703, %v2700
    %v2743 = vpack.c.b16 %v2704, %v2701
    %v2744 = vpack.c.b16 %v2708, %v2705
    %v2745 = vpack.c.b16 %v2709, %v2706
    %v2746 = vpack.c.b16 %v2710, %v2707
    %v2747 = vpack.c.b16 %v2714, %v2711
    %v2748 = vpack.c.b16 %v2715, %v2712
    %v2749 = vpack.c.b16 %v2716, %v2713
    %v2750 = vpack.c.b16 %v2720, %v2717
    %v2751 = vpack.c.b16 %v2721, %v2718
    %v2752 = vpack.c.b16 %v2722, %v2719
    %v2753 = vpack.c.b16 %v2726, %v2723
    %v2754 = vpack.c.b16 %v2727, %v2724
    %v2755 = vpack.c.b16 %v2728, %v2725
    %v2756 = vpack.c.b16 %v2732, %v2729
    %v2757 = vpack.c.b16 %v2733, %v2730
    %v2758 = vpack.c.b16 %v2734, %v2731
    %2783 = vmatprep.subr.bf16.mxu0 %v2736
    %2784 = vmatpush1.bf16.msra.mxu0 %v2735
    %2785 = vmatprep.subr.bf16.mxu0 %v2739
    %2786 = vmatpush1.bf16.msra.mxu0 %v2738
    %2787 = vmatprep.subr.bf16.mxu0 %v2742
    %2788 = vmatpush1.bf16.msra.mxu0 %v2741
    %2789 = vmatprep.subr.bf16.mxu0 %v2745
    %2790 = vmatpush1.bf16.msra.mxu0 %v2744
    %2791 = vmatprep.subr.bf16.mxu0 %v2748
    %2792 = vmatpush1.bf16.msra.mxu0 %v2747
    %2793 = vmatprep.subr.bf16.mxu0 %v2751
    %2794 = vmatpush1.bf16.msra.mxu0 %v2750
    %2795 = vmatprep.subr.bf16.mxu0 %v2754
    %2796 = vmatpush1.bf16.msra.mxu0 %v2753
    %2797 = vmatprep.subr.bf16.mxu0 %v2757
    %2798 = vmatpush1.bf16.msra.mxu0 %v2756
    %2799 = vmatprep.subr.bf16.mxu0 0
    %2800 = vmatpush1.bf16.msra.mxu0 0
    %2801 = vmatprep.subr.bf16.mxu0 0
    %2802 = vmatpush1.bf16.msra.mxu0 0
    %2803 = vmatprep.subr.bf16.mxu0 0
    %2804 = vmatpush1.bf16.msra.mxu0 0
    %2805 = vmatprep.subr.bf16.mxu0 0
    %2806 = vmatpush1.bf16.msra.mxu0 0
    %2807 = vmatprep.subr.bf16.mxu0 0
    %2808 = vmatpush1.bf16.msra.mxu0 0
    %2809 = vmatprep.subr.bf16.mxu0 0
    %2810 = vmatpush1.bf16.msra.mxu0 0
    %2811 = vmatprep.subr.bf16.mxu0 0
    %2812 = vmatpush1.bf16.msra.mxu0 0
    %2813 = vmatprep.subr.bf16.mxu0 0
    %2814 = vmatpush1.bf16.msra.mxu0 0
    %2815 = vmatprep.mubr.bf16.mxu0 0
    %2816 = vmatmul.mubr.bf16.gmra.mrb[0].mxu0 %v2653
    %v2817 = vpop.f32.mrb[0].mxu0
    %v2818 = vadd.f32 0.0, %v2817
    %v2819 = vpop.f32.mrb[0].mxu0
    %v2820 = vadd.f32 0.0, %v2819
    %v2821 = vpop.f32.mrb[0].mxu0
    %v2822 = vadd.f32 0.0, %v2821
    %v2823 = vpop.f32.mrb[0].mxu0
    %v2824 = vadd.f32 0.0, %v2823
    %2825 = vmatprep.mubr.bf16.mxu0 0
    %2826 = vmatmul.mubr.bf16.gmra.mrb[0].mxu0 %v2654
    %v2827 = vpop.f32.mrb[0].mxu0
    %v2828 = vadd.f32 0.0, %v2827
    %v2829 = vpop.f32.mrb[0].mxu0
    %v2830 = vadd.f32 0.0, %v2829
    %v2831 = vpop.f32.mrb[0].mxu0
    %v2832 = vadd.f32 0.0, %v2831
    %v2833 = vpop.f32.mrb[0].mxu0
    %v2834 = vadd.f32 0.0, %v2833
    %2835 = vdwg.mxu0
    %2836 = vmatprep.subr.bf16.mxu0 0
    %2837 = vmatpush1.bf16.msra.mxu0 %v2737
    %2838 = vmatprep.subr.bf16.mxu0 0
    %2839 = vmatpush1.bf16.msra.mxu0 %v2740
    %2840 = vmatprep.subr.bf16.mxu0 0
    %2841 = vmatpush1.bf16.msra.mxu0 %v2743
    %2842 = vmatprep.subr.bf16.mxu0 0
    %2843 = vmatpush1.bf16.msra.mxu0 %v2746
    %2844 = vmatprep.subr.bf16.mxu0 0
    %2845 = vmatpush1.bf16.msra.mxu0 %v2749
    %2846 = vmatprep.subr.bf16.mxu0 0
    %2847 = vmatpush1.bf16.msra.mxu0 %v2752
    %2848 = vmatprep.subr.bf16.mxu0 0
    %2849 = vmatpush1.bf16.msra.mxu0 %v2755
    %2850 = vmatprep.subr.bf16.mxu0 0
    %2851 = vmatpush1.bf16.msra.mxu0 %v2758
    %2852 = vmatprep.subr.bf16.mxu0 0
    %2853 = vmatpush1.bf16.msra.mxu0 0
    %2854 = vmatprep.subr.bf16.mxu0 0
    %2855 = vmatpush1.bf16.msra.mxu0 0
    %2856 = vmatprep.subr.bf16.mxu0 0
    %2857 = vmatpush1.bf16.msra.mxu0 0
    %2858 = vmatprep.subr.bf16.mxu0 0
    %2859 = vmatpush1.bf16.msra.mxu0 0
    %2860 = vmatprep.subr.bf16.mxu0 0
    %2861 = vmatpush1.bf16.msra.mxu0 0
    %2862 = vmatprep.subr.bf16.mxu0 0
    %2863 = vmatpush1.bf16.msra.mxu0 0
    %2864 = vmatprep.subr.bf16.mxu0 0
    %2865 = vmatpush1.bf16.msra.mxu0 0
    %2866 = vmatprep.subr.bf16.mxu0 0
    %2867 = vmatpush1.bf16.msra.mxu0 0
    %2868 = vmatprep.mubr.bf16.mxu0 0
    %2869 = vmatmul.mubr.bf16.gmra.mrb[0].mxu0 %v2653
    %v2870 = vpop.f32.mrb[0].mxu0
    %v2871 = vadd.f32 0.0, %v2870
    %v2872 = vpop.f32.mrb[0].mxu0
    %v2873 = vpop.f32.mrb[0].mxu0
    %v2874 = vadd.f32 0.0, %v2873
    %v2875 = vpop.f32.mrb[0].mxu0
    %2876 = vmatprep.mubr.bf16.mxu0 0
    %2877 = vmatmul.mubr.bf16.gmra.mrb[0].mxu0 %v2654
    %v2878 = vpop.f32.mrb[0].mxu0
    %v2879 = vadd.f32 0.0, %v2878
    %v2880 = vpop.f32.mrb[0].mxu0
    %v2881 = vpop.f32.mrb[0].mxu0
    %v2882 = vadd.f32 0.0, %v2881
    %v2883 = vpop.f32.mrb[0].mxu0
    %2884 = vdwg.mxu0
    %v2886 = vsel %vm316, %v83, 0
    %v2889 = vsel %vm316, %v84, 0
    %v2892 = vsel %vm316, %v85, 0
    %v2895 = vsel %vm316, %v86, 0
    %2897 = vmatprep.subr.mxu0 0.0
    %2898 = vmatpush1.msra.mxu0 %v2820
    %2899 = vmatprep.subr.mxu0 0.0
    %2900 = vmatpush1.msra.mxu0 %v2824
    %2901 = vmatprep.subr.mxu0 0.0
    %2902 = vmatpush1.msra.mxu0 %v2830
    %2903 = vmatprep.subr.mxu0 0.0
    %2904 = vmatpush1.msra.mxu0 %v2834
    %2905 = vmatprep.subr.mxu0 0.0
    %2906 = vmatpush1.msra.mxu0 0.0
    %2907 = vmatprep.subr.mxu0 0.0
    %2908 = vmatpush1.msra.mxu0 0.0
    %2909 = vmatprep.subr.mxu0 0.0
    %2910 = vmatpush1.msra.mxu0 0.0
    %2911 = vmatprep.subr.mxu0 0.0
    %2912 = vmatpush1.msra.mxu0 0.0
    %2913 = vmatprep.subr.mxu0 0.0
    %2914 = vmatpush1.msra.mxu0 0.0
    %2915 = vmatprep.subr.mxu0 0.0
    %2916 = vmatpush1.msra.mxu0 0.0
    %2917 = vmatprep.subr.mxu0 0.0
    %2918 = vmatpush1.msra.mxu0 0.0
    %2919 = vmatprep.subr.mxu0 0.0
    %2920 = vmatpush1.msra.mxu0 0.0
    %2921 = vmatprep.subr.mxu0 0.0
    %2922 = vmatpush1.msra.mxu0 0.0
    %2923 = vmatprep.subr.mxu0 0.0
    %2924 = vmatpush1.msra.mxu0 0.0
    %2925 = vmatprep.subr.mxu0 0.0
    %2926 = vmatpush1.msra.mxu0 0.0
    %2927 = vmatprep.subr.mxu0 0.0
    %2928 = vmatpush1.msra.mxu0 0.0
    %2929 = vmatprep.subr.mxu0 0.0
    %2930 = vmatpush1.msra.mxu0 0.0
    %2931 = vmatprep.subr.mxu0 0.0
    %2932 = vmatpush1.msra.mxu0 0.0
    %2933 = vmatprep.subr.mxu0 0.0
    %2934 = vmatpush1.msra.mxu0 0.0
    %2935 = vmatprep.subr.mxu0 0.0
    %2936 = vmatpush1.msra.mxu0 0.0
    %2937 = vmatprep.subr.mxu0 0.0
    %2938 = vmatpush1.msra.mxu0 0.0
    %2939 = vmatprep.subr.mxu0 0.0
    %2940 = vmatpush1.msra.mxu0 0.0
    %2941 = vmatprep.subr.mxu0 0.0
    %2942 = vmatpush1.msra.mxu0 0.0
    %2943 = vmatprep.subr.mxu0 0.0
    %2944 = vmatpush1.msra.mxu0 0.0
    %2945 = vmatprep.subr.mxu0 0.0
    %2946 = vmatpush1.msra.mxu0 0.0
    %2947 = vmatprep.subr.mxu0 0.0
    %2948 = vmatpush1.msra.mxu0 0.0
    %2949 = vmatprep.subr.mxu0 0.0
    %2950 = vmatpush1.msra.mxu0 0.0
    %2951 = vmatprep.subr.mxu0 0.0
    %2952 = vmatpush1.msra.mxu0 0.0
    %2953 = vmatprep.subr.mxu0 0.0
    %2954 = vmatpush1.msra.mxu0 0.0
    %2955 = vmatprep.subr.mxu0 0.0
    %2956 = vmatpush1.msra.mxu0 0.0
    %2957 = vmatprep.subr.mxu0 0.0
    %2958 = vmatpush1.msra.mxu0 0.0
    %2959 = vmatprep.subr.mxu0 0.0
    %2960 = vmatpush1.msra.mxu0 0.0
    %2961 = vmatprep.mubr.f32.mxu0 0.0
    %2962 = vmatmul.mubr.f32.gmra.mrb[0].mxu0 %v2886
    %v2963 = vpop.f32.mrb[0].mxu0
    %v2964 = vadd.f32 0.0, %v2963
    %v2965 = vpop.f32.mrb[0].mxu0
    %2966 = vmatprep.mubr.f32.mxu0 0.0
    %2967 = vmatmul.mubr.f32.gmra.mrb[0].mxu0 %v2889
    %v2968 = vpop.f32.mrb[0].mxu0
    %v2969 = vadd.f32 0.0, %v2968
    %v2970 = vpop.f32.mrb[0].mxu0
    %2971 = vmatprep.mubr.f32.mxu0 0.0
    %2972 = vmatmul.mubr.f32.gmra.mrb[0].mxu0 %v2892
    %v2973 = vpop.f32.mrb[0].mxu0
    %v2974 = vadd.f32 0.0, %v2973
    %v2975 = vpop.f32.mrb[0].mxu0
    %2976 = vmatprep.mubr.f32.mxu0 0.0
    %2977 = vmatmul.mubr.f32.gmra.mrb[0].mxu0 %v2895
    %v2978 = vpop.f32.mrb[0].mxu0
    %v2979 = vadd.f32 0.0, %v2978
    %v2980 = vpop.f32.mrb[0].mxu0
    %2981 = vdwg.mxu0
    %v2983 = vsel %vm316, %v79, 0
    %v2986 = vsel %vm316, %v80, 0
    %v2989 = vsel %vm316, %v81, 0
    %v2992 = vsel %vm316, %v82, 0
    %2994 = vmatprep.subr.mxu0 0.0
    %2995 = vmatpush1.msra.mxu0 %v2818
    %2996 = vmatprep.subr.mxu0 0.0
    %2997 = vmatpush1.msra.mxu0 %v2822
    %2998 = vmatprep.subr.mxu0 0.0
    %2999 = vmatpush1.msra.mxu0 %v2828
    %3000 = vmatprep.subr.mxu0 0.0
    %3001 = vmatpush1.msra.mxu0 %v2832
    %3002 = vmatprep.subr.mxu0 0.0
    %3003 = vmatpush1.msra.mxu0 0.0
    %3004 = vmatprep.subr.mxu0 0.0
    %3005 = vmatpush1.msra.mxu0 0.0
    %3006 = vmatprep.subr.mxu0 0.0
    %3007 = vmatpush1.msra.mxu0 0.0
    %3008 = vmatprep.subr.mxu0 0.0
    %3009 = vmatpush1.msra.mxu0 0.0
    %3010 = vmatprep.subr.mxu0 0.0
    %3011 = vmatpush1.msra.mxu0 0.0
    %3012 = vmatprep.subr.mxu0 0.0
    %3013 = vmatpush1.msra.mxu0 0.0
    %3014 = vmatprep.subr.mxu0 0.0
    %3015 = vmatpush1.msra.mxu0 0.0
    %3016 = vmatprep.subr.mxu0 0.0
    %3017 = vmatpush1.msra.mxu0 0.0
    %3018 = vmatprep.subr.mxu0 0.0
    %3019 = vmatpush1.msra.mxu0 0.0
    %3020 = vmatprep.subr.mxu0 0.0
    %3021 = vmatpush1.msra.mxu0 0.0
    %3022 = vmatprep.subr.mxu0 0.0
    %3023 = vmatpush1.msra.mxu0 0.0
    %3024 = vmatprep.subr.mxu0 0.0
    %3025 = vmatpush1.msra.mxu0 0.0
    %3026 = vmatprep.subr.mxu0 0.0
    %3027 = vmatpush1.msra.mxu0 0.0
    %3028 = vmatprep.subr.mxu0 0.0
    %3029 = vmatpush1.msra.mxu0 0.0
    %3030 = vmatprep.subr.mxu0 0.0
    %3031 = vmatpush1.msra.mxu0 0.0
    %3032 = vmatprep.subr.mxu0 0.0
    %3033 = vmatpush1.msra.mxu0 0.0
    %3034 = vmatprep.subr.mxu0 0.0
    %3035 = vmatpush1.msra.mxu0 0.0
    %3036 = vmatprep.subr.mxu0 0.0
    %3037 = vmatpush1.msra.mxu0 0.0
    %3038 = vmatprep.subr.mxu0 0.0
    %3039 = vmatpush1.msra.mxu0 0.0
    %3040 = vmatprep.subr.mxu0 0.0
    %3041 = vmatpush1.msra.mxu0 0.0
    %3042 = vmatprep.subr.mxu0 0.0
    %3043 = vmatpush1.msra.mxu0 0.0
    %3044 = vmatprep.subr.mxu0 0.0
    %3045 = vmatpush1.msra.mxu0 0.0
    %3046 = vmatprep.subr.mxu0 0.0
    %3047 = vmatpush1.msra.mxu0 0.0
    %3048 = vmatprep.subr.mxu0 0.0
    %3049 = vmatpush1.msra.mxu0 0.0
    %3050 = vmatprep.subr.mxu0 0.0
    %3051 = vmatpush1.msra.mxu0 0.0
    %3052 = vmatprep.subr.mxu0 0.0
    %3053 = vmatpush1.msra.mxu0 0.0
    %3054 = vmatprep.subr.mxu0 0.0
    %3055 = vmatpush1.msra.mxu0 0.0
    %3056 = vmatprep.subr.mxu0 0.0
    %3057 = vmatpush1.msra.mxu0 0.0
    %3058 = vmatprep.mubr.f32.mxu0 0.0
    %3059 = vmatmul.mubr.f32.gmra.mrb[0].mxu0 %v2983
    %v3060 = vpop.f32.mrb[0].mxu0
    %v3061 = vadd.f32 %v2964, %v3060
    %v3062 = vpop.f32.mrb[0].mxu0
    %3063 = vmatprep.mubr.f32.mxu0 0.0
    %3064 = vmatmul.mubr.f32.gmra.mrb[0].mxu0 %v2986
    %v3065 = vpop.f32.mrb[0].mxu0
    %v3066 = vadd.f32 %v2969, %v3065
    %v3067 = vpop.f32.mrb[0].mxu0
    %3068 = vmatprep.mubr.f32.mxu0 0.0
    %3069 = vmatmul.mubr.f32.gmra.mrb[0].mxu0 %v2989
    %v3070 = vpop.f32.mrb[0].mxu0
    %v3071 = vadd.f32 %v2974, %v3070
    %v3072 = vpop.f32.mrb[0].mxu0
    %3073 = vmatprep.mubr.f32.mxu0 0.0
    %3074 = vmatmul.mubr.f32.gmra.mrb[0].mxu0 %v2992
    %v3075 = vpop.f32.mrb[0].mxu0
    %v3076 = vadd.f32 %v2979, %v3075
    %v3077 = vpop.f32.mrb[0].mxu0
    %3078 = vdwg.mxu0
    %v3080 = vsel %vm316, %v87, 0
    %v3083 = vsel %vm316, %v88, 0
    %v3086 = vsel %vm316, %v89, 0
    %v3089 = vsel %vm316, %v90, 0
    %3091 = vmatprep.subr.mxu0 0.0
    %3092 = vmatpush1.msra.mxu0 %v2871
    %3093 = vmatprep.subr.mxu0 0.0
    %3094 = vmatpush1.msra.mxu0 %v2874
    %3095 = vmatprep.subr.mxu0 0.0
    %3096 = vmatpush1.msra.mxu0 %v2879
    %3097 = vmatprep.subr.mxu0 0.0
    %3098 = vmatpush1.msra.mxu0 %v2882
    %3099 = vmatprep.subr.mxu0 0.0
    %3100 = vmatpush1.msra.mxu0 0.0
    %3101 = vmatprep.subr.mxu0 0.0
    %3102 = vmatpush1.msra.mxu0 0.0
    %3103 = vmatprep.subr.mxu0 0.0
    %3104 = vmatpush1.msra.mxu0 0.0
    %3105 = vmatprep.subr.mxu0 0.0
    %3106 = vmatpush1.msra.mxu0 0.0
    %3107 = vmatprep.subr.mxu0 0.0
    %3108 = vmatpush1.msra.mxu0 0.0
    %3109 = vmatprep.subr.mxu0 0.0
    %3110 = vmatpush1.msra.mxu0 0.0
    %3111 = vmatprep.subr.mxu0 0.0
    %3112 = vmatpush1.msra.mxu0 0.0
    %3113 = vmatprep.subr.mxu0 0.0
    %3114 = vmatpush1.msra.mxu0 0.0
    %3115 = vmatprep.subr.mxu0 0.0
    %3116 = vmatpush1.msra.mxu0 0.0
    %3117 = vmatprep.subr.mxu0 0.0
    %3118 = vmatpush1.msra.mxu0 0.0
    %3119 = vmatprep.subr.mxu0 0.0
    %3120 = vmatpush1.msra.mxu0 0.0
    %3121 = vmatprep.subr.mxu0 0.0
    %3122 = vmatpush1.msra.mxu0 0.0
    %3123 = vmatprep.subr.mxu0 0.0
    %3124 = vmatpush1.msra.mxu0 0.0
    %3125 = vmatprep.subr.mxu0 0.0
    %3126 = vmatpush1.msra.mxu0 0.0
    %3127 = vmatprep.subr.mxu0 0.0
    %3128 = vmatpush1.msra.mxu0 0.0
    %3129 = vmatprep.subr.mxu0 0.0
    %3130 = vmatpush1.msra.mxu0 0.0
    %3131 = vmatprep.subr.mxu0 0.0
    %3132 = vmatpush1.msra.mxu0 0.0
    %3133 = vmatprep.subr.mxu0 0.0
    %3134 = vmatpush1.msra.mxu0 0.0
    %3135 = vmatprep.subr.mxu0 0.0
    %3136 = vmatpush1.msra.mxu0 0.0
    %3137 = vmatprep.subr.mxu0 0.0
    %3138 = vmatpush1.msra.mxu0 0.0
    %3139 = vmatprep.subr.mxu0 0.0
    %3140 = vmatpush1.msra.mxu0 0.0
    %3141 = vmatprep.subr.mxu0 0.0
    %3142 = vmatpush1.msra.mxu0 0.0
    %3143 = vmatprep.subr.mxu0 0.0
    %3144 = vmatpush1.msra.mxu0 0.0
    %3145 = vmatprep.subr.mxu0 0.0
    %3146 = vmatpush1.msra.mxu0 0.0
    %3147 = vmatprep.subr.mxu0 0.0
    %3148 = vmatpush1.msra.mxu0 0.0
    %3149 = vmatprep.subr.mxu0 0.0
    %3150 = vmatpush1.msra.mxu0 0.0
    %3151 = vmatprep.subr.mxu0 0.0
    %3152 = vmatpush1.msra.mxu0 0.0
    %3153 = vmatprep.subr.mxu0 0.0
    %3154 = vmatpush1.msra.mxu0 0.0
    %3155 = vmatprep.mubr.f32.mxu0 0.0
    %3156 = vmatmul.mubr.f32.gmra.mrb[0].mxu0 %v3080
    %v3157 = vpop.f32.mrb[0].mxu0
    %v3158 = vadd.f32 0.0, %v3157
    %v3159 = vpop.f32.mrb[0].mxu0
    %3160 = vmatprep.mubr.f32.mxu0 0.0
    %3161 = vmatmul.mubr.f32.gmra.mrb[0].mxu0 %v3083
    %v3162 = vpop.f32.mrb[0].mxu0
    %v3163 = vadd.f32 0.0, %v3162
    %v3164 = vpop.f32.mrb[0].mxu0
    %3165 = vmatprep.mubr.f32.mxu0 0.0
    %3166 = vmatmul.mubr.f32.gmra.mrb[0].mxu0 %v3086
    %v3167 = vpop.f32.mrb[0].mxu0
    %v3168 = vadd.f32 0.0, %v3167
    %v3169 = vpop.f32.mrb[0].mxu0
    %3170 = vmatprep.mubr.f32.mxu0 0.0
    %3171 = vmatmul.mubr.f32.gmra.mrb[0].mxu0 %v3089
    %v3172 = vpop.f32.mrb[0].mxu0
    %v3173 = vadd.f32 0.0, %v3172
    %v3174 = vpop.f32.mrb[0].mxu0
    %3175 = vdwg.mxu0
    %v3176 = vadd.f32 %v3061, %v3158
    %v3177 = vadd.f32 %v3066, %v3163
    %v3178 = vadd.f32 %v3071, %v3168
    %v3179 = vadd.f32 %v3076, %v3173
    %v3180 = vlaneseq
    %v3181 = vshrl.u32 %v3180, 7
    %v3182 = vsub.s32 0, %v3181
    %v3183 = vrot.slane %v129, %v3182
    %v3184 = vadd.f32 %v3176, %v3183
    %v3185 = vadd.f32 %v3177, %v3183
    %v3186 = vadd.f32 %v3178, %v3183
    %v3187 = vadd.f32 %v3179, %v3183
    %v3188 = vsub.f32 0.0, %v3184
    %v3189 = vsub.f32 0.0, %v3185
    %v3190 = vsub.f32 0.0, %v3186
    %v3191 = vsub.f32 0.0, %v3187
    %v3192 = vmul.f32 %v3188, 1.442695
    %v3193 = vpow.pop %v3192
    %v3194 = vmul.f32 %v3189, 1.442695
    %v3195 = vpow.pop %v3194
    %v3196 = vmul.f32 %v3190, 1.442695
    %v3197 = vpow.pop %v3196
    %v3198 = vmul.f32 %v3191, 1.442695
    %v3199 = vpow.pop %v3198
    %v3200 = vadd.f32 %v3193, 1.0
    %v3201 = vadd.f32 %v3195, 1.0
    %v3202 = vadd.f32 %v3197, 1.0
    %v3203 = vadd.f32 %v3199, 1.0
    %v3204 = vrcp.pop %v3200
    %v3205 = vmul.f32 1.0, %v3204
    %v3206 = vrcp.pop %v3201
    %v3207 = vmul.f32 1.0, %v3206
    %v3208 = vrcp.pop %v3202
    %v3209 = vmul.f32 1.0, %v3208
    %v3210 = vrcp.pop %v3203
    %v3211 = vmul.f32 1.0, %v3210
    %3212 = vst [vmem:[%s8] sm:$0xff] %v3205
    %3213 = vst [vmem:[%s8 + $0x8] sm:$0xff] %v3207
    %3214 = vst [vmem:[%s8 + $0x10] sm:$0xff] %v3209
    %3215 = vst [vmem:[%s8 + $0x18] sm:$0xff] %v3211
    // Predicated region
    $region34: #{vae5_forward.1} parent=1 // pred_check
      _
    $region35: #{vae5_forward.1} parent=1 // pred_check_branch
      %3217 = sbr.rel (0) target = $region37
    $region36: #{vae5_forward.1} parent=1 // pred_region
      _
    $region37: #{vae5_forward.1} parent=1 // pred_fallthru
      _
    // Predicated region
    $region38: #{vae5_forward.1} parent=1 // pred_check
      _
    $region39: #{vae5_forward.1} parent=1 // pred_check_branch
      %3219 = sbr.rel (0) target = $region41
    $region40: #{vae5_forward.1} parent=1 // pred_region
      _
    $region41: #{vae5_forward.1} parent=1 // pred_fallthru
      _
    // Predicated region
    $region42: #{vae5_forward.1} parent=1 // pred_check
      _
    $region43: #{vae5_forward.1} parent=1 // pred_check_branch
      %3221 = sbr.rel (0) target = $region45
    $region44: #{vae5_forward.1} parent=1 // pred_region
      _
    $region45: #{vae5_forward.1} parent=1 // pred_fallthru
      _
    // Predicated region
    $region46: #{vae5_forward.1} parent=1 // pred_check
      _
    $region47: #{vae5_forward.1} parent=1 // pred_check_branch
      %3223 = sbr.rel (0) target = $region49
    $region48: #{vae5_forward.1} parent=1 // pred_region
      _
    $region49: #{vae5_forward.1} parent=1 // pred_fallthru
      _
    %3224 = vsyncpa [#allocation3], 1

</llo_original>
